<compile_context>
chip_gen: v7x
topology: tpu7x:2x2x1
jax: 0.10.0
libtpu: 0.0.40
codegen_flags: <defaults>
</compile_context>

<pallas_src>
import math
import functools

import jax
import jax.numpy as jnp
import numpy as np
from jax import lax
from jax.experimental import pallas as pl
from jax.experimental.pallas import tpu as pltpu

# ---------------------------------------------------------------------------
# model hyper-parameters (small, consistent with the module)
# ---------------------------------------------------------------------------
B = 2          # batch
S = 8          # sequence length
D = 32         # d_model
D_FF = 64      # d_ff
NHEAD = 4
NLAYER = 2
D_K = D // NHEAD
EPS = 1e-6
ADD_SAME_ONE = True

SQRT_D = math.sqrt(D)
INV_SQRT_DK = 1.0 / math.sqrt(D_K)

LANES = 128
SMALL_ROWS = 3 * NLAYER + 2   # per layer: biases | LN a/b | FFN biases ; +final norm ; +pad
assert 4 * D == LANES and 2 * D_FF == LANES
assert D_FF + D <= LANES and 2 * D <= LANES


# ---------------------------------------------------------------------------
# LayerNorm (PyTorch-style from the module: a*(x-mean)/(std+eps)+b, unbiased std)
# Shared between the kernel body and the pure-JAX reference.
# ---------------------------------------------------------------------------
def _layer_norm(x, a, b):
    mean = jnp.mean(x, axis=-1, keepdims=True)
    xc = x - mean
    var = jnp.sum(xc * xc, axis=-1, keepdims=True) * (1.0 / (x.shape[-1] - 1))
    return a * xc / (jnp.sqrt(var) + EPS) + b


# ---------------------------------------------------------------------------
# Pallas kernel: the whole forward pass in ONE grid step (batch folded).
# Weight layout (packed host-side):
#   attn_w : [NLAYER, D, 4D]        columns [0:3D]=wq*s|wk|wv, [3D:4D]=wo
#   ffn_w  : [NLAYER, D, 2*D_FF]    columns [0:D_FF]=w1, [D_FF:2*D_FF]=w2^T
#   small  : [SMALL_ROWS, 128]      row 3l+0: bq*s|bk|bv|bo
#                                   row 3l+1: ln1a|ln1b|ln2a|ln2b
#                                   row 3l+2: b1|b2|pad
#                                   row 3L  : final-norm a|b|pad
#   (s = 1/sqrt(d_k) folded in at pack time)
# ---------------------------------------------------------------------------
def transformer_encoder_kernel(x_ref, pe_ref, attn_w_ref, ffn_w_ref, sp_ref,
                               out_ref, *, add_same_one: bool):
    sp = sp_ref[...]                                   # [8, 128] — one tile, loaded once
    # positional encoding: x * sqrt(d_model) + pe (pe pre-tiled to [B*S, D])
    x = x_ref[...] * SQRT_D + pe_ref[...]              # [B*S, D]

    for l in range(NLAYER):
        aw = attn_w_ref[l]                             # [D, 4D]
        ab = sp[3 * l + 0:3 * l + 1, :]                # [1, 4D]  bq*s|bk|bv|bo
        lnr = sp[3 * l + 1:3 * l + 2, :]               # [1, 4D]  ln1a|ln1b|ln2a|ln2b
        fbr = sp[3 * l + 2:3 * l + 3, :]               # [1, 128] b1|b2|pad

        # ---- sub-layer 1: multi-head self-attention (pre-norm) -------------
        x2 = _layer_norm(x, lnr[:, 0:D], lnr[:, D:2 * D])          # [B*S, D]
        qkv = jnp.dot(x2, aw[:, :3 * D],
                      preferred_element_type=jnp.float32) + ab[:, :3 * D]

        def heads(base):
            # lane range [base, base+D) of qkv -> [NHEAD*B, S, D_K] (head-major batch)
            return jnp.concatenate(
                [qkv[:, base + h * D_K: base + (h + 1) * D_K].reshape(B, S, D_K)
                 for h in range(NHEAD)], axis=0)

        q_bh = heads(0)
        k_bh = heads(D)
        v_bh = heads(2 * D)

        # 1/sqrt(d_k) already folded into wq/bq; single batched score matmul.
        sc = jnp.einsum('bqd,bkd->bqk', q_bh, k_bh,
                        preferred_element_type=jnp.float32)        # [NHEAD*B, S, S]
        p = jnp.exp(sc)                                # scores are O(1): no max-sub needed
        p = p * pl.reciprocal(jnp.sum(p, axis=-1, keepdims=True), approx=True)
        ctx = jnp.einsum('bqk,bkd->bqd', p, v_bh,
                         preferred_element_type=jnp.float32)       # [NHEAD*B, S, D_K]
        # undo the head-major stacking: back to [B*S, D] with (h,d) along lanes
        ctx = jnp.concatenate([ctx[h * B:(h + 1) * B] for h in range(NHEAD)],
                              axis=-1).reshape(B * S, D)
        attn = jnp.dot(ctx, aw[:, 3 * D:], preferred_element_type=jnp.float32)
        x = x + attn + ab[:, 3 * D:]                               # residual (+bo)

        # ---- sub-layer 2: feed-forward (pre-norm) --------------------------
        x2 = _layer_norm(x, lnr[:, 2 * D:3 * D], lnr[:, 3 * D:4 * D])
        fw = ffn_w_ref[l]                              # [D, 2*D_FF]  w1 | w2^T
        hdn = jnp.maximum(
            jnp.dot(x2, fw[:, :D_FF], preferred_element_type=jnp.float32)
            + fbr[:, :D_FF], 0.0)                      # ReLU
        ff = lax.dot_general(hdn, fw[:, D_FF:],
                             (((1,), (1,)), ((), ())),             # contract D_FF dims
                             preferred_element_type=jnp.float32) + fbr[:, D_FF:D_FF + D]
        x = x + ff                                                 # residual

        # ---- add_same_one: add per-batch mean over the sequence ------------
        if add_same_one:
            xb = x.reshape(B, S, D)
            x = (xb + jnp.mean(xb, axis=1, keepdims=True)).reshape(B * S, D)

    # final LayerNorm
    fn = sp[3 * NLAYER:3 * NLAYER + 1, :]
    out_ref[...] = _layer_norm(x, fn[:, 0:D], fn[:, D:2 * D])


# ---------------------------------------------------------------------------
# host-side packing of the module parameters into 3 slabs
# ---------------------------------------------------------------------------
def pack_params(params):
    (ln1a, ln1b, wq, bq, wk, bk, wv, bv, wo, bo,
     ln2a, ln2b, w1, b1, w2, b2, fna, fnb) = params
    s = INV_SQRT_DK
    attn_w = jnp.concatenate([wq * s, wk, wv, wo], axis=-1)          # [L, D, 4D]
    ffn_w = jnp.concatenate([w1, jnp.swapaxes(w2, 1, 2)], axis=-1)   # [L, D, 2*D_FF]

    def pad(row):
        return jnp.pad(row, (0, LANES - row.shape[0]))

    rows = []
    for l in range(NLAYER):
        rows.append(pad(jnp.concatenate([bq[l] * s, bk[l], bv[l], bo[l]])))
        rows.append(pad(jnp.concatenate([ln1a[l], ln1b[l], ln2a[l], ln2b[l]])))
        rows.append(pad(jnp.concatenate([b1[l], b2[l]])))
    rows.append(pad(jnp.concatenate([fna.reshape(-1), fnb.reshape(-1)])))
    while len(rows) < SMALL_ROWS:
        rows.append(jnp.zeros((LANES,), jnp.float32))
    small = jnp.stack(rows, axis=0).astype(jnp.float32)              # [8, 128]
    return attn_w, ffn_w, small


# ---------------------------------------------------------------------------
# wrapper
# ---------------------------------------------------------------------------
def transformer_encoder(x, pe_bs, packed, add_same_one):
    attn_w, ffn_w, small = packed
    kernel = functools.partial(transformer_encoder_kernel,
                               add_same_one=add_same_one)

    def full(shp):
        return pl.BlockSpec(shp, lambda i, _n=len(shp): (0,) * _n)

    flops = NLAYER * (2 * B * S * D * 3 * D              # fused QKV
                      + 2 * NHEAD * B * S * S * D_K * 2  # scores + ctx
                      + 2 * B * S * D * D                # output projection
                      + 4 * B * S * D * D_FF)            # FFN
    transcendentals = (NLAYER * (NHEAD * B * S * S       # softmax exp
                                 + NHEAD * B * S         # softmax recip
                                 + 2 * B * S)            # LN sqrt
                       + B * S)                          # final LN

    operands = (x.reshape(B * S, D), pe_bs, attn_w, ffn_w, small)
    bytes_accessed = sum(int(np.prod(a.shape)) * 4 for a in operands) \
        + B * S * D * 4

    out = pl.pallas_call(
        kernel,
        out_shape=jax.ShapeDtypeStruct((B * S, D), jnp.float32),
        grid_spec=pltpu.PrefetchScalarGridSpec(
            num_scalar_prefetch=0,
            grid=(1,),                                    # batch folded in-block
            in_specs=[
                full((B * S, D)),                         # x (batch folded)
                full((B * S, D)),                         # pe (pre-tiled)
                full((NLAYER, D, 4 * D)),                 # attn weights (128 lanes)
                full((NLAYER, D, 2 * D_FF)),              # ffn w1 | w2^T (128 lanes)
                full((SMALL_ROWS, LANES)),                # all small params, one tile
            ],
            out_specs=full((B * S, D)),
        ),
        compiler_params=pltpu.CompilerParams(
            dimension_semantics=("arbitrary",)),
        cost_estimate=pl.CostEstimate(flops=flops,
                                      transcendentals=transcendentals,
                                      bytes_accessed=bytes_accessed),
    )(*operands)
    return out.reshape(B, S, D)


# ---------------------------------------------------------------------------
# pure-JAX reference (same math, exact softmax/division) for correctness check
# ---------------------------------------------------------------------------
def reference_forward(x, pe, params, add_same_one):
    (ln1a, ln1b, wq, bq, wk, bk, wv, bv, wo, bo,
     ln2a, ln2b, w1, b1, w2, b2, fna, fnb) = params
    x = x * SQRT_D + pe[None]
    for l in range(NLAYER):
        x2 = _layer_norm(x, ln1a[l], ln1b[l])
        q = x2 @ wq[l] + bq[l]
        k = x2 @ wk[l] + bk[l]
        v = x2 @ wv[l] + bv[l]
        heads = []
        for h in range(NHEAD):
            sl = slice(h * D_K, (h + 1) * D_K)
            sc = jnp.einsum("bqd,bkd->bqk", q[..., sl], k[..., sl]) / math.sqrt(D_K)
            p = jax.nn.softmax(sc, axis=-1)
            heads.append(jnp.einsum("bqk,bkd->bqd", p, v[..., sl]))
        attn = jnp.concatenate(heads, axis=-1) @ wo[l] + bo[l]
        x = x + attn
        x2 = _layer_norm(x, ln2a[l], ln2b[l])
        ff = jnp.maximum(x2 @ w1[l] + b1[l], 0.0) @ w2[l] + b2[l]
        x = x + ff
        if add_same_one:
            x = x + jnp.mean(x, axis=1, keepdims=True)
    return _layer_norm(x, fna, fnb)


# ---------------------------------------------------------------------------
# deterministic parameter construction
# ---------------------------------------------------------------------------
def make_params(key):
    ks = jax.random.split(key, 12)
    s = 0.05
    ln1a = jnp.ones((NLAYER, D), jnp.float32)
    ln1b = jnp.zeros((NLAYER, D), jnp.float32)
    ln2a = jnp.ones((NLAYER, D), jnp.float32)
    ln2b = jnp.zeros((NLAYER, D), jnp.float32)
    wq = s * jax.random.normal(ks[0], (NLAYER, D, D), jnp.float32)
    wk = s * jax.random.normal(ks[1], (NLAYER, D, D), jnp.float32)
    wv = s * jax.random.normal(ks[2], (NLAYER, D, D), jnp.float32)
    wo = s * jax.random.normal(ks[3], (NLAYER, D, D), jnp.float32)
    bq = s * jax.random.normal(ks[4], (NLAYER, D), jnp.float32)
    bk = s * jax.random.normal(ks[5], (NLAYER, D), jnp.float32)
    bv = s * jax.random.normal(ks[6], (NLAYER, D), jnp.float32)
    bo = s * jax.random.normal(ks[7], (NLAYER, D), jnp.float32)
    w1 = s * jax.random.normal(ks[8], (NLAYER, D, D_FF), jnp.float32)
    b1 = s * jax.random.normal(ks[9], (NLAYER, D_FF), jnp.float32)
    w2 = s * jax.random.normal(ks[10], (NLAYER, D_FF, D), jnp.float32)
    b2 = s * jax.random.normal(ks[11], (NLAYER, D), jnp.float32)
    fna = jnp.ones((1, D), jnp.float32)
    fnb = jnp.zeros((1, D), jnp.float32)
    return (ln1a, ln1b, wq, bq, wk, bk, wv, bv, wo, bo,
            ln2a, ln2b, w1, b1, w2, b2, fna, fnb)


def make_positional_encoding():
    # Matches the module's formula exactly (cos uses exponent 2*(i+1)/d_model).
    pe = np.zeros((S, D), dtype=np.float32)
    for pos in range(S):
        for i in range(0, D, 2):
            pe[pos, i] = math.sin(pos / 10000 ** (2 * i / D))
            pe[pos, i + 1] = math.cos(pos / 10000 ** (2 * (i + 1) / D))
    return jnp.asarray(pe)


if __name__ == "__main__":
    key = jax.random.PRNGKey(0)
    kx, kp = jax.random.split(key)
    x = jax.random.normal(kx, (B, S, D), jnp.float32)
    pe = make_positional_encoding()
    pe_bs = jnp.tile(pe, (B, 1))                 # pre-tiled to the folded [B*S, D] layout
    params = make_params(kp)
    packed = pack_params(params)

    out = transformer_encoder(x, pe_bs, packed, ADD_SAME_ONE)
    out = jax.block_until_ready(out)

    ref = reference_forward(x, pe, params, ADD_SAME_ONE)
    assert out.shape == (B, S, D)
    # 5e-4 tolerance: the kernel uses the EUP approximate reciprocal for the
    # softmax denominator (pl.reciprocal(approx=True)); all other math is exact f32.
    np.testing.assert_allclose(np.asarray(out), np.asarray(ref),
                               atol=5e-4, rtol=5e-4)
    print("KERNEL_OK")
</pallas_src>

<mosaic_0001>
module attributes {stable_mosaic.version = 11 : i64} {
  func.func @transformer_encoder_kernel(%arg0: i32, %arg1: memref<16x32xf32, #tpu.memory_space<vmem>>, %arg2: memref<16x32xf32, #tpu.memory_space<vmem>>, %arg3: memref<2x32x128xf32, #tpu.memory_space<vmem>>, %arg4: memref<2x32x128xf32, #tpu.memory_space<vmem>>, %arg5: memref<8x128xf32, #tpu.memory_space<vmem>>, %arg6: memref<16x32xf32, #tpu.memory_space<vmem>>) attributes {dimension_semantics = [#tpu.dimension_semantics<arbitrary>], iteration_bounds = array<i64: 1>, scalar_prefetch = 0 : i64, scratch_operands = 0 : i64, tpu.core_type = #tpu.core_type<tc>, window_params = [{pipeline_mode = #tpu.pipeline_mode<synchronous>, transform_indices = @transform_0, window_bounds = array<i64: 16, 32>}, {pipeline_mode = #tpu.pipeline_mode<synchronous>, transform_indices = @transform_1, window_bounds = array<i64: 16, 32>}, {pipeline_mode = #tpu.pipeline_mode<synchronous>, transform_indices = @transform_2, window_bounds = array<i64: 2, 32, 128>}, {pipeline_mode = #tpu.pipeline_mode<synchronous>, transform_indices = @transform_3, window_bounds = array<i64: 2, 32, 128>}, {pipeline_mode = #tpu.pipeline_mode<synchronous>, transform_indices = @transform_4, window_bounds = array<i64: 8, 128>}, {pipeline_mode = #tpu.pipeline_mode<synchronous>, transform_indices = @transform_5, window_bounds = array<i64: 16, 32>}]} {
    %c0 = arith.constant 0 : index
    %c0_0 = arith.constant 0 : index
    %0 = vector.load %arg5[%c0, %c0_0] : memref<8x128xf32, #tpu.memory_space<vmem>>, vector<8x128xf32>
    %c0_1 = arith.constant 0 : index
    %c0_2 = arith.constant 0 : index
    %1 = vector.load %arg1[%c0_1, %c0_2] : memref<16x32xf32, #tpu.memory_space<vmem>>, vector<16x32xf32>
    %cst = arith.constant 5.65685415 : f32
    %2 = vector.broadcast %cst : f32 to vector<16x32xf32>
    %3 = arith.mulf %1, %2 : vector<16x32xf32>
    %c0_3 = arith.constant 0 : index
    %c0_4 = arith.constant 0 : index
    %4 = vector.load %arg2[%c0_3, %c0_4] : memref<16x32xf32, #tpu.memory_space<vmem>>, vector<16x32xf32>
    %5 = arith.addf %3, %4 : vector<16x32xf32>
    %c0_5 = arith.constant 0 : index
    %c0_6 = arith.constant 0 : index
    %c0_7 = arith.constant 0 : index
    %6 = vector.load %arg3[%c0_5, %c0_6, %c0_7] : memref<2x32x128xf32, #tpu.memory_space<vmem>>, vector<1x32x128xf32>
    %7 = vector.shape_cast %6 : vector<1x32x128xf32> to vector<32x128xf32>
    %8 = vector.extract_strided_slice %0 {offsets = [0, 0], sizes = [1, 128], strides = [1, 1]} : vector<8x128xf32> to vector<1x128xf32>
    %9 = vector.extract_strided_slice %0 {offsets = [1, 0], sizes = [1, 128], strides = [1, 1]} : vector<8x128xf32> to vector<1x128xf32>
    %10 = vector.extract_strided_slice %0 {offsets = [2, 0], sizes = [1, 128], strides = [1, 1]} : vector<8x128xf32> to vector<1x128xf32>
    %11 = vector.extract_strided_slice %9 {offsets = [0, 0], sizes = [1, 32], strides = [1, 1]} : vector<1x128xf32> to vector<1x32xf32>
    %12 = vector.extract_strided_slice %9 {offsets = [0, 32], sizes = [1, 32], strides = [1, 1]} : vector<1x128xf32> to vector<1x32xf32>
    %cst_8 = arith.constant dense<0.000000e+00> : vector<16xf32>
    %13 = vector.multi_reduction <add>, %5, %cst_8 [1] : vector<16x32xf32> to vector<16xf32>
    %14 = vector.shape_cast %13 : vector<16xf32> to vector<16x1xf32>
    %cst_9 = arith.constant 3.200000e+01 : f32
    %15 = vector.broadcast %cst_9 : f32 to vector<16x1xf32>
    %16 = arith.divf %14, %15 : vector<16x1xf32>
    %17 = vector.broadcast %16 : vector<16x1xf32> to vector<16x32xf32>
    %18 = arith.subf %5, %17 : vector<16x32xf32>
    %19 = arith.mulf %18, %18 : vector<16x32xf32>
    %cst_10 = arith.constant dense<0.000000e+00> : vector<16xf32>
    %20 = vector.multi_reduction <add>, %19, %cst_10 [1] : vector<16x32xf32> to vector<16xf32>
    %21 = vector.shape_cast %20 : vector<16xf32> to vector<16x1xf32>
    %cst_11 = arith.constant 0.0322580636 : f32
    %22 = vector.broadcast %cst_11 : f32 to vector<16x1xf32>
    %23 = arith.mulf %21, %22 : vector<16x1xf32>
    %24 = vector.broadcast %11 : vector<1x32xf32> to vector<16x32xf32>
    %25 = arith.mulf %24, %18 : vector<16x32xf32>
    %26 = math.sqrt %23 : vector<16x1xf32>
    %cst_12 = arith.constant 9.99999997E-7 : f32
    %27 = vector.broadcast %cst_12 : f32 to vector<16x1xf32>
    %28 = arith.addf %26, %27 : vector<16x1xf32>
    %29 = vector.broadcast %28 : vector<16x1xf32> to vector<16x32xf32>
    %30 = arith.divf %25, %29 : vector<16x32xf32>
    %31 = vector.broadcast %12 : vector<1x32xf32> to vector<16x32xf32>
    %32 = arith.addf %30, %31 : vector<16x32xf32>
    %33 = vector.extract_strided_slice %7 {offsets = [0, 0], sizes = [32, 96], strides = [1, 1]} : vector<32x128xf32> to vector<32x96xf32>
    %cst_13 = arith.constant dense<0.000000e+00> : vector<16x96xf32>
    %34 = tpu.matmul %32, %33, %cst_13 {dimension_numbers = #tpu.dot_dimension_numbers<[1], [0], [0], [1], [0, 0, 1, 1], [], []>} : vector<16x32xf32>, vector<32x96xf32>, vector<16x96xf32> -> vector<16x96xf32>
    %35 = vector.extract_strided_slice %8 {offsets = [0, 0], sizes = [1, 96], strides = [1, 1]} : vector<1x128xf32> to vector<1x96xf32>
    %36 = vector.broadcast %35 : vector<1x96xf32> to vector<16x96xf32>
    %37 = arith.addf %34, %36 : vector<16x96xf32>
    %38 = vector.extract_strided_slice %37 {offsets = [0, 0], sizes = [16, 8], strides = [1, 1]} : vector<16x96xf32> to vector<16x8xf32>
    %39 = vector.shape_cast %38 : vector<16x8xf32> to vector<2x8x8xf32>
    %40 = vector.extract_strided_slice %37 {offsets = [0, 8], sizes = [16, 8], strides = [1, 1]} : vector<16x96xf32> to vector<16x8xf32>
    %41 = vector.shape_cast %40 : vector<16x8xf32> to vector<2x8x8xf32>
    %42 = vector.extract_strided_slice %37 {offsets = [0, 16], sizes = [16, 8], strides = [1, 1]} : vector<16x96xf32> to vector<16x8xf32>
    %43 = vector.shape_cast %42 : vector<16x8xf32> to vector<2x8x8xf32>
    %44 = vector.extract_strided_slice %37 {offsets = [0, 24], sizes = [16, 8], strides = [1, 1]} : vector<16x96xf32> to vector<16x8xf32>
    %45 = vector.shape_cast %44 : vector<16x8xf32> to vector<2x8x8xf32>
    %46 = tpu.concatenate %39, %41, %43, %45 in 0 : vector<2x8x8xf32>, vector<2x8x8xf32>, vector<2x8x8xf32>, vector<2x8x8xf32> -> vector<8x8x8xf32>
    %47 = vector.extract_strided_slice %37 {offsets = [0, 32], sizes = [16, 8], strides = [1, 1]} : vector<16x96xf32> to vector<16x8xf32>
    %48 = vector.shape_cast %47 : vector<16x8xf32> to vector<2x8x8xf32>
    %49 = vector.extract_strided_slice %37 {offsets = [0, 40], sizes = [16, 8], strides = [1, 1]} : vector<16x96xf32> to vector<16x8xf32>
    %50 = vector.shape_cast %49 : vector<16x8xf32> to vector<2x8x8xf32>
    %51 = vector.extract_strided_slice %37 {offsets = [0, 48], sizes = [16, 8], strides = [1, 1]} : vector<16x96xf32> to vector<16x8xf32>
    %52 = vector.shape_cast %51 : vector<16x8xf32> to vector<2x8x8xf32>
    %53 = vector.extract_strided_slice %37 {offsets = [0, 56], sizes = [16, 8], strides = [1, 1]} : vector<16x96xf32> to vector<16x8xf32>
    %54 = vector.shape_cast %53 : vector<16x8xf32> to vector<2x8x8xf32>
    %55 = tpu.concatenate %48, %50, %52, %54 in 0 : vector<2x8x8xf32>, vector<2x8x8xf32>, vector<2x8x8xf32>, vector<2x8x8xf32> -> vector<8x8x8xf32>
    %56 = vector.extract_strided_slice %37 {offsets = [0, 64], sizes = [16, 8], strides = [1, 1]} : vector<16x96xf32> to vector<16x8xf32>
    %57 = vector.shape_cast %56 : vector<16x8xf32> to vector<2x8x8xf32>
    %58 = vector.extract_strided_slice %37 {offsets = [0, 72], sizes = [16, 8], strides = [1, 1]} : vector<16x96xf32> to vector<16x8xf32>
    %59 = vector.shape_cast %58 : vector<16x8xf32> to vector<2x8x8xf32>
    %60 = vector.extract_strided_slice %37 {offsets = [0, 80], sizes = [16, 8], strides = [1, 1]} : vector<16x96xf32> to vector<16x8xf32>
    %61 = vector.shape_cast %60 : vector<16x8xf32> to vector<2x8x8xf32>
    %62 = vector.extract_strided_slice %37 {offsets = [0, 88], sizes = [16, 8], strides = [1, 1]} : vector<16x96xf32> to vector<16x8xf32>
    %63 = vector.shape_cast %62 : vector<16x8xf32> to vector<2x8x8xf32>
    %64 = tpu.concatenate %57, %59, %61, %63 in 0 : vector<2x8x8xf32>, vector<2x8x8xf32>, vector<2x8x8xf32>, vector<2x8x8xf32> -> vector<8x8x8xf32>
    "tpu.trace_start"() <{level = 10 : i32, message = "bqd,bkd->bqk"}> : () -> ()
    %cst_14 = arith.constant dense<0.000000e+00> : vector<8x8x8xf32>
    %65 = tpu.matmul %46, %55, %cst_14 {dimension_numbers = #tpu.dot_dimension_numbers<[2], [2], [1], [1], [0, 0, 0, 1, 1, 1], [0], [0]>} : vector<8x8x8xf32>, vector<8x8x8xf32>, vector<8x8x8xf32> -> vector<8x8x8xf32>
    "tpu.trace_stop"() : () -> ()
    %66 = math.exp %65 : vector<8x8x8xf32>
    %cst_15 = arith.constant dense<0.000000e+00> : vector<8x8xf32>
    %67 = vector.multi_reduction <add>, %66, %cst_15 [2] : vector<8x8x8xf32> to vector<8x8xf32>
    %68 = vector.shape_cast %67 : vector<8x8xf32> to vector<8x8x1xf32>
    %69 = tpu.reciprocal %68 {approx = true} : vector<8x8x1xf32> -> vector<8x8x1xf32>
    %70 = vector.broadcast %69 : vector<8x8x1xf32> to vector<8x8x8xf32>
    %71 = arith.mulf %66, %70 : vector<8x8x8xf32>
    "tpu.trace_start"() <{level = 10 : i32, message = "bqk,bkd->bqd"}> : () -> ()
    %cst_16 = arith.constant dense<0.000000e+00> : vector<8x8x8xf32>
    %72 = tpu.matmul %71, %64, %cst_16 {dimension_numbers = #tpu.dot_dimension_numbers<[2], [1], [1], [2], [0, 0, 0, 1, 1, 2], [0], [0]>} : vector<8x8x8xf32>, vector<8x8x8xf32>, vector<8x8x8xf32> -> vector<8x8x8xf32>
    "tpu.trace_stop"() : () -> ()
    %73 = vector.extract_strided_slice %72 {offsets = [0, 0, 0], sizes = [2, 8, 8], strides = [1, 1, 1]} : vector<8x8x8xf32> to vector<2x8x8xf32>
    %74 = vector.extract_strided_slice %72 {offsets = [2, 0, 0], sizes = [2, 8, 8], strides = [1, 1, 1]} : vector<8x8x8xf32> to vector<2x8x8xf32>
    %75 = vector.extract_strided_slice %72 {offsets = [4, 0, 0], sizes = [2, 8, 8], strides = [1, 1, 1]} : vector<8x8x8xf32> to vector<2x8x8xf32>
    %76 = vector.extract_strided_slice %72 {offsets = [6, 0, 0], sizes = [2, 8, 8], strides = [1, 1, 1]} : vector<8x8x8xf32> to vector<2x8x8xf32>
    %77 = tpu.concatenate %73, %74, %75, %76 in 2 : vector<2x8x8xf32>, vector<2x8x8xf32>, vector<2x8x8xf32>, vector<2x8x8xf32> -> vector<2x8x32xf32>
    %78 = vector.shape_cast %77 : vector<2x8x32xf32> to vector<16x32xf32>
    %79 = vector.extract_strided_slice %7 {offsets = [0, 96], sizes = [32, 32], strides = [1, 1]} : vector<32x128xf32> to vector<32x32xf32>
    %cst_17 = arith.constant dense<0.000000e+00> : vector<16x32xf32>
    %80 = tpu.matmul %78, %79, %cst_17 {dimension_numbers = #tpu.dot_dimension_numbers<[1], [0], [0], [1], [0, 0, 1, 1], [], []>} : vector<16x32xf32>, vector<32x32xf32>, vector<16x32xf32> -> vector<16x32xf32>
    %81 = arith.addf %5, %80 : vector<16x32xf32>
    %82 = vector.extract_strided_slice %8 {offsets = [0, 96], sizes = [1, 32], strides = [1, 1]} : vector<1x128xf32> to vector<1x32xf32>
    %83 = vector.broadcast %82 : vector<1x32xf32> to vector<16x32xf32>
    %84 = arith.addf %81, %83 : vector<16x32xf32>
    %85 = vector.extract_strided_slice %9 {offsets = [0, 64], sizes = [1, 32], strides = [1, 1]} : vector<1x128xf32> to vector<1x32xf32>
    %86 = vector.extract_strided_slice %9 {offsets = [0, 96], sizes = [1, 32], strides = [1, 1]} : vector<1x128xf32> to vector<1x32xf32>
    %cst_18 = arith.constant dense<0.000000e+00> : vector<16xf32>
    %87 = vector.multi_reduction <add>, %84, %cst_18 [1] : vector<16x32xf32> to vector<16xf32>
    %88 = vector.shape_cast %87 : vector<16xf32> to vector<16x1xf32>
    %cst_19 = arith.constant 3.200000e+01 : f32
    %89 = vector.broadcast %cst_19 : f32 to vector<16x1xf32>
    %90 = arith.divf %88, %89 : vector<16x1xf32>
    %91 = vector.broadcast %90 : vector<16x1xf32> to vector<16x32xf32>
    %92 = arith.subf %84, %91 : vector<16x32xf32>
    %93 = arith.mulf %92, %92 : vector<16x32xf32>
    %cst_20 = arith.constant dense<0.000000e+00> : vector<16xf32>
    %94 = vector.multi_reduction <add>, %93, %cst_20 [1] : vector<16x32xf32> to vector<16xf32>
    %95 = vector.shape_cast %94 : vector<16xf32> to vector<16x1xf32>
    %cst_21 = arith.constant 0.0322580636 : f32
    %96 = vector.broadcast %cst_21 : f32 to vector<16x1xf32>
    %97 = arith.mulf %95, %96 : vector<16x1xf32>
    %98 = vector.broadcast %85 : vector<1x32xf32> to vector<16x32xf32>
    %99 = arith.mulf %98, %92 : vector<16x32xf32>
    %100 = math.sqrt %97 : vector<16x1xf32>
    %cst_22 = arith.constant 9.99999997E-7 : f32
    %101 = vector.broadcast %cst_22 : f32 to vector<16x1xf32>
    %102 = arith.addf %100, %101 : vector<16x1xf32>
    %103 = vector.broadcast %102 : vector<16x1xf32> to vector<16x32xf32>
    %104 = arith.divf %99, %103 : vector<16x32xf32>
    %105 = vector.broadcast %86 : vector<1x32xf32> to vector<16x32xf32>
    %106 = arith.addf %104, %105 : vector<16x32xf32>
    %c0_23 = arith.constant 0 : index
    %c0_24 = arith.constant 0 : index
    %c0_25 = arith.constant 0 : index
    %107 = vector.load %arg4[%c0_23, %c0_24, %c0_25] : memref<2x32x128xf32, #tpu.memory_space<vmem>>, vector<1x32x128xf32>
    %108 = vector.shape_cast %107 : vector<1x32x128xf32> to vector<32x128xf32>
    %109 = vector.extract_strided_slice %108 {offsets = [0, 0], sizes = [32, 64], strides = [1, 1]} : vector<32x128xf32> to vector<32x64xf32>
    %cst_26 = arith.constant dense<0.000000e+00> : vector<16x64xf32>
    %110 = tpu.matmul %106, %109, %cst_26 {dimension_numbers = #tpu.dot_dimension_numbers<[1], [0], [0], [1], [0, 0, 1, 1], [], []>} : vector<16x32xf32>, vector<32x64xf32>, vector<16x64xf32> -> vector<16x64xf32>
    %111 = vector.extract_strided_slice %10 {offsets = [0, 0], sizes = [1, 64], strides = [1, 1]} : vector<1x128xf32> to vector<1x64xf32>
    %112 = vector.broadcast %111 : vector<1x64xf32> to vector<16x64xf32>
    %113 = arith.addf %110, %112 : vector<16x64xf32>
    %cst_27 = arith.constant 0.000000e+00 : f32
    %114 = vector.broadcast %cst_27 : f32 to vector<16x64xf32>
    %115 = arith.maximumf %113, %114 : vector<16x64xf32>
    %116 = vector.extract_strided_slice %108 {offsets = [0, 64], sizes = [32, 64], strides = [1, 1]} : vector<32x128xf32> to vector<32x64xf32>
    %cst_28 = arith.constant dense<0.000000e+00> : vector<16x32xf32>
    %117 = tpu.matmul %115, %116, %cst_28 {dimension_numbers = #tpu.dot_dimension_numbers<[1], [1], [0], [0], [0, 0, 1, 0], [], []>} : vector<16x64xf32>, vector<32x64xf32>, vector<16x32xf32> -> vector<16x32xf32>
    %118 = vector.extract_strided_slice %10 {offsets = [0, 64], sizes = [1, 32], strides = [1, 1]} : vector<1x128xf32> to vector<1x32xf32>
    %119 = vector.broadcast %118 : vector<1x32xf32> to vector<16x32xf32>
    %120 = arith.addf %117, %119 : vector<16x32xf32>
    %121 = arith.addf %84, %120 : vector<16x32xf32>
    %122 = vector.shape_cast %121 : vector<16x32xf32> to vector<2x8x32xf32>
    %cst_29 = arith.constant dense<0.000000e+00> : vector<2x32xf32>
    %123 = vector.multi_reduction <add>, %122, %cst_29 [1] : vector<2x8x32xf32> to vector<2x32xf32>
    %124 = vector.shape_cast %123 : vector<2x32xf32> to vector<2x1x32xf32>
    %cst_30 = arith.constant 8.000000e+00 : f32
    %125 = vector.broadcast %cst_30 : f32 to vector<2x1x32xf32>
    %126 = arith.divf %124, %125 : vector<2x1x32xf32>
    %127 = vector.broadcast %126 : vector<2x1x32xf32> to vector<2x8x32xf32>
    %128 = arith.addf %122, %127 : vector<2x8x32xf32>
    %129 = vector.shape_cast %128 : vector<2x8x32xf32> to vector<16x32xf32>
    %c1 = arith.constant 1 : index
    %c0_31 = arith.constant 0 : index
    %c0_32 = arith.constant 0 : index
    %130 = vector.load %arg3[%c1, %c0_31, %c0_32] : memref<2x32x128xf32, #tpu.memory_space<vmem>>, vector<1x32x128xf32>
    %131 = vector.shape_cast %130 : vector<1x32x128xf32> to vector<32x128xf32>
    %132 = vector.extract_strided_slice %0 {offsets = [3, 0], sizes = [1, 128], strides = [1, 1]} : vector<8x128xf32> to vector<1x128xf32>
    %133 = vector.extract_strided_slice %0 {offsets = [4, 0], sizes = [1, 128], strides = [1, 1]} : vector<8x128xf32> to vector<1x128xf32>
    %134 = vector.extract_strided_slice %0 {offsets = [5, 0], sizes = [1, 128], strides = [1, 1]} : vector<8x128xf32> to vector<1x128xf32>
    %135 = vector.extract_strided_slice %133 {offsets = [0, 0], sizes = [1, 32], strides = [1, 1]} : vector<1x128xf32> to vector<1x32xf32>
    %136 = vector.extract_strided_slice %133 {offsets = [0, 32], sizes = [1, 32], strides = [1, 1]} : vector<1x128xf32> to vector<1x32xf32>
    %cst_33 = arith.constant dense<0.000000e+00> : vector<16xf32>
    %137 = vector.multi_reduction <add>, %129, %cst_33 [1] : vector<16x32xf32> to vector<16xf32>
    %138 = vector.shape_cast %137 : vector<16xf32> to vector<16x1xf32>
    %cst_34 = arith.constant 3.200000e+01 : f32
    %139 = vector.broadcast %cst_34 : f32 to vector<16x1xf32>
    %140 = arith.divf %138, %139 : vector<16x1xf32>
    %141 = vector.broadcast %140 : vector<16x1xf32> to vector<16x32xf32>
    %142 = arith.subf %129, %141 : vector<16x32xf32>
    %143 = arith.mulf %142, %142 : vector<16x32xf32>
    %cst_35 = arith.constant dense<0.000000e+00> : vector<16xf32>
    %144 = vector.multi_reduction <add>, %143, %cst_35 [1] : vector<16x32xf32> to vector<16xf32>
    %145 = vector.shape_cast %144 : vector<16xf32> to vector<16x1xf32>
    %cst_36 = arith.constant 0.0322580636 : f32
    %146 = vector.broadcast %cst_36 : f32 to vector<16x1xf32>
    %147 = arith.mulf %145, %146 : vector<16x1xf32>
    %148 = vector.broadcast %135 : vector<1x32xf32> to vector<16x32xf32>
    %149 = arith.mulf %148, %142 : vector<16x32xf32>
    %150 = math.sqrt %147 : vector<16x1xf32>
    %cst_37 = arith.constant 9.99999997E-7 : f32
    %151 = vector.broadcast %cst_37 : f32 to vector<16x1xf32>
    %152 = arith.addf %150, %151 : vector<16x1xf32>
    %153 = vector.broadcast %152 : vector<16x1xf32> to vector<16x32xf32>
    %154 = arith.divf %149, %153 : vector<16x32xf32>
    %155 = vector.broadcast %136 : vector<1x32xf32> to vector<16x32xf32>
    %156 = arith.addf %154, %155 : vector<16x32xf32>
    %157 = vector.extract_strided_slice %131 {offsets = [0, 0], sizes = [32, 96], strides = [1, 1]} : vector<32x128xf32> to vector<32x96xf32>
    %cst_38 = arith.constant dense<0.000000e+00> : vector<16x96xf32>
    %158 = tpu.matmul %156, %157, %cst_38 {dimension_numbers = #tpu.dot_dimension_numbers<[1], [0], [0], [1], [0, 0, 1, 1], [], []>} : vector<16x32xf32>, vector<32x96xf32>, vector<16x96xf32> -> vector<16x96xf32>
    %159 = vector.extract_strided_slice %132 {offsets = [0, 0], sizes = [1, 96], strides = [1, 1]} : vector<1x128xf32> to vector<1x96xf32>
    %160 = vector.broadcast %159 : vector<1x96xf32> to vector<16x96xf32>
    %161 = arith.addf %158, %160 : vector<16x96xf32>
    %162 = vector.extract_strided_slice %161 {offsets = [0, 0], sizes = [16, 8], strides = [1, 1]} : vector<16x96xf32> to vector<16x8xf32>
    %163 = vector.shape_cast %162 : vector<16x8xf32> to vector<2x8x8xf32>
    %164 = vector.extract_strided_slice %161 {offsets = [0, 8], sizes = [16, 8], strides = [1, 1]} : vector<16x96xf32> to vector<16x8xf32>
    %165 = vector.shape_cast %164 : vector<16x8xf32> to vector<2x8x8xf32>
    %166 = vector.extract_strided_slice %161 {offsets = [0, 16], sizes = [16, 8], strides = [1, 1]} : vector<16x96xf32> to vector<16x8xf32>
    %167 = vector.shape_cast %166 : vector<16x8xf32> to vector<2x8x8xf32>
    %168 = vector.extract_strided_slice %161 {offsets = [0, 24], sizes = [16, 8], strides = [1, 1]} : vector<16x96xf32> to vector<16x8xf32>
    %169 = vector.shape_cast %168 : vector<16x8xf32> to vector<2x8x8xf32>
    %170 = tpu.concatenate %163, %165, %167, %169 in 0 : vector<2x8x8xf32>, vector<2x8x8xf32>, vector<2x8x8xf32>, vector<2x8x8xf32> -> vector<8x8x8xf32>
    %171 = vector.extract_strided_slice %161 {offsets = [0, 32], sizes = [16, 8], strides = [1, 1]} : vector<16x96xf32> to vector<16x8xf32>
    %172 = vector.shape_cast %171 : vector<16x8xf32> to vector<2x8x8xf32>
    %173 = vector.extract_strided_slice %161 {offsets = [0, 40], sizes = [16, 8], strides = [1, 1]} : vector<16x96xf32> to vector<16x8xf32>
    %174 = vector.shape_cast %173 : vector<16x8xf32> to vector<2x8x8xf32>
    %175 = vector.extract_strided_slice %161 {offsets = [0, 48], sizes = [16, 8], strides = [1, 1]} : vector<16x96xf32> to vector<16x8xf32>
    %176 = vector.shape_cast %175 : vector<16x8xf32> to vector<2x8x8xf32>
    %177 = vector.extract_strided_slice %161 {offsets = [0, 56], sizes = [16, 8], strides = [1, 1]} : vector<16x96xf32> to vector<16x8xf32>
    %178 = vector.shape_cast %177 : vector<16x8xf32> to vector<2x8x8xf32>
    %179 = tpu.concatenate %172, %174, %176, %178 in 0 : vector<2x8x8xf32>, vector<2x8x8xf32>, vector<2x8x8xf32>, vector<2x8x8xf32> -> vector<8x8x8xf32>
    %180 = vector.extract_strided_slice %161 {offsets = [0, 64], sizes = [16, 8], strides = [1, 1]} : vector<16x96xf32> to vector<16x8xf32>
    %181 = vector.shape_cast %180 : vector<16x8xf32> to vector<2x8x8xf32>
    %182 = vector.extract_strided_slice %161 {offsets = [0, 72], sizes = [16, 8], strides = [1, 1]} : vector<16x96xf32> to vector<16x8xf32>
    %183 = vector.shape_cast %182 : vector<16x8xf32> to vector<2x8x8xf32>
    %184 = vector.extract_strided_slice %161 {offsets = [0, 80], sizes = [16, 8], strides = [1, 1]} : vector<16x96xf32> to vector<16x8xf32>
    %185 = vector.shape_cast %184 : vector<16x8xf32> to vector<2x8x8xf32>
    %186 = vector.extract_strided_slice %161 {offsets = [0, 88], sizes = [16, 8], strides = [1, 1]} : vector<16x96xf32> to vector<16x8xf32>
    %187 = vector.shape_cast %186 : vector<16x8xf32> to vector<2x8x8xf32>
    %188 = tpu.concatenate %181, %183, %185, %187 in 0 : vector<2x8x8xf32>, vector<2x8x8xf32>, vector<2x8x8xf32>, vector<2x8x8xf32> -> vector<8x8x8xf32>
    "tpu.trace_start"() <{level = 10 : i32, message = "bqd,bkd->bqk"}> : () -> ()
    %cst_39 = arith.constant dense<0.000000e+00> : vector<8x8x8xf32>
    %189 = tpu.matmul %170, %179, %cst_39 {dimension_numbers = #tpu.dot_dimension_numbers<[2], [2], [1], [1], [0, 0, 0, 1, 1, 1], [0], [0]>} : vector<8x8x8xf32>, vector<8x8x8xf32>, vector<8x8x8xf32> -> vector<8x8x8xf32>
    "tpu.trace_stop"() : () -> ()
    %190 = math.exp %189 : vector<8x8x8xf32>
    %cst_40 = arith.constant dense<0.000000e+00> : vector<8x8xf32>
    %191 = vector.multi_reduction <add>, %190, %cst_40 [2] : vector<8x8x8xf32> to vector<8x8xf32>
    %192 = vector.shape_cast %191 : vector<8x8xf32> to vector<8x8x1xf32>
    %193 = tpu.reciprocal %192 {approx = true} : vector<8x8x1xf32> -> vector<8x8x1xf32>
    %194 = vector.broadcast %193 : vector<8x8x1xf32> to vector<8x8x8xf32>
    %195 = arith.mulf %190, %194 : vector<8x8x8xf32>
    "tpu.trace_start"() <{level = 10 : i32, message = "bqk,bkd->bqd"}> : () -> ()
    %cst_41 = arith.constant dense<0.000000e+00> : vector<8x8x8xf32>
    %196 = tpu.matmul %195, %188, %cst_41 {dimension_numbers = #tpu.dot_dimension_numbers<[2], [1], [1], [2], [0, 0, 0, 1, 1, 2], [0], [0]>} : vector<8x8x8xf32>, vector<8x8x8xf32>, vector<8x8x8xf32> -> vector<8x8x8xf32>
    "tpu.trace_stop"() : () -> ()
    %197 = vector.extract_strided_slice %196 {offsets = [0, 0, 0], sizes = [2, 8, 8], strides = [1, 1, 1]} : vector<8x8x8xf32> to vector<2x8x8xf32>
    %198 = vector.extract_strided_slice %196 {offsets = [2, 0, 0], sizes = [2, 8, 8], strides = [1, 1, 1]} : vector<8x8x8xf32> to vector<2x8x8xf32>
    %199 = vector.extract_strided_slice %196 {offsets = [4, 0, 0], sizes = [2, 8, 8], strides = [1, 1, 1]} : vector<8x8x8xf32> to vector<2x8x8xf32>
    %200 = vector.extract_strided_slice %196 {offsets = [6, 0, 0], sizes = [2, 8, 8], strides = [1, 1, 1]} : vector<8x8x8xf32> to vector<2x8x8xf32>
    %201 = tpu.concatenate %197, %198, %199, %200 in 2 : vector<2x8x8xf32>, vector<2x8x8xf32>, vector<2x8x8xf32>, vector<2x8x8xf32> -> vector<2x8x32xf32>
    %202 = vector.shape_cast %201 : vector<2x8x32xf32> to vector<16x32xf32>
    %203 = vector.extract_strided_slice %131 {offsets = [0, 96], sizes = [32, 32], strides = [1, 1]} : vector<32x128xf32> to vector<32x32xf32>
    %cst_42 = arith.constant dense<0.000000e+00> : vector<16x32xf32>
    %204 = tpu.matmul %202, %203, %cst_42 {dimension_numbers = #tpu.dot_dimension_numbers<[1], [0], [0], [1], [0, 0, 1, 1], [], []>} : vector<16x32xf32>, vector<32x32xf32>, vector<16x32xf32> -> vector<16x32xf32>
    %205 = arith.addf %129, %204 : vector<16x32xf32>
    %206 = vector.extract_strided_slice %132 {offsets = [0, 96], sizes = [1, 32], strides = [1, 1]} : vector<1x128xf32> to vector<1x32xf32>
    %207 = vector.broadcast %206 : vector<1x32xf32> to vector<16x32xf32>
    %208 = arith.addf %205, %207 : vector<16x32xf32>
    %209 = vector.extract_strided_slice %133 {offsets = [0, 64], sizes = [1, 32], strides = [1, 1]} : vector<1x128xf32> to vector<1x32xf32>
    %210 = vector.extract_strided_slice %133 {offsets = [0, 96], sizes = [1, 32], strides = [1, 1]} : vector<1x128xf32> to vector<1x32xf32>
    %cst_43 = arith.constant dense<0.000000e+00> : vector<16xf32>
    %211 = vector.multi_reduction <add>, %208, %cst_43 [1] : vector<16x32xf32> to vector<16xf32>
    %212 = vector.shape_cast %211 : vector<16xf32> to vector<16x1xf32>
    %cst_44 = arith.constant 3.200000e+01 : f32
    %213 = vector.broadcast %cst_44 : f32 to vector<16x1xf32>
    %214 = arith.divf %212, %213 : vector<16x1xf32>
    %215 = vector.broadcast %214 : vector<16x1xf32> to vector<16x32xf32>
    %216 = arith.subf %208, %215 : vector<16x32xf32>
    %217 = arith.mulf %216, %216 : vector<16x32xf32>
    %cst_45 = arith.constant dense<0.000000e+00> : vector<16xf32>
    %218 = vector.multi_reduction <add>, %217, %cst_45 [1] : vector<16x32xf32> to vector<16xf32>
    %219 = vector.shape_cast %218 : vector<16xf32> to vector<16x1xf32>
    %cst_46 = arith.constant 0.0322580636 : f32
    %220 = vector.broadcast %cst_46 : f32 to vector<16x1xf32>
    %221 = arith.mulf %219, %220 : vector<16x1xf32>
    %222 = vector.broadcast %209 : vector<1x32xf32> to vector<16x32xf32>
    %223 = arith.mulf %222, %216 : vector<16x32xf32>
    %224 = math.sqrt %221 : vector<16x1xf32>
    %cst_47 = arith.constant 9.99999997E-7 : f32
    %225 = vector.broadcast %cst_47 : f32 to vector<16x1xf32>
    %226 = arith.addf %224, %225 : vector<16x1xf32>
    %227 = vector.broadcast %226 : vector<16x1xf32> to vector<16x32xf32>
    %228 = arith.divf %223, %227 : vector<16x32xf32>
    %229 = vector.broadcast %210 : vector<1x32xf32> to vector<16x32xf32>
    %230 = arith.addf %228, %229 : vector<16x32xf32>
    %c1_48 = arith.constant 1 : index
    %c0_49 = arith.constant 0 : index
    %c0_50 = arith.constant 0 : index
    %231 = vector.load %arg4[%c1_48, %c0_49, %c0_50] : memref<2x32x128xf32, #tpu.memory_space<vmem>>, vector<1x32x128xf32>
    %232 = vector.shape_cast %231 : vector<1x32x128xf32> to vector<32x128xf32>
    %233 = vector.extract_strided_slice %232 {offsets = [0, 0], sizes = [32, 64], strides = [1, 1]} : vector<32x128xf32> to vector<32x64xf32>
    %cst_51 = arith.constant dense<0.000000e+00> : vector<16x64xf32>
    %234 = tpu.matmul %230, %233, %cst_51 {dimension_numbers = #tpu.dot_dimension_numbers<[1], [0], [0], [1], [0, 0, 1, 1], [], []>} : vector<16x32xf32>, vector<32x64xf32>, vector<16x64xf32> -> vector<16x64xf32>
    %235 = vector.extract_strided_slice %134 {offsets = [0, 0], sizes = [1, 64], strides = [1, 1]} : vector<1x128xf32> to vector<1x64xf32>
    %236 = vector.broadcast %235 : vector<1x64xf32> to vector<16x64xf32>
    %237 = arith.addf %234, %236 : vector<16x64xf32>
    %cst_52 = arith.constant 0.000000e+00 : f32
    %238 = vector.broadcast %cst_52 : f32 to vector<16x64xf32>
    %239 = arith.maximumf %237, %238 : vector<16x64xf32>
    %240 = vector.extract_strided_slice %232 {offsets = [0, 64], sizes = [32, 64], strides = [1, 1]} : vector<32x128xf32> to vector<32x64xf32>
    %cst_53 = arith.constant dense<0.000000e+00> : vector<16x32xf32>
    %241 = tpu.matmul %239, %240, %cst_53 {dimension_numbers = #tpu.dot_dimension_numbers<[1], [1], [0], [0], [0, 0, 1, 0], [], []>} : vector<16x64xf32>, vector<32x64xf32>, vector<16x32xf32> -> vector<16x32xf32>
    %242 = vector.extract_strided_slice %134 {offsets = [0, 64], sizes = [1, 32], strides = [1, 1]} : vector<1x128xf32> to vector<1x32xf32>
    %243 = vector.broadcast %242 : vector<1x32xf32> to vector<16x32xf32>
    %244 = arith.addf %241, %243 : vector<16x32xf32>
    %245 = arith.addf %208, %244 : vector<16x32xf32>
    %246 = vector.shape_cast %245 : vector<16x32xf32> to vector<2x8x32xf32>
    %cst_54 = arith.constant dense<0.000000e+00> : vector<2x32xf32>
    %247 = vector.multi_reduction <add>, %246, %cst_54 [1] : vector<2x8x32xf32> to vector<2x32xf32>
    %248 = vector.shape_cast %247 : vector<2x32xf32> to vector<2x1x32xf32>
    %cst_55 = arith.constant 8.000000e+00 : f32
    %249 = vector.broadcast %cst_55 : f32 to vector<2x1x32xf32>
    %250 = arith.divf %248, %249 : vector<2x1x32xf32>
    %251 = vector.broadcast %250 : vector<2x1x32xf32> to vector<2x8x32xf32>
    %252 = arith.addf %246, %251 : vector<2x8x32xf32>
    %253 = vector.shape_cast %252 : vector<2x8x32xf32> to vector<16x32xf32>
    %254 = vector.extract_strided_slice %0 {offsets = [6, 0], sizes = [1, 128], strides = [1, 1]} : vector<8x128xf32> to vector<1x128xf32>
    %255 = vector.extract_strided_slice %254 {offsets = [0, 0], sizes = [1, 32], strides = [1, 1]} : vector<1x128xf32> to vector<1x32xf32>
    %256 = vector.extract_strided_slice %254 {offsets = [0, 32], sizes = [1, 32], strides = [1, 1]} : vector<1x128xf32> to vector<1x32xf32>
    %cst_56 = arith.constant dense<0.000000e+00> : vector<16xf32>
    %257 = vector.multi_reduction <add>, %253, %cst_56 [1] : vector<16x32xf32> to vector<16xf32>
    %258 = vector.shape_cast %257 : vector<16xf32> to vector<16x1xf32>
    %cst_57 = arith.constant 3.200000e+01 : f32
    %259 = vector.broadcast %cst_57 : f32 to vector<16x1xf32>
    %260 = arith.divf %258, %259 : vector<16x1xf32>
    %261 = vector.broadcast %260 : vector<16x1xf32> to vector<16x32xf32>
    %262 = arith.subf %253, %261 : vector<16x32xf32>
    %263 = arith.mulf %262, %262 : vector<16x32xf32>
    %cst_58 = arith.constant dense<0.000000e+00> : vector<16xf32>
    %264 = vector.multi_reduction <add>, %263, %cst_58 [1] : vector<16x32xf32> to vector<16xf32>
    %265 = vector.shape_cast %264 : vector<16xf32> to vector<16x1xf32>
    %cst_59 = arith.constant 0.0322580636 : f32
    %266 = vector.broadcast %cst_59 : f32 to vector<16x1xf32>
    %267 = arith.mulf %265, %266 : vector<16x1xf32>
    %268 = vector.broadcast %255 : vector<1x32xf32> to vector<16x32xf32>
    %269 = arith.mulf %268, %262 : vector<16x32xf32>
    %270 = math.sqrt %267 : vector<16x1xf32>
    %cst_60 = arith.constant 9.99999997E-7 : f32
    %271 = vector.broadcast %cst_60 : f32 to vector<16x1xf32>
    %272 = arith.addf %270, %271 : vector<16x1xf32>
    %273 = vector.broadcast %272 : vector<16x1xf32> to vector<16x32xf32>
    %274 = arith.divf %269, %273 : vector<16x32xf32>
    %275 = vector.broadcast %256 : vector<1x32xf32> to vector<16x32xf32>
    %276 = arith.addf %274, %275 : vector<16x32xf32>
    %c0_61 = arith.constant 0 : index
    %c0_62 = arith.constant 0 : index
    %277 = vector.load %arg6[%c0_61, %c0_62] : memref<16x32xf32, #tpu.memory_space<vmem>>, vector<16x32xf32>
    tpu.vector_store %arg6[%c0_61, %c0_62], %276 {strides = array<i32>} : memref<16x32xf32, #tpu.memory_space<vmem>>, vector<16x32xf32>,
    return
  }
  func.func @transform_0(%arg0: i32) -> (i32, i32) {
    %c0_i32 = arith.constant 0 : i32
    %c0_i32_0 = arith.constant 0 : i32
    %c0_i32_1 = arith.constant 0 : i32
    return %c0_i32, %c0_i32_0 : i32, i32
  }
  func.func @transform_1(%arg0: i32) -> (i32, i32) {
    %c0_i32 = arith.constant 0 : i32
    %c0_i32_0 = arith.constant 0 : i32
    %c0_i32_1 = arith.constant 0 : i32
    return %c0_i32, %c0_i32_0 : i32, i32
  }
  func.func @transform_2(%arg0: i32) -> (i32, i32, i32) {
    %c0_i32 = arith.constant 0 : i32
    %c0_i32_0 = arith.constant 0 : i32
    %c0_i32_1 = arith.constant 0 : i32
    %c0_i32_2 = arith.constant 0 : i32
    return %c0_i32, %c0_i32_0, %c0_i32_1 : i32, i32, i32
  }
  func.func @transform_3(%arg0: i32) -> (i32, i32, i32) {
    %c0_i32 = arith.constant 0 : i32
    %c0_i32_0 = arith.constant 0 : i32
    %c0_i32_1 = arith.constant 0 : i32
    %c0_i32_2 = arith.constant 0 : i32
    return %c0_i32, %c0_i32_0, %c0_i32_1 : i32, i32, i32
  }
  func.func @transform_4(%arg0: i32) -> (i32, i32) {
    %c0_i32 = arith.constant 0 : i32
    %c0_i32_0 = arith.constant 0 : i32
    %c0_i32_1 = arith.constant 0 : i32
    return %c0_i32, %c0_i32_0 : i32, i32
  }
  func.func @transform_5(%arg0: i32) -> (i32, i32) {
    %c0_i32 = arith.constant 0 : i32
    %c0_i32_0 = arith.constant 0 : i32
    %c0_i32_1 = arith.constant 0 : i32
    return %c0_i32, %c0_i32_0 : i32, i32
  }
}

</mosaic_0001>

<llo_original>
// kernel: tpu_custom_call.1
$region0: #{tpu_custom_call.1}
  #allocation0 [shape = 'u32[]', space=smem, size = 0x4, offset = 0x4, fixed_abs, tag = 'smem constant byte address 0x4 - core index']
  #allocation1 [shape = 'u32[144,128]{1,0:T(1,128)}', space=vmem, size = 0x12000, scoped, tag = 'internal scratch']
  %s0 = inlined_call_operand.hbm [shape: f32[16,32], index: 0, kind: input, shape index: {}]
  %s1 = inlined_call_operand.hbm [shape: f32[16,32], index: 1, kind: input, shape index: {}]
  %s2 = inlined_call_operand.hbm [shape: f32[2,32,128], index: 2, kind: input, shape index: {}]
  %s3 = inlined_call_operand.hbm [shape: f32[2,32,128], index: 3, kind: input, shape index: {}]
  %s4 = inlined_call_operand.vmem [shape: f32[8,128], index: 4, kind: input, shape index: {}]
  %s5 = inlined_call_operand.hbm [shape: f32[16,32], index: 5, kind: output, shape index: {}]
  %s6 = sld [smem:[#allocation0]]
  $region46: #{tpu_custom_call.1} parent=0
    _
  %s8 = ssub.s32 1, %s6
  %s9 = scalar_select 0, %s8, %s6
  $region1: #{tpu_custom_call.1} parent=0
    #allocation2 [shape = 'u8[8192]{0}', space=vmem, size = 0x2000, scoped, tag = 'input window, operand 0, single buffered']
    #allocation3 [shape = 's32[1]{0}', space=sflag, size = 0x4, scoped, tag = 'scoped memory for tpu_custom_call.1']
    #allocation4 [shape = 's32[1]{0}', space=sflag, size = 0x4, scoped, tag = 'scoped memory for tpu_custom_call.1']
    #allocation5 [shape = 'u8[8192]{0}', space=vmem, size = 0x2000, scoped, tag = 'input window, operand 1, single buffered']
    #allocation6 [shape = 's32[1]{0}', space=sflag, size = 0x4, scoped, tag = 'scoped memory for tpu_custom_call.1']
    #allocation7 [shape = 'u8[32768]{0}', space=vmem, size = 0x8000, scoped, tag = 'input window, operand 2, single buffered']
    #allocation8 [shape = 'u8[32768]{0}', space=vmem, size = 0x8000, scoped, tag = 'input window, operand 3, single buffered']
    #allocation9 [shape = 's32[1]{0}', space=sflag, size = 0x4, scoped, tag = 'scoped memory for tpu_custom_call.1']
    #allocation10 [shape = 'u8[8192]{0}', space=vmem, size = 0x2000, scoped, tag = 'output window, operand 0, single buffered']
    %10 = vsyncpa [#allocation3], 0
    %11 = vsyncpa [#allocation6], 0
    %12 = vsyncpa [#allocation9], 0
    %13 = vsyncpa [#allocation4], 0
    // Predicated region
    $region2: #{tpu_custom_call.1} parent=1 // pred_check
      _
    $region3: #{tpu_custom_call.1} parent=1 // pred_check_branch
      %15 = sbr.rel (0) target = $region5
    $region4: #{tpu_custom_call.1} parent=1 // pred_region
      %s17 = ssub.s32 256, 256
      %18 = vsyncadd [#allocation3], %s17
      %s19 = sshll.u32 [#allocation2], 4
      %s20 = int_to_ptr.vmem [resolvable:$true] %s19
      %25 = dma.hbm_to_vmem [thread:$0]  %s0, 256, %s20, [#allocation3], 128, 128, 8
    $region5: #{tpu_custom_call.1} parent=1 // pred_fallthru
      _
    // Predicated region
    $region6: #{tpu_custom_call.1} parent=1 // pred_check
      _
    $region7: #{tpu_custom_call.1} parent=1 // pred_check_branch
      %27 = sbr.rel (0) target = $region9
    $region8: #{tpu_custom_call.1} parent=1 // pred_region
      %s29 = ssub.s32 256, 256
      %30 = vsyncadd [#allocation6], %s29
      %s31 = sshll.u32 [#allocation5], 4
      %s32 = int_to_ptr.vmem [resolvable:$true] %s31
      %37 = dma.hbm_to_vmem [thread:$0]  %s1, 256, %s32, [#allocation6], 128, 128, 8
    $region9: #{tpu_custom_call.1} parent=1 // pred_fallthru
      _
    // Predicated region
    $region10: #{tpu_custom_call.1} parent=1 // pred_check
      _
    $region11: #{tpu_custom_call.1} parent=1 // pred_check_branch
      %39 = sbr.rel (0) target = $region13
    $region12: #{tpu_custom_call.1} parent=1 // pred_region
      %s41 = ssub.s32 1024, 1024
      %42 = vsyncadd [#allocation6], %s41
      %s43 = sshll.u32 [#allocation7], 4
      %s44 = int_to_ptr.vmem [resolvable:$true] %s43
      %49 = dma.hbm_to_vmem [thread:$0]  %s2, 1024, %s44, [#allocation6], 128, 128, 8
    $region13: #{tpu_custom_call.1} parent=1 // pred_fallthru
      _
    // Predicated region
    $region14: #{tpu_custom_call.1} parent=1 // pred_check
      _
    $region15: #{tpu_custom_call.1} parent=1 // pred_check_branch
      %51 = sbr.rel (0) target = $region17
    $region16: #{tpu_custom_call.1} parent=1 // pred_region
      %s53 = ssub.s32 1024, 1024
      %54 = vsyncadd [#allocation9], %s53
      %s55 = sshll.u32 [#allocation8], 4
      %s56 = int_to_ptr.vmem [resolvable:$true] %s55
      %61 = dma.hbm_to_vmem [thread:$0]  %s3, 1024, %s56, [#allocation9], 128, 128, 8
    $region17: #{tpu_custom_call.1} parent=1 // pred_fallthru
      _
    // Predicated region
    $region18: #{tpu_custom_call.1} parent=1 // pred_check
      _
    $region19: #{tpu_custom_call.1} parent=1 // pred_check_branch
      %63 = sbr.rel (0) target = $region21
    $region20: #{tpu_custom_call.1} parent=1 // pred_region
      _
    $region21: #{tpu_custom_call.1} parent=1 // pred_fallthru
      _
    // Predicated region
    $region22: #{tpu_custom_call.1} parent=1 // pred_check
      _
    $region23: #{tpu_custom_call.1} parent=1 // pred_check_branch
      %65 = sbr.rel (0) target = $region25
    $region24: #{tpu_custom_call.1} parent=1 // pred_region
      %66 = dma.done [#allocation3], 256
    $region25: #{tpu_custom_call.1} parent=1 // pred_fallthru
      _
    // Predicated region
    $region26: #{tpu_custom_call.1} parent=1 // pred_check
      _
    $region27: #{tpu_custom_call.1} parent=1 // pred_check_branch
      %68 = sbr.rel (0) target = $region29
    $region28: #{tpu_custom_call.1} parent=1 // pred_region
      %69 = dma.done [#allocation6], 256
    $region29: #{tpu_custom_call.1} parent=1 // pred_fallthru
      _
    // Predicated region
    $region30: #{tpu_custom_call.1} parent=1 // pred_check
      _
    $region31: #{tpu_custom_call.1} parent=1 // pred_check_branch
      %71 = sbr.rel (0) target = $region33
    $region32: #{tpu_custom_call.1} parent=1 // pred_region
      %72 = dma.done [#allocation6], 1024
    $region33: #{tpu_custom_call.1} parent=1 // pred_fallthru
      _
    // Predicated region
    $region34: #{tpu_custom_call.1} parent=1 // pred_check
      _
    $region35: #{tpu_custom_call.1} parent=1 // pred_check_branch
      %74 = sbr.rel (0) target = $region37
    $region36: #{tpu_custom_call.1} parent=1 // pred_region
      %75 = dma.done [#allocation9], 1024
    $region37: #{tpu_custom_call.1} parent=1 // pred_fallthru
      _
    %v76 = vld [vmem:[%s4] sm:$0xff]
    %v77 = vld [vmem:[#allocation2] sm:$0xff]
    %v78 = vld [vmem:[#allocation2 + $0x8] sm:$0xff]
    %v79 = vmul.f32 %v77, 5.656854
    %v80 = vmul.f32 %v78, 5.656854
    %v81 = vld [vmem:[#allocation5] sm:$0xff]
    %v82 = vld [vmem:[#allocation5 + $0x8] sm:$0xff]
    %v83 = vadd.f32 %v79, %v81
    %v84 = vadd.f32 %v80, %v82
    %v85 = vld [vmem:[#allocation7] sm:$0xff]
    %v86 = vld [vmem:[#allocation7 + $0x8] sm:$0xff]
    %v87 = vld [vmem:[#allocation7 + $0x10] sm:$0xff]
    %v88 = vld [vmem:[#allocation7 + $0x18] sm:$0xff]
    %vm89 = vcmask 261120
    %v90 = vsel %vm89, %v83, 0.0
    %91 = vadd.xlane.f32.xlu0 %v90
    %v92 = vpop.xlane.xlu0 %91
    %v93 = vsel %vm89, %v84, 0.0
    %94 = vadd.xlane.f32.xlu0 %v93
    %v95 = vpop.xlane.xlu0 %94
    %v96 = vrcp.pop 32.0
    %v97 = vmul.f32 %v92, %v96
    %v98 = vmul.f32 %v95, %v96
    %v99 = vsub.f32 %v83, %v97
    %v100 = vsub.f32 %v84, %v98
    %v101 = vmul.f32 %v99, %v99
    %v102 = vmul.f32 %v100, %v100
    %v103 = vsel %vm89, %v101, 0.0
    %104 = vadd.xlane.f32.xlu0 %v103
    %v105 = vpop.xlane.xlu0 %104
    %v106 = vsel %vm89, %v102, 0.0
    %107 = vadd.xlane.f32.xlu0 %v106
    %v108 = vpop.xlane.xlu0 %107
    %v109 = vmul.f32 %v105, 0.032258064
    %v110 = vmul.f32 %v108, 0.032258064
    %v111 = vlaneseq
    %v112 = vshrl.u32 %v111, 7
    %v113 = vsub.s32 1, %v112
    %v114 = vrot.slane %v76, %v113
    %v115 = vmul.f32 %v114, %v99
    %v116 = vmul.f32 %v114, %v100
    %v117 = vrsqrt.pop %v109
    %v118 = vmul.f32 %v109, %v117
    %vm119 = vcmp.eq.f32.partialorder %v109, inf
    %v120 = vsel %vm119, %v109, %v118
    %vm121 = vcmp.eq.f32.partialorder %v109, 0.0
    %v122 = vand.u32 %v109, 2147483648
    %v123 = vsel %vm121, %v122, %v120
    %v124 = vrsqrt.pop %v110
    %v125 = vmul.f32 %v110, %v124
    %vm126 = vcmp.eq.f32.partialorder %v110, inf
    %v127 = vsel %vm126, %v110, %v125
    %vm128 = vcmp.eq.f32.partialorder %v110, 0.0
    %v129 = vand.u32 %v110, 2147483648
    %v130 = vsel %vm128, %v129, %v127
    %v131 = vadd.f32 %v123, 1e-06
    %v132 = vadd.f32 %v130, 1e-06
    %v133 = vrcp.pop %v131
    %v134 = vmul.f32 %v115, %v133
    %v135 = vrcp.pop %v132
    %v136 = vmul.f32 %v116, %v135
    %138 = vrot.lane.b32.xlu0 %v114, 96
    %v139 = vpop.permute.xlu0 %138
    %v141 = vadd.f32 %v134, %v139
    %v142 = vadd.f32 %v136, %v139
    %v143 = vlaneseq
    %v144 = vshrl.u32 %v143, 7
    %v145 = vsub.s32 0, %v144
    %v146 = vrot.slane %v76, %v145
    %v148 = vsel %vm89, %v141, 0
    %v151 = vsel %vm89, %v142, 0
    %153 = vmatprep.subr.mxu0 0.0
    %154 = vmatpush1.msra.mxu0 %v85
    %155 = vmatprep.subr.mxu0 0.0
    %156 = vmatpush1.msra.mxu0 %v86
    %157 = vmatprep.subr.mxu0 0.0
    %158 = vmatpush1.msra.mxu0 %v87
    %159 = vmatprep.subr.mxu0 0.0
    %160 = vmatpush1.msra.mxu0 %v88
    %161 = vmatprep.subr.mxu0 0.0
    %162 = vmatpush1.msra.mxu0 0.0
    %163 = vmatprep.subr.mxu0 0.0
    %164 = vmatpush1.msra.mxu0 0.0
    %165 = vmatprep.subr.mxu0 0.0
    %166 = vmatpush1.msra.mxu0 0.0
    %167 = vmatprep.subr.mxu0 0.0
    %168 = vmatpush1.msra.mxu0 0.0
    %169 = vmatprep.subr.mxu0 0.0
    %170 = vmatpush1.msra.mxu0 0.0
    %171 = vmatprep.subr.mxu0 0.0
    %172 = vmatpush1.msra.mxu0 0.0
    %173 = vmatprep.subr.mxu0 0.0
    %174 = vmatpush1.msra.mxu0 0.0
    %175 = vmatprep.subr.mxu0 0.0
    %176 = vmatpush1.msra.mxu0 0.0
    %177 = vmatprep.subr.mxu0 0.0
    %178 = vmatpush1.msra.mxu0 0.0
    %179 = vmatprep.subr.mxu0 0.0
    %180 = vmatpush1.msra.mxu0 0.0
    %181 = vmatprep.subr.mxu0 0.0
    %182 = vmatpush1.msra.mxu0 0.0
    %183 = vmatprep.subr.mxu0 0.0
    %184 = vmatpush1.msra.mxu0 0.0
    %185 = vmatprep.subr.mxu0 0.0
    %186 = vmatpush1.msra.mxu0 0.0
    %187 = vmatprep.subr.mxu0 0.0
    %188 = vmatpush1.msra.mxu0 0.0
    %189 = vmatprep.subr.mxu0 0.0
    %190 = vmatpush1.msra.mxu0 0.0
    %191 = vmatprep.subr.mxu0 0.0
    %192 = vmatpush1.msra.mxu0 0.0
    %193 = vmatprep.subr.mxu0 0.0
    %194 = vmatpush1.msra.mxu0 0.0
    %195 = vmatprep.subr.mxu0 0.0
    %196 = vmatpush1.msra.mxu0 0.0
    %197 = vmatprep.subr.mxu0 0.0
    %198 = vmatpush1.msra.mxu0 0.0
    %199 = vmatprep.subr.mxu0 0.0
    %200 = vmatpush1.msra.mxu0 0.0
    %201 = vmatprep.subr.mxu0 0.0
    %202 = vmatpush1.msra.mxu0 0.0
    %203 = vmatprep.subr.mxu0 0.0
    %204 = vmatpush1.msra.mxu0 0.0
    %205 = vmatprep.subr.mxu0 0.0
    %206 = vmatpush1.msra.mxu0 0.0
    %207 = vmatprep.subr.mxu0 0.0
    %208 = vmatpush1.msra.mxu0 0.0
    %209 = vmatprep.subr.mxu0 0.0
    %210 = vmatpush1.msra.mxu0 0.0
    %211 = vmatprep.subr.mxu0 0.0
    %212 = vmatpush1.msra.mxu0 0.0
    %213 = vmatprep.subr.mxu0 0.0
    %214 = vmatpush1.msra.mxu0 0.0
    %215 = vmatprep.subr.mxu0 0.0
    %216 = vmatpush1.msra.mxu0 0.0
    %217 = vmatprep.mubr.f32.mxu0 0.0
    %218 = vmatmul.mubr.f32.gmra.mrb[0].mxu0 %v148
    %v219 = vpop.f32.mrb[0].mxu0
    %v220 = vadd.f32 %v146, %v219
    %v221 = vpop.f32.mrb[0].mxu0
    %222 = vmatprep.mubr.f32.mxu0 0.0
    %223 = vmatmul.mubr.f32.gmra.mrb[0].mxu0 %v151
    %v224 = vpop.f32.mrb[0].mxu0
    %v225 = vadd.f32 %v146, %v224
    %v226 = vpop.f32.mrb[0].mxu0
    %227 = vdwg.mxu0
    %230 = vrot.lane.b32.xlu0 %v220, 120
    %v231 = vpop.permute.xlu0 %230
    %232 = vrot.lane.b32.xlu0 %v225, 120
    %v233 = vpop.permute.xlu0 %232
    %234 = vrot.lane.b32.xlu0 %v220, 112
    %v235 = vpop.permute.xlu0 %234
    %236 = vrot.lane.b32.xlu0 %v225, 112
    %v237 = vpop.permute.xlu0 %236
    %238 = vrot.lane.b32.xlu0 %v220, 104
    %v239 = vpop.permute.xlu0 %238
    %240 = vrot.lane.b32.xlu0 %v225, 104
    %v241 = vpop.permute.xlu0 %240
    %242 = vrot.lane.b32.xlu0 %v220, 96
    %v243 = vpop.permute.xlu0 %242
    %vm244 = vcmask 64512
    %v245 = vsel %vm244, %v220, 0
    %v247 = vsel %vm244, %v243, 0
    %249 = vmatprep.subr.mxu0 0.0
    %250 = vmatpush1.xpose.msra.mxu0 %v247
    %251 = vmatprep.subr.mxu0 0.0
    %252 = vmatpush1.xpose.msra.mxu0 0.0
    %253 = vmatprep.subr.mxu0 0.0
    %254 = vmatpush1.xpose.msra.mxu0 0.0
    %255 = vmatprep.subr.mxu0 0.0
    %256 = vmatpush1.xpose.msra.mxu0 0.0
    %257 = vmatprep.subr.mxu0 0.0
    %258 = vmatpush1.xpose.msra.mxu0 0.0
    %259 = vmatprep.subr.mxu0 0.0
    %260 = vmatpush1.xpose.msra.mxu0 0.0
    %261 = vmatprep.subr.mxu0 0.0
    %262 = vmatpush1.xpose.msra.mxu0 0.0
    %263 = vmatprep.subr.mxu0 0.0
    %264 = vmatpush1.xpose.msra.mxu0 0.0
    %265 = vmatprep.subr.mxu0 0.0
    %266 = vmatpush1.xpose.msra.mxu0 0.0
    %267 = vmatprep.subr.mxu0 0.0
    %268 = vmatpush1.xpose.msra.mxu0 0.0
    %269 = vmatprep.subr.mxu0 0.0
    %270 = vmatpush1.xpose.msra.mxu0 0.0
    %271 = vmatprep.subr.mxu0 0.0
    %272 = vmatpush1.xpose.msra.mxu0 0.0
    %273 = vmatprep.subr.mxu0 0.0
    %274 = vmatpush1.xpose.msra.mxu0 0.0
    %275 = vmatprep.subr.mxu0 0.0
    %276 = vmatpush1.xpose.msra.mxu0 0.0
    %277 = vmatprep.subr.mxu0 0.0
    %278 = vmatpush1.xpose.msra.mxu0 0.0
    %279 = vmatprep.subr.mxu0 0.0
    %280 = vmatpush1.xpose.msra.mxu0 0.0
    %281 = vmatprep.subr.mxu0 0.0
    %282 = vmatpush1.xpose.msra.mxu0 0.0
    %283 = vmatprep.subr.mxu0 0.0
    %284 = vmatpush1.xpose.msra.mxu0 0.0
    %285 = vmatprep.subr.mxu0 0.0
    %286 = vmatpush1.xpose.msra.mxu0 0.0
    %287 = vmatprep.subr.mxu0 0.0
    %288 = vmatpush1.xpose.msra.mxu0 0.0
    %289 = vmatprep.subr.mxu0 0.0
    %290 = vmatpush1.xpose.msra.mxu0 0.0
    %291 = vmatprep.subr.mxu0 0.0
    %292 = vmatpush1.xpose.msra.mxu0 0.0
    %293 = vmatprep.subr.mxu0 0.0
    %294 = vmatpush1.xpose.msra.mxu0 0.0
    %295 = vmatprep.subr.mxu0 0.0
    %296 = vmatpush1.xpose.msra.mxu0 0.0
    %297 = vmatprep.subr.mxu0 0.0
    %298 = vmatpush1.xpose.msra.mxu0 0.0
    %299 = vmatprep.subr.mxu0 0.0
    %300 = vmatpush1.xpose.msra.mxu0 0.0
    %301 = vmatprep.subr.mxu0 0.0
    %302 = vmatpush1.xpose.msra.mxu0 0.0
    %303 = vmatprep.subr.mxu0 0.0
    %304 = vmatpush1.xpose.msra.mxu0 0.0
    %305 = vmatprep.subr.mxu0 0.0
    %306 = vmatpush1.xpose.msra.mxu0 0.0
    %307 = vmatprep.subr.mxu0 0.0
    %308 = vmatpush1.xpose.msra.mxu0 0.0
    %309 = vmatprep.subr.mxu0 0.0
    %310 = vmatpush1.xpose.msra.mxu0 0.0
    %311 = vmatprep.subr.mxu0 0.0
    %312 = vmatpush1.xpose.msra.mxu0 0.0
    %313 = vmatprep.mubr.f32.mxu0 0.0
    %314 = vmatmul.mubr.f32.gmra.mrb[0].mxu0 %v245
    %v315 = vpop.f32.mrb[0].mxu0
    %v316 = vadd.f32 0.0, %v315
    %v317 = vpop.f32.mrb[0].mxu0
    %318 = vdwg.mxu0
    %319 = vrot.lane.b32.xlu0 %v225, 96
    %v320 = vpop.permute.xlu0 %319
    %v321 = vsel %vm244, %v225, 0
    %v323 = vsel %vm244, %v320, 0
    %325 = vmatprep.subr.mxu0 0.0
    %326 = vmatpush1.xpose.msra.mxu0 %v323
    %327 = vmatprep.subr.mxu0 0.0
    %328 = vmatpush1.xpose.msra.mxu0 0.0
    %329 = vmatprep.subr.mxu0 0.0
    %330 = vmatpush1.xpose.msra.mxu0 0.0
    %331 = vmatprep.subr.mxu0 0.0
    %332 = vmatpush1.xpose.msra.mxu0 0.0
    %333 = vmatprep.subr.mxu0 0.0
    %334 = vmatpush1.xpose.msra.mxu0 0.0
    %335 = vmatprep.subr.mxu0 0.0
    %336 = vmatpush1.xpose.msra.mxu0 0.0
    %337 = vmatprep.subr.mxu0 0.0
    %338 = vmatpush1.xpose.msra.mxu0 0.0
    %339 = vmatprep.subr.mxu0 0.0
    %340 = vmatpush1.xpose.msra.mxu0 0.0
    %341 = vmatprep.subr.mxu0 0.0
    %342 = vmatpush1.xpose.msra.mxu0 0.0
    %343 = vmatprep.subr.mxu0 0.0
    %344 = vmatpush1.xpose.msra.mxu0 0.0
    %345 = vmatprep.subr.mxu0 0.0
    %346 = vmatpush1.xpose.msra.mxu0 0.0
    %347 = vmatprep.subr.mxu0 0.0
    %348 = vmatpush1.xpose.msra.mxu0 0.0
    %349 = vmatprep.subr.mxu0 0.0
    %350 = vmatpush1.xpose.msra.mxu0 0.0
    %351 = vmatprep.subr.mxu0 0.0
    %352 = vmatpush1.xpose.msra.mxu0 0.0
    %353 = vmatprep.subr.mxu0 0.0
    %354 = vmatpush1.xpose.msra.mxu0 0.0
    %355 = vmatprep.subr.mxu0 0.0
    %356 = vmatpush1.xpose.msra.mxu0 0.0
    %357 = vmatprep.subr.mxu0 0.0
    %358 = vmatpush1.xpose.msra.mxu0 0.0
    %359 = vmatprep.subr.mxu0 0.0
    %360 = vmatpush1.xpose.msra.mxu0 0.0
    %361 = vmatprep.subr.mxu0 0.0
    %362 = vmatpush1.xpose.msra.mxu0 0.0
    %363 = vmatprep.subr.mxu0 0.0
    %364 = vmatpush1.xpose.msra.mxu0 0.0
    %365 = vmatprep.subr.mxu0 0.0
    %366 = vmatpush1.xpose.msra.mxu0 0.0
    %367 = vmatprep.subr.mxu0 0.0
    %368 = vmatpush1.xpose.msra.mxu0 0.0
    %369 = vmatprep.subr.mxu0 0.0
    %370 = vmatpush1.xpose.msra.mxu0 0.0
    %371 = vmatprep.subr.mxu0 0.0
    %372 = vmatpush1.xpose.msra.mxu0 0.0
    %373 = vmatprep.subr.mxu0 0.0
    %374 = vmatpush1.xpose.msra.mxu0 0.0
    %375 = vmatprep.subr.mxu0 0.0
    %376 = vmatpush1.xpose.msra.mxu0 0.0
    %377 = vmatprep.subr.mxu0 0.0
    %378 = vmatpush1.xpose.msra.mxu0 0.0
    %379 = vmatprep.subr.mxu0 0.0
    %380 = vmatpush1.xpose.msra.mxu0 0.0
    %381 = vmatprep.subr.mxu0 0.0
    %382 = vmatpush1.xpose.msra.mxu0 0.0
    %383 = vmatprep.subr.mxu0 0.0
    %384 = vmatpush1.xpose.msra.mxu0 0.0
    %385 = vmatprep.subr.mxu0 0.0
    %386 = vmatpush1.xpose.msra.mxu0 0.0
    %387 = vmatprep.subr.mxu0 0.0
    %388 = vmatpush1.xpose.msra.mxu0 0.0
    %389 = vmatprep.mubr.f32.mxu0 0.0
    %390 = vmatmul.mubr.f32.gmra.mrb[0].mxu0 %v321
    %v391 = vpop.f32.mrb[0].mxu0
    %v392 = vadd.f32 0.0, %v391
    %v393 = vpop.f32.mrb[0].mxu0
    %394 = vdwg.mxu0
    %395 = vrot.lane.b32.xlu0 %v231, 96
    %v396 = vpop.permute.xlu0 %395
    %v397 = vsel %vm244, %v231, 0
    %v399 = vsel %vm244, %v396, 0
    %401 = vmatprep.subr.mxu0 0.0
    %402 = vmatpush1.xpose.msra.mxu0 %v399
    %403 = vmatprep.subr.mxu0 0.0
    %404 = vmatpush1.xpose.msra.mxu0 0.0
    %405 = vmatprep.subr.mxu0 0.0
    %406 = vmatpush1.xpose.msra.mxu0 0.0
    %407 = vmatprep.subr.mxu0 0.0
    %408 = vmatpush1.xpose.msra.mxu0 0.0
    %409 = vmatprep.subr.mxu0 0.0
    %410 = vmatpush1.xpose.msra.mxu0 0.0
    %411 = vmatprep.subr.mxu0 0.0
    %412 = vmatpush1.xpose.msra.mxu0 0.0
    %413 = vmatprep.subr.mxu0 0.0
    %414 = vmatpush1.xpose.msra.mxu0 0.0
    %415 = vmatprep.subr.mxu0 0.0
    %416 = vmatpush1.xpose.msra.mxu0 0.0
    %417 = vmatprep.subr.mxu0 0.0
    %418 = vmatpush1.xpose.msra.mxu0 0.0
    %419 = vmatprep.subr.mxu0 0.0
    %420 = vmatpush1.xpose.msra.mxu0 0.0
    %421 = vmatprep.subr.mxu0 0.0
    %422 = vmatpush1.xpose.msra.mxu0 0.0
    %423 = vmatprep.subr.mxu0 0.0
    %424 = vmatpush1.xpose.msra.mxu0 0.0
    %425 = vmatprep.subr.mxu0 0.0
    %426 = vmatpush1.xpose.msra.mxu0 0.0
    %427 = vmatprep.subr.mxu0 0.0
    %428 = vmatpush1.xpose.msra.mxu0 0.0
    %429 = vmatprep.subr.mxu0 0.0
    %430 = vmatpush1.xpose.msra.mxu0 0.0
    %431 = vmatprep.subr.mxu0 0.0
    %432 = vmatpush1.xpose.msra.mxu0 0.0
    %433 = vmatprep.subr.mxu0 0.0
    %434 = vmatpush1.xpose.msra.mxu0 0.0
    %435 = vmatprep.subr.mxu0 0.0
    %436 = vmatpush1.xpose.msra.mxu0 0.0
    %437 = vmatprep.subr.mxu0 0.0
    %438 = vmatpush1.xpose.msra.mxu0 0.0
    %439 = vmatprep.subr.mxu0 0.0
    %440 = vmatpush1.xpose.msra.mxu0 0.0
    %441 = vmatprep.subr.mxu0 0.0
    %442 = vmatpush1.xpose.msra.mxu0 0.0
    %443 = vmatprep.subr.mxu0 0.0
    %444 = vmatpush1.xpose.msra.mxu0 0.0
    %445 = vmatprep.subr.mxu0 0.0
    %446 = vmatpush1.xpose.msra.mxu0 0.0
    %447 = vmatprep.subr.mxu0 0.0
    %448 = vmatpush1.xpose.msra.mxu0 0.0
    %449 = vmatprep.subr.mxu0 0.0
    %450 = vmatpush1.xpose.msra.mxu0 0.0
    %451 = vmatprep.subr.mxu0 0.0
    %452 = vmatpush1.xpose.msra.mxu0 0.0
    %453 = vmatprep.subr.mxu0 0.0
    %454 = vmatpush1.xpose.msra.mxu0 0.0
    %455 = vmatprep.subr.mxu0 0.0
    %456 = vmatpush1.xpose.msra.mxu0 0.0
    %457 = vmatprep.subr.mxu0 0.0
    %458 = vmatpush1.xpose.msra.mxu0 0.0
    %459 = vmatprep.subr.mxu0 0.0
    %460 = vmatpush1.xpose.msra.mxu0 0.0
    %461 = vmatprep.subr.mxu0 0.0
    %462 = vmatpush1.xpose.msra.mxu0 0.0
    %463 = vmatprep.subr.mxu0 0.0
    %464 = vmatpush1.xpose.msra.mxu0 0.0
    %465 = vmatprep.mubr.f32.mxu0 0.0
    %466 = vmatmul.mubr.f32.gmra.mrb[0].mxu0 %v397
    %v467 = vpop.f32.mrb[0].mxu0
    %v468 = vadd.f32 0.0, %v467
    %v469 = vpop.f32.mrb[0].mxu0
    %470 = vdwg.mxu0
    %471 = vrot.lane.b32.xlu0 %v233, 96
    %v472 = vpop.permute.xlu0 %471
    %v473 = vsel %vm244, %v233, 0
    %v475 = vsel %vm244, %v472, 0
    %477 = vmatprep.subr.mxu0 0.0
    %478 = vmatpush1.xpose.msra.mxu0 %v475
    %479 = vmatprep.subr.mxu0 0.0
    %480 = vmatpush1.xpose.msra.mxu0 0.0
    %481 = vmatprep.subr.mxu0 0.0
    %482 = vmatpush1.xpose.msra.mxu0 0.0
    %483 = vmatprep.subr.mxu0 0.0
    %484 = vmatpush1.xpose.msra.mxu0 0.0
    %485 = vmatprep.subr.mxu0 0.0
    %486 = vmatpush1.xpose.msra.mxu0 0.0
    %487 = vmatprep.subr.mxu0 0.0
    %488 = vmatpush1.xpose.msra.mxu0 0.0
    %489 = vmatprep.subr.mxu0 0.0
    %490 = vmatpush1.xpose.msra.mxu0 0.0
    %491 = vmatprep.subr.mxu0 0.0
    %492 = vmatpush1.xpose.msra.mxu0 0.0
    %493 = vmatprep.subr.mxu0 0.0
    %494 = vmatpush1.xpose.msra.mxu0 0.0
    %495 = vmatprep.subr.mxu0 0.0
    %496 = vmatpush1.xpose.msra.mxu0 0.0
    %497 = vmatprep.subr.mxu0 0.0
    %498 = vmatpush1.xpose.msra.mxu0 0.0
    %499 = vmatprep.subr.mxu0 0.0
    %500 = vmatpush1.xpose.msra.mxu0 0.0
    %501 = vmatprep.subr.mxu0 0.0
    %502 = vmatpush1.xpose.msra.mxu0 0.0
    %503 = vmatprep.subr.mxu0 0.0
    %504 = vmatpush1.xpose.msra.mxu0 0.0
    %505 = vmatprep.subr.mxu0 0.0
    %506 = vmatpush1.xpose.msra.mxu0 0.0
    %507 = vmatprep.subr.mxu0 0.0
    %508 = vmatpush1.xpose.msra.mxu0 0.0
    %509 = vmatprep.subr.mxu0 0.0
    %510 = vmatpush1.xpose.msra.mxu0 0.0
    %511 = vmatprep.subr.mxu0 0.0
    %512 = vmatpush1.xpose.msra.mxu0 0.0
    %513 = vmatprep.subr.mxu0 0.0
    %514 = vmatpush1.xpose.msra.mxu0 0.0
    %515 = vmatprep.subr.mxu0 0.0
    %516 = vmatpush1.xpose.msra.mxu0 0.0
    %517 = vmatprep.subr.mxu0 0.0
    %518 = vmatpush1.xpose.msra.mxu0 0.0
    %519 = vmatprep.subr.mxu0 0.0
    %520 = vmatpush1.xpose.msra.mxu0 0.0
    %521 = vmatprep.subr.mxu0 0.0
    %522 = vmatpush1.xpose.msra.mxu0 0.0
    %523 = vmatprep.subr.mxu0 0.0
    %524 = vmatpush1.xpose.msra.mxu0 0.0
    %525 = vmatprep.subr.mxu0 0.0
    %526 = vmatpush1.xpose.msra.mxu0 0.0
    %527 = vmatprep.subr.mxu0 0.0
    %528 = vmatpush1.xpose.msra.mxu0 0.0
    %529 = vmatprep.subr.mxu0 0.0
    %530 = vmatpush1.xpose.msra.mxu0 0.0
    %531 = vmatprep.subr.mxu0 0.0
    %532 = vmatpush1.xpose.msra.mxu0 0.0
    %533 = vmatprep.subr.mxu0 0.0
    %534 = vmatpush1.xpose.msra.mxu0 0.0
    %535 = vmatprep.subr.mxu0 0.0
    %536 = vmatpush1.xpose.msra.mxu0 0.0
    %537 = vmatprep.subr.mxu0 0.0
    %538 = vmatpush1.xpose.msra.mxu0 0.0
    %539 = vmatprep.subr.mxu0 0.0
    %540 = vmatpush1.xpose.msra.mxu0 0.0
    %541 = vmatprep.mubr.f32.mxu0 0.0
    %542 = vmatmul.mubr.f32.gmra.mrb[0].mxu0 %v473
    %v543 = vpop.f32.mrb[0].mxu0
    %v544 = vadd.f32 0.0, %v543
    %v545 = vpop.f32.mrb[0].mxu0
    %546 = vdwg.mxu0
    %547 = vrot.lane.b32.xlu0 %v235, 96
    %v548 = vpop.permute.xlu0 %547
    %v549 = vsel %vm244, %v235, 0
    %v551 = vsel %vm244, %v548, 0
    %553 = vmatprep.subr.mxu0 0.0
    %554 = vmatpush1.xpose.msra.mxu0 %v551
    %555 = vmatprep.subr.mxu0 0.0
    %556 = vmatpush1.xpose.msra.mxu0 0.0
    %557 = vmatprep.subr.mxu0 0.0
    %558 = vmatpush1.xpose.msra.mxu0 0.0
    %559 = vmatprep.subr.mxu0 0.0
    %560 = vmatpush1.xpose.msra.mxu0 0.0
    %561 = vmatprep.subr.mxu0 0.0
    %562 = vmatpush1.xpose.msra.mxu0 0.0
    %563 = vmatprep.subr.mxu0 0.0
    %564 = vmatpush1.xpose.msra.mxu0 0.0
    %565 = vmatprep.subr.mxu0 0.0
    %566 = vmatpush1.xpose.msra.mxu0 0.0
    %567 = vmatprep.subr.mxu0 0.0
    %568 = vmatpush1.xpose.msra.mxu0 0.0
    %569 = vmatprep.subr.mxu0 0.0
    %570 = vmatpush1.xpose.msra.mxu0 0.0
    %571 = vmatprep.subr.mxu0 0.0
    %572 = vmatpush1.xpose.msra.mxu0 0.0
    %573 = vmatprep.subr.mxu0 0.0
    %574 = vmatpush1.xpose.msra.mxu0 0.0
    %575 = vmatprep.subr.mxu0 0.0
    %576 = vmatpush1.xpose.msra.mxu0 0.0
    %577 = vmatprep.subr.mxu0 0.0
    %578 = vmatpush1.xpose.msra.mxu0 0.0
    %579 = vmatprep.subr.mxu0 0.0
    %580 = vmatpush1.xpose.msra.mxu0 0.0
    %581 = vmatprep.subr.mxu0 0.0
    %582 = vmatpush1.xpose.msra.mxu0 0.0
    %583 = vmatprep.subr.mxu0 0.0
    %584 = vmatpush1.xpose.msra.mxu0 0.0
    %585 = vmatprep.subr.mxu0 0.0
    %586 = vmatpush1.xpose.msra.mxu0 0.0
    %587 = vmatprep.subr.mxu0 0.0
    %588 = vmatpush1.xpose.msra.mxu0 0.0
    %589 = vmatprep.subr.mxu0 0.0
    %590 = vmatpush1.xpose.msra.mxu0 0.0
    %591 = vmatprep.subr.mxu0 0.0
    %592 = vmatpush1.xpose.msra.mxu0 0.0
    %593 = vmatprep.subr.mxu0 0.0
    %594 = vmatpush1.xpose.msra.mxu0 0.0
    %595 = vmatprep.subr.mxu0 0.0
    %596 = vmatpush1.xpose.msra.mxu0 0.0
    %597 = vmatprep.subr.mxu0 0.0
    %598 = vmatpush1.xpose.msra.mxu0 0.0
    %599 = vmatprep.subr.mxu0 0.0
    %600 = vmatpush1.xpose.msra.mxu0 0.0
    %601 = vmatprep.subr.mxu0 0.0
    %602 = vmatpush1.xpose.msra.mxu0 0.0
    %603 = vmatprep.subr.mxu0 0.0
    %604 = vmatpush1.xpose.msra.mxu0 0.0
    %605 = vmatprep.subr.mxu0 0.0
    %606 = vmatpush1.xpose.msra.mxu0 0.0
    %607 = vmatprep.subr.mxu0 0.0
    %608 = vmatpush1.xpose.msra.mxu0 0.0
    %609 = vmatprep.subr.mxu0 0.0
    %610 = vmatpush1.xpose.msra.mxu0 0.0
    %611 = vmatprep.subr.mxu0 0.0
    %612 = vmatpush1.xpose.msra.mxu0 0.0
    %613 = vmatprep.subr.mxu0 0.0
    %614 = vmatpush1.xpose.msra.mxu0 0.0
    %615 = vmatprep.subr.mxu0 0.0
    %616 = vmatpush1.xpose.msra.mxu0 0.0
    %617 = vmatprep.mubr.f32.mxu0 0.0
    %618 = vmatmul.mubr.f32.gmra.mrb[0].mxu0 %v549
    %v619 = vpop.f32.mrb[0].mxu0
    %v620 = vadd.f32 0.0, %v619
    %v621 = vpop.f32.mrb[0].mxu0
    %622 = vdwg.mxu0
    %623 = vrot.lane.b32.xlu0 %v237, 96
    %v624 = vpop.permute.xlu0 %623
    %v625 = vsel %vm244, %v237, 0
    %v627 = vsel %vm244, %v624, 0
    %629 = vmatprep.subr.mxu0 0.0
    %630 = vmatpush1.xpose.msra.mxu0 %v627
    %631 = vmatprep.subr.mxu0 0.0
    %632 = vmatpush1.xpose.msra.mxu0 0.0
    %633 = vmatprep.subr.mxu0 0.0
    %634 = vmatpush1.xpose.msra.mxu0 0.0
    %635 = vmatprep.subr.mxu0 0.0
    %636 = vmatpush1.xpose.msra.mxu0 0.0
    %637 = vmatprep.subr.mxu0 0.0
    %638 = vmatpush1.xpose.msra.mxu0 0.0
    %639 = vmatprep.subr.mxu0 0.0
    %640 = vmatpush1.xpose.msra.mxu0 0.0
    %641 = vmatprep.subr.mxu0 0.0
    %642 = vmatpush1.xpose.msra.mxu0 0.0
    %643 = vmatprep.subr.mxu0 0.0
    %644 = vmatpush1.xpose.msra.mxu0 0.0
    %645 = vmatprep.subr.mxu0 0.0
    %646 = vmatpush1.xpose.msra.mxu0 0.0
    %647 = vmatprep.subr.mxu0 0.0
    %648 = vmatpush1.xpose.msra.mxu0 0.0
    %649 = vmatprep.subr.mxu0 0.0
    %650 = vmatpush1.xpose.msra.mxu0 0.0
    %651 = vmatprep.subr.mxu0 0.0
    %652 = vmatpush1.xpose.msra.mxu0 0.0
    %653 = vmatprep.subr.mxu0 0.0
    %654 = vmatpush1.xpose.msra.mxu0 0.0
    %655 = vmatprep.subr.mxu0 0.0
    %656 = vmatpush1.xpose.msra.mxu0 0.0
    %657 = vmatprep.subr.mxu0 0.0
    %658 = vmatpush1.xpose.msra.mxu0 0.0
    %659 = vmatprep.subr.mxu0 0.0
    %660 = vmatpush1.xpose.msra.mxu0 0.0
    %661 = vmatprep.subr.mxu0 0.0
    %662 = vmatpush1.xpose.msra.mxu0 0.0
    %663 = vmatprep.subr.mxu0 0.0
    %664 = vmatpush1.xpose.msra.mxu0 0.0
    %665 = vmatprep.subr.mxu0 0.0
    %666 = vmatpush1.xpose.msra.mxu0 0.0
    %667 = vmatprep.subr.mxu0 0.0
    %668 = vmatpush1.xpose.msra.mxu0 0.0
    %669 = vmatprep.subr.mxu0 0.0
    %670 = vmatpush1.xpose.msra.mxu0 0.0
    %671 = vmatprep.subr.mxu0 0.0
    %672 = vmatpush1.xpose.msra.mxu0 0.0
    %673 = vmatprep.subr.mxu0 0.0
    %674 = vmatpush1.xpose.msra.mxu0 0.0
    %675 = vmatprep.subr.mxu0 0.0
    %676 = vmatpush1.xpose.msra.mxu0 0.0
    %677 = vmatprep.subr.mxu0 0.0
    %678 = vmatpush1.xpose.msra.mxu0 0.0
    %679 = vmatprep.subr.mxu0 0.0
    %680 = vmatpush1.xpose.msra.mxu0 0.0
    %681 = vmatprep.subr.mxu0 0.0
    %682 = vmatpush1.xpose.msra.mxu0 0.0
    %683 = vmatprep.subr.mxu0 0.0
    %684 = vmatpush1.xpose.msra.mxu0 0.0
    %685 = vmatprep.subr.mxu0 0.0
    %686 = vmatpush1.xpose.msra.mxu0 0.0
    %687 = vmatprep.subr.mxu0 0.0
    %688 = vmatpush1.xpose.msra.mxu0 0.0
    %689 = vmatprep.subr.mxu0 0.0
    %690 = vmatpush1.xpose.msra.mxu0 0.0
    %691 = vmatprep.subr.mxu0 0.0
    %692 = vmatpush1.xpose.msra.mxu0 0.0
    %693 = vmatprep.mubr.f32.mxu0 0.0
    %694 = vmatmul.mubr.f32.gmra.mrb[0].mxu0 %v625
    %v695 = vpop.f32.mrb[0].mxu0
    %v696 = vadd.f32 0.0, %v695
    %v697 = vpop.f32.mrb[0].mxu0
    %698 = vdwg.mxu0
    %699 = vrot.lane.b32.xlu0 %v239, 96
    %v700 = vpop.permute.xlu0 %699
    %v701 = vsel %vm244, %v239, 0
    %v703 = vsel %vm244, %v700, 0
    %705 = vmatprep.subr.mxu0 0.0
    %706 = vmatpush1.xpose.msra.mxu0 %v703
    %707 = vmatprep.subr.mxu0 0.0
    %708 = vmatpush1.xpose.msra.mxu0 0.0
    %709 = vmatprep.subr.mxu0 0.0
    %710 = vmatpush1.xpose.msra.mxu0 0.0
    %711 = vmatprep.subr.mxu0 0.0
    %712 = vmatpush1.xpose.msra.mxu0 0.0
    %713 = vmatprep.subr.mxu0 0.0
    %714 = vmatpush1.xpose.msra.mxu0 0.0
    %715 = vmatprep.subr.mxu0 0.0
    %716 = vmatpush1.xpose.msra.mxu0 0.0
    %717 = vmatprep.subr.mxu0 0.0
    %718 = vmatpush1.xpose.msra.mxu0 0.0
    %719 = vmatprep.subr.mxu0 0.0
    %720 = vmatpush1.xpose.msra.mxu0 0.0
    %721 = vmatprep.subr.mxu0 0.0
    %722 = vmatpush1.xpose.msra.mxu0 0.0
    %723 = vmatprep.subr.mxu0 0.0
    %724 = vmatpush1.xpose.msra.mxu0 0.0
    %725 = vmatprep.subr.mxu0 0.0
    %726 = vmatpush1.xpose.msra.mxu0 0.0
    %727 = vmatprep.subr.mxu0 0.0
    %728 = vmatpush1.xpose.msra.mxu0 0.0
    %729 = vmatprep.subr.mxu0 0.0
    %730 = vmatpush1.xpose.msra.mxu0 0.0
    %731 = vmatprep.subr.mxu0 0.0
    %732 = vmatpush1.xpose.msra.mxu0 0.0
    %733 = vmatprep.subr.mxu0 0.0
    %734 = vmatpush1.xpose.msra.mxu0 0.0
    %735 = vmatprep.subr.mxu0 0.0
    %736 = vmatpush1.xpose.msra.mxu0 0.0
    %737 = vmatprep.subr.mxu0 0.0
    %738 = vmatpush1.xpose.msra.mxu0 0.0
    %739 = vmatprep.subr.mxu0 0.0
    %740 = vmatpush1.xpose.msra.mxu0 0.0
    %741 = vmatprep.subr.mxu0 0.0
    %742 = vmatpush1.xpose.msra.mxu0 0.0
    %743 = vmatprep.subr.mxu0 0.0
    %744 = vmatpush1.xpose.msra.mxu0 0.0
    %745 = vmatprep.subr.mxu0 0.0
    %746 = vmatpush1.xpose.msra.mxu0 0.0
    %747 = vmatprep.subr.mxu0 0.0
    %748 = vmatpush1.xpose.msra.mxu0 0.0
    %749 = vmatprep.subr.mxu0 0.0
    %750 = vmatpush1.xpose.msra.mxu0 0.0
    %751 = vmatprep.subr.mxu0 0.0
    %752 = vmatpush1.xpose.msra.mxu0 0.0
    %753 = vmatprep.subr.mxu0 0.0
    %754 = vmatpush1.xpose.msra.mxu0 0.0
    %755 = vmatprep.subr.mxu0 0.0
    %756 = vmatpush1.xpose.msra.mxu0 0.0
    %757 = vmatprep.subr.mxu0 0.0
    %758 = vmatpush1.xpose.msra.mxu0 0.0
    %759 = vmatprep.subr.mxu0 0.0
    %760 = vmatpush1.xpose.msra.mxu0 0.0
    %761 = vmatprep.subr.mxu0 0.0
    %762 = vmatpush1.xpose.msra.mxu0 0.0
    %763 = vmatprep.subr.mxu0 0.0
    %764 = vmatpush1.xpose.msra.mxu0 0.0
    %765 = vmatprep.subr.mxu0 0.0
    %766 = vmatpush1.xpose.msra.mxu0 0.0
    %767 = vmatprep.subr.mxu0 0.0
    %768 = vmatpush1.xpose.msra.mxu0 0.0
    %769 = vmatprep.mubr.f32.mxu0 0.0
    %770 = vmatmul.mubr.f32.gmra.mrb[0].mxu0 %v701
    %v771 = vpop.f32.mrb[0].mxu0
    %v772 = vadd.f32 0.0, %v771
    %v773 = vpop.f32.mrb[0].mxu0
    %774 = vdwg.mxu0
    %775 = vrot.lane.b32.xlu0 %v241, 96
    %v776 = vpop.permute.xlu0 %775
    %v777 = vsel %vm244, %v241, 0
    %v779 = vsel %vm244, %v776, 0
    %781 = vmatprep.subr.mxu0 0.0
    %782 = vmatpush1.xpose.msra.mxu0 %v779
    %783 = vmatprep.subr.mxu0 0.0
    %784 = vmatpush1.xpose.msra.mxu0 0.0
    %785 = vmatprep.subr.mxu0 0.0
    %786 = vmatpush1.xpose.msra.mxu0 0.0
    %787 = vmatprep.subr.mxu0 0.0
    %788 = vmatpush1.xpose.msra.mxu0 0.0
    %789 = vmatprep.subr.mxu0 0.0
    %790 = vmatpush1.xpose.msra.mxu0 0.0
    %791 = vmatprep.subr.mxu0 0.0
    %792 = vmatpush1.xpose.msra.mxu0 0.0
    %793 = vmatprep.subr.mxu0 0.0
    %794 = vmatpush1.xpose.msra.mxu0 0.0
    %795 = vmatprep.subr.mxu0 0.0
    %796 = vmatpush1.xpose.msra.mxu0 0.0
    %797 = vmatprep.subr.mxu0 0.0
    %798 = vmatpush1.xpose.msra.mxu0 0.0
    %799 = vmatprep.subr.mxu0 0.0
    %800 = vmatpush1.xpose.msra.mxu0 0.0
    %801 = vmatprep.subr.mxu0 0.0
    %802 = vmatpush1.xpose.msra.mxu0 0.0
    %803 = vmatprep.subr.mxu0 0.0
    %804 = vmatpush1.xpose.msra.mxu0 0.0
    %805 = vmatprep.subr.mxu0 0.0
    %806 = vmatpush1.xpose.msra.mxu0 0.0
    %807 = vmatprep.subr.mxu0 0.0
    %808 = vmatpush1.xpose.msra.mxu0 0.0
    %809 = vmatprep.subr.mxu0 0.0
    %810 = vmatpush1.xpose.msra.mxu0 0.0
    %811 = vmatprep.subr.mxu0 0.0
    %812 = vmatpush1.xpose.msra.mxu0 0.0
    %813 = vmatprep.subr.mxu0 0.0
    %814 = vmatpush1.xpose.msra.mxu0 0.0
    %815 = vmatprep.subr.mxu0 0.0
    %816 = vmatpush1.xpose.msra.mxu0 0.0
    %817 = vmatprep.subr.mxu0 0.0
    %818 = vmatpush1.xpose.msra.mxu0 0.0
    %819 = vmatprep.subr.mxu0 0.0
    %820 = vmatpush1.xpose.msra.mxu0 0.0
    %821 = vmatprep.subr.mxu0 0.0
    %822 = vmatpush1.xpose.msra.mxu0 0.0
    %823 = vmatprep.subr.mxu0 0.0
    %824 = vmatpush1.xpose.msra.mxu0 0.0
    %825 = vmatprep.subr.mxu0 0.0
    %826 = vmatpush1.xpose.msra.mxu0 0.0
    %827 = vmatprep.subr.mxu0 0.0
    %828 = vmatpush1.xpose.msra.mxu0 0.0
    %829 = vmatprep.subr.mxu0 0.0
    %830 = vmatpush1.xpose.msra.mxu0 0.0
    %831 = vmatprep.subr.mxu0 0.0
    %832 = vmatpush1.xpose.msra.mxu0 0.0
    %833 = vmatprep.subr.mxu0 0.0
    %834 = vmatpush1.xpose.msra.mxu0 0.0
    %835 = vmatprep.subr.mxu0 0.0
    %836 = vmatpush1.xpose.msra.mxu0 0.0
    %837 = vmatprep.subr.mxu0 0.0
    %838 = vmatpush1.xpose.msra.mxu0 0.0
    %839 = vmatprep.subr.mxu0 0.0
    %840 = vmatpush1.xpose.msra.mxu0 0.0
    %841 = vmatprep.subr.mxu0 0.0
    %842 = vmatpush1.xpose.msra.mxu0 0.0
    %843 = vmatprep.subr.mxu0 0.0
    %844 = vmatpush1.xpose.msra.mxu0 0.0
    %845 = vmatprep.mubr.f32.mxu0 0.0
    %846 = vmatmul.mubr.f32.gmra.mrb[0].mxu0 %v777
    %v847 = vpop.f32.mrb[0].mxu0
    %v848 = vadd.f32 0.0, %v847
    %v849 = vpop.f32.mrb[0].mxu0
    %850 = vdwg.mxu0
    %v851 = vmul.f32 %v316, 1.442695
    %v852 = vpow.pop %v851
    %v853 = vmul.f32 %v392, 1.442695
    %v854 = vpow.pop %v853
    %v855 = vmul.f32 %v468, 1.442695
    %v856 = vpow.pop %v855
    %v857 = vmul.f32 %v544, 1.442695
    %v858 = vpow.pop %v857
    %v859 = vmul.f32 %v620, 1.442695
    %v860 = vpow.pop %v859
    %v861 = vmul.f32 %v696, 1.442695
    %v862 = vpow.pop %v861
    %v863 = vmul.f32 %v772, 1.442695
    %v864 = vpow.pop %v863
    %v865 = vmul.f32 %v848, 1.442695
    %v866 = vpow.pop %v865
    %v867 = vsel %vm244, %v852, 0.0
    %868 = vadd.xlane.f32.xlu0 %v867
    %v869 = vpop.xlane.xlu0 %868
    %v870 = vsel %vm244, %v854, 0.0
    %871 = vadd.xlane.f32.xlu0 %v870
    %v872 = vpop.xlane.xlu0 %871
    %v873 = vsel %vm244, %v856, 0.0
    %874 = vadd.xlane.f32.xlu0 %v873
    %v875 = vpop.xlane.xlu0 %874
    %v876 = vsel %vm244, %v858, 0.0
    %877 = vadd.xlane.f32.xlu0 %v876
    %v878 = vpop.xlane.xlu0 %877
    %v879 = vsel %vm244, %v860, 0.0
    %880 = vadd.xlane.f32.xlu0 %v879
    %v881 = vpop.xlane.xlu0 %880
    %v882 = vsel %vm244, %v862, 0.0
    %883 = vadd.xlane.f32.xlu0 %v882
    %v884 = vpop.xlane.xlu0 %883
    %v885 = vsel %vm244, %v864, 0.0
    %886 = vadd.xlane.f32.xlu0 %v885
    %v887 = vpop.xlane.xlu0 %886
    %v888 = vsel %vm244, %v866, 0.0
    %889 = vadd.xlane.f32.xlu0 %v888
    %v890 = vpop.xlane.xlu0 %889
    %v891 = vrcp.pop %v869
    %v892 = vrcp.pop %v872
    %v893 = vrcp.pop %v875
    %v894 = vrcp.pop %v878
    %v895 = vrcp.pop %v881
    %v896 = vrcp.pop %v884
    %v897 = vrcp.pop %v887
    %v898 = vrcp.pop %v890
    %v899 = vmul.f32 %v852, %v891
    %v900 = vmul.f32 %v854, %v892
    %v901 = vmul.f32 %v856, %v893
    %v902 = vmul.f32 %v858, %v894
    %v903 = vmul.f32 %v860, %v895
    %v904 = vmul.f32 %v862, %v896
    %v905 = vmul.f32 %v864, %v897
    %v906 = vmul.f32 %v866, %v898
    %907 = vrot.lane.b32.xlu0 %v220, 64
    %v908 = vpop.permute.xlu0 %907
    %v911 = vsel %vm244, %v899, 0
    %913 = vmatprep.subr.mxu0 0.0
    %914 = vmatpush1.msra.mxu0 %v908
    %915 = vmatprep.subr.mxu0 0.0
    %916 = vmatpush1.msra.mxu0 0.0
    %917 = vmatprep.subr.mxu0 0.0
    %918 = vmatpush1.msra.mxu0 0.0
    %919 = vmatprep.subr.mxu0 0.0
    %920 = vmatpush1.msra.mxu0 0.0
    %921 = vmatprep.subr.mxu0 0.0
    %922 = vmatpush1.msra.mxu0 0.0
    %923 = vmatprep.subr.mxu0 0.0
    %924 = vmatpush1.msra.mxu0 0.0
    %925 = vmatprep.subr.mxu0 0.0
    %926 = vmatpush1.msra.mxu0 0.0
    %927 = vmatprep.subr.mxu0 0.0
    %928 = vmatpush1.msra.mxu0 0.0
    %929 = vmatprep.subr.mxu0 0.0
    %930 = vmatpush1.msra.mxu0 0.0
    %931 = vmatprep.subr.mxu0 0.0
    %932 = vmatpush1.msra.mxu0 0.0
    %933 = vmatprep.subr.mxu0 0.0
    %934 = vmatpush1.msra.mxu0 0.0
    %935 = vmatprep.subr.mxu0 0.0
    %936 = vmatpush1.msra.mxu0 0.0
    %937 = vmatprep.subr.mxu0 0.0
    %938 = vmatpush1.msra.mxu0 0.0
    %939 = vmatprep.subr.mxu0 0.0
    %940 = vmatpush1.msra.mxu0 0.0
    %941 = vmatprep.subr.mxu0 0.0
    %942 = vmatpush1.msra.mxu0 0.0
    %943 = vmatprep.subr.mxu0 0.0
    %944 = vmatpush1.msra.mxu0 0.0
    %945 = vmatprep.subr.mxu0 0.0
    %946 = vmatpush1.msra.mxu0 0.0
    %947 = vmatprep.subr.mxu0 0.0
    %948 = vmatpush1.msra.mxu0 0.0
    %949 = vmatprep.subr.mxu0 0.0
    %950 = vmatpush1.msra.mxu0 0.0
    %951 = vmatprep.subr.mxu0 0.0
    %952 = vmatpush1.msra.mxu0 0.0
    %953 = vmatprep.subr.mxu0 0.0
    %954 = vmatpush1.msra.mxu0 0.0
    %955 = vmatprep.subr.mxu0 0.0
    %956 = vmatpush1.msra.mxu0 0.0
    %957 = vmatprep.subr.mxu0 0.0
    %958 = vmatpush1.msra.mxu0 0.0
    %959 = vmatprep.subr.mxu0 0.0
    %960 = vmatpush1.msra.mxu0 0.0
    %961 = vmatprep.subr.mxu0 0.0
    %962 = vmatpush1.msra.mxu0 0.0
    %963 = vmatprep.subr.mxu0 0.0
    %964 = vmatpush1.msra.mxu0 0.0
    %965 = vmatprep.subr.mxu0 0.0
    %966 = vmatpush1.msra.mxu0 0.0
    %967 = vmatprep.subr.mxu0 0.0
    %968 = vmatpush1.msra.mxu0 0.0
    %969 = vmatprep.subr.mxu0 0.0
    %970 = vmatpush1.msra.mxu0 0.0
    %971 = vmatprep.subr.mxu0 0.0
    %972 = vmatpush1.msra.mxu0 0.0
    %973 = vmatprep.subr.mxu0 0.0
    %974 = vmatpush1.msra.mxu0 0.0
    %975 = vmatprep.subr.mxu0 0.0
    %976 = vmatpush1.msra.mxu0 0.0
    %977 = vmatprep.mubr.f32.mxu0 0.0
    %978 = vmatmul.mubr.f32.gmra.mrb[0].mxu0 %v911
    %v979 = vpop.f32.mrb[0].mxu0
    %v980 = vadd.f32 0.0, %v979
    %v981 = vpop.f32.mrb[0].mxu0
    %982 = vdwg.mxu0
    %983 = vrot.lane.b32.xlu0 %v225, 64
    %v984 = vpop.permute.xlu0 %983
    %v987 = vsel %vm244, %v900, 0
    %989 = vmatprep.subr.mxu0 0.0
    %990 = vmatpush1.msra.mxu0 %v984
    %991 = vmatprep.subr.mxu0 0.0
    %992 = vmatpush1.msra.mxu0 0.0
    %993 = vmatprep.subr.mxu0 0.0
    %994 = vmatpush1.msra.mxu0 0.0
    %995 = vmatprep.subr.mxu0 0.0
    %996 = vmatpush1.msra.mxu0 0.0
    %997 = vmatprep.subr.mxu0 0.0
    %998 = vmatpush1.msra.mxu0 0.0
    %999 = vmatprep.subr.mxu0 0.0
    %1000 = vmatpush1.msra.mxu0 0.0
    %1001 = vmatprep.subr.mxu0 0.0
    %1002 = vmatpush1.msra.mxu0 0.0
    %1003 = vmatprep.subr.mxu0 0.0
    %1004 = vmatpush1.msra.mxu0 0.0
    %1005 = vmatprep.subr.mxu0 0.0
    %1006 = vmatpush1.msra.mxu0 0.0
    %1007 = vmatprep.subr.mxu0 0.0
    %1008 = vmatpush1.msra.mxu0 0.0
    %1009 = vmatprep.subr.mxu0 0.0
    %1010 = vmatpush1.msra.mxu0 0.0
    %1011 = vmatprep.subr.mxu0 0.0
    %1012 = vmatpush1.msra.mxu0 0.0
    %1013 = vmatprep.subr.mxu0 0.0
    %1014 = vmatpush1.msra.mxu0 0.0
    %1015 = vmatprep.subr.mxu0 0.0
    %1016 = vmatpush1.msra.mxu0 0.0
    %1017 = vmatprep.subr.mxu0 0.0
    %1018 = vmatpush1.msra.mxu0 0.0
    %1019 = vmatprep.subr.mxu0 0.0
    %1020 = vmatpush1.msra.mxu0 0.0
    %1021 = vmatprep.subr.mxu0 0.0
    %1022 = vmatpush1.msra.mxu0 0.0
    %1023 = vmatprep.subr.mxu0 0.0
    %1024 = vmatpush1.msra.mxu0 0.0
    %1025 = vmatprep.subr.mxu0 0.0
    %1026 = vmatpush1.msra.mxu0 0.0
    %1027 = vmatprep.subr.mxu0 0.0
    %1028 = vmatpush1.msra.mxu0 0.0
    %1029 = vmatprep.subr.mxu0 0.0
    %1030 = vmatpush1.msra.mxu0 0.0
    %1031 = vmatprep.subr.mxu0 0.0
    %1032 = vmatpush1.msra.mxu0 0.0
    %1033 = vmatprep.subr.mxu0 0.0
    %1034 = vmatpush1.msra.mxu0 0.0
    %1035 = vmatprep.subr.mxu0 0.0
    %1036 = vmatpush1.msra.mxu0 0.0
    %1037 = vmatprep.subr.mxu0 0.0
    %1038 = vmatpush1.msra.mxu0 0.0
    %1039 = vmatprep.subr.mxu0 0.0
    %1040 = vmatpush1.msra.mxu0 0.0
    %1041 = vmatprep.subr.mxu0 0.0
    %1042 = vmatpush1.msra.mxu0 0.0
    %1043 = vmatprep.subr.mxu0 0.0
    %1044 = vmatpush1.msra.mxu0 0.0
    %1045 = vmatprep.subr.mxu0 0.0
    %1046 = vmatpush1.msra.mxu0 0.0
    %1047 = vmatprep.subr.mxu0 0.0
    %1048 = vmatpush1.msra.mxu0 0.0
    %1049 = vmatprep.subr.mxu0 0.0
    %1050 = vmatpush1.msra.mxu0 0.0
    %1051 = vmatprep.subr.mxu0 0.0
    %1052 = vmatpush1.msra.mxu0 0.0
    %1053 = vmatprep.mubr.f32.mxu0 0.0
    %1054 = vmatmul.mubr.f32.gmra.mrb[0].mxu0 %v987
    %v1055 = vpop.f32.mrb[0].mxu0
    %v1056 = vadd.f32 0.0, %v1055
    %v1057 = vpop.f32.mrb[0].mxu0
    %1058 = vdwg.mxu0
    %1059 = vrot.lane.b32.xlu0 %v231, 64
    %v1060 = vpop.permute.xlu0 %1059
    %v1063 = vsel %vm244, %v901, 0
    %1065 = vmatprep.subr.mxu0 0.0
    %1066 = vmatpush1.msra.mxu0 %v1060
    %1067 = vmatprep.subr.mxu0 0.0
    %1068 = vmatpush1.msra.mxu0 0.0
    %1069 = vmatprep.subr.mxu0 0.0
    %1070 = vmatpush1.msra.mxu0 0.0
    %1071 = vmatprep.subr.mxu0 0.0
    %1072 = vmatpush1.msra.mxu0 0.0
    %1073 = vmatprep.subr.mxu0 0.0
    %1074 = vmatpush1.msra.mxu0 0.0
    %1075 = vmatprep.subr.mxu0 0.0
    %1076 = vmatpush1.msra.mxu0 0.0
    %1077 = vmatprep.subr.mxu0 0.0
    %1078 = vmatpush1.msra.mxu0 0.0
    %1079 = vmatprep.subr.mxu0 0.0
    %1080 = vmatpush1.msra.mxu0 0.0
    %1081 = vmatprep.subr.mxu0 0.0
    %1082 = vmatpush1.msra.mxu0 0.0
    %1083 = vmatprep.subr.mxu0 0.0
    %1084 = vmatpush1.msra.mxu0 0.0
    %1085 = vmatprep.subr.mxu0 0.0
    %1086 = vmatpush1.msra.mxu0 0.0
    %1087 = vmatprep.subr.mxu0 0.0
    %1088 = vmatpush1.msra.mxu0 0.0
    %1089 = vmatprep.subr.mxu0 0.0
    %1090 = vmatpush1.msra.mxu0 0.0
    %1091 = vmatprep.subr.mxu0 0.0
    %1092 = vmatpush1.msra.mxu0 0.0
    %1093 = vmatprep.subr.mxu0 0.0
    %1094 = vmatpush1.msra.mxu0 0.0
    %1095 = vmatprep.subr.mxu0 0.0
    %1096 = vmatpush1.msra.mxu0 0.0
    %1097 = vmatprep.subr.mxu0 0.0
    %1098 = vmatpush1.msra.mxu0 0.0
    %1099 = vmatprep.subr.mxu0 0.0
    %1100 = vmatpush1.msra.mxu0 0.0
    %1101 = vmatprep.subr.mxu0 0.0
    %1102 = vmatpush1.msra.mxu0 0.0
    %1103 = vmatprep.subr.mxu0 0.0
    %1104 = vmatpush1.msra.mxu0 0.0
    %1105 = vmatprep.subr.mxu0 0.0
    %1106 = vmatpush1.msra.mxu0 0.0
    %1107 = vmatprep.subr.mxu0 0.0
    %1108 = vmatpush1.msra.mxu0 0.0
    %1109 = vmatprep.subr.mxu0 0.0
    %1110 = vmatpush1.msra.mxu0 0.0
    %1111 = vmatprep.subr.mxu0 0.0
    %1112 = vmatpush1.msra.mxu0 0.0
    %1113 = vmatprep.subr.mxu0 0.0
    %1114 = vmatpush1.msra.mxu0 0.0
    %1115 = vmatprep.subr.mxu0 0.0
    %1116 = vmatpush1.msra.mxu0 0.0
    %1117 = vmatprep.subr.mxu0 0.0
    %1118 = vmatpush1.msra.mxu0 0.0
    %1119 = vmatprep.subr.mxu0 0.0
    %1120 = vmatpush1.msra.mxu0 0.0
    %1121 = vmatprep.subr.mxu0 0.0
    %1122 = vmatpush1.msra.mxu0 0.0
    %1123 = vmatprep.subr.mxu0 0.0
    %1124 = vmatpush1.msra.mxu0 0.0
    %1125 = vmatprep.subr.mxu0 0.0
    %1126 = vmatpush1.msra.mxu0 0.0
    %1127 = vmatprep.subr.mxu0 0.0
    %1128 = vmatpush1.msra.mxu0 0.0
    %1129 = vmatprep.mubr.f32.mxu0 0.0
    %1130 = vmatmul.mubr.f32.gmra.mrb[0].mxu0 %v1063
    %v1131 = vpop.f32.mrb[0].mxu0
    %v1132 = vadd.f32 0.0, %v1131
    %v1133 = vpop.f32.mrb[0].mxu0
    %1134 = vdwg.mxu0
    %1135 = vrot.lane.b32.xlu0 %v233, 64
    %v1136 = vpop.permute.xlu0 %1135
    %v1139 = vsel %vm244, %v902, 0
    %1141 = vmatprep.subr.mxu0 0.0
    %1142 = vmatpush1.msra.mxu0 %v1136
    %1143 = vmatprep.subr.mxu0 0.0
    %1144 = vmatpush1.msra.mxu0 0.0
    %1145 = vmatprep.subr.mxu0 0.0
    %1146 = vmatpush1.msra.mxu0 0.0
    %1147 = vmatprep.subr.mxu0 0.0
    %1148 = vmatpush1.msra.mxu0 0.0
    %1149 = vmatprep.subr.mxu0 0.0
    %1150 = vmatpush1.msra.mxu0 0.0
    %1151 = vmatprep.subr.mxu0 0.0
    %1152 = vmatpush1.msra.mxu0 0.0
    %1153 = vmatprep.subr.mxu0 0.0
    %1154 = vmatpush1.msra.mxu0 0.0
    %1155 = vmatprep.subr.mxu0 0.0
    %1156 = vmatpush1.msra.mxu0 0.0
    %1157 = vmatprep.subr.mxu0 0.0
    %1158 = vmatpush1.msra.mxu0 0.0
    %1159 = vmatprep.subr.mxu0 0.0
    %1160 = vmatpush1.msra.mxu0 0.0
    %1161 = vmatprep.subr.mxu0 0.0
    %1162 = vmatpush1.msra.mxu0 0.0
    %1163 = vmatprep.subr.mxu0 0.0
    %1164 = vmatpush1.msra.mxu0 0.0
    %1165 = vmatprep.subr.mxu0 0.0
    %1166 = vmatpush1.msra.mxu0 0.0
    %1167 = vmatprep.subr.mxu0 0.0
    %1168 = vmatpush1.msra.mxu0 0.0
    %1169 = vmatprep.subr.mxu0 0.0
    %1170 = vmatpush1.msra.mxu0 0.0
    %1171 = vmatprep.subr.mxu0 0.0
    %1172 = vmatpush1.msra.mxu0 0.0
    %1173 = vmatprep.subr.mxu0 0.0
    %1174 = vmatpush1.msra.mxu0 0.0
    %1175 = vmatprep.subr.mxu0 0.0
    %1176 = vmatpush1.msra.mxu0 0.0
    %1177 = vmatprep.subr.mxu0 0.0
    %1178 = vmatpush1.msra.mxu0 0.0
    %1179 = vmatprep.subr.mxu0 0.0
    %1180 = vmatpush1.msra.mxu0 0.0
    %1181 = vmatprep.subr.mxu0 0.0
    %1182 = vmatpush1.msra.mxu0 0.0
    %1183 = vmatprep.subr.mxu0 0.0
    %1184 = vmatpush1.msra.mxu0 0.0
    %1185 = vmatprep.subr.mxu0 0.0
    %1186 = vmatpush1.msra.mxu0 0.0
    %1187 = vmatprep.subr.mxu0 0.0
    %1188 = vmatpush1.msra.mxu0 0.0
    %1189 = vmatprep.subr.mxu0 0.0
    %1190 = vmatpush1.msra.mxu0 0.0
    %1191 = vmatprep.subr.mxu0 0.0
    %1192 = vmatpush1.msra.mxu0 0.0
    %1193 = vmatprep.subr.mxu0 0.0
    %1194 = vmatpush1.msra.mxu0 0.0
    %1195 = vmatprep.subr.mxu0 0.0
    %1196 = vmatpush1.msra.mxu0 0.0
    %1197 = vmatprep.subr.mxu0 0.0
    %1198 = vmatpush1.msra.mxu0 0.0
    %1199 = vmatprep.subr.mxu0 0.0
    %1200 = vmatpush1.msra.mxu0 0.0
    %1201 = vmatprep.subr.mxu0 0.0
    %1202 = vmatpush1.msra.mxu0 0.0
    %1203 = vmatprep.subr.mxu0 0.0
    %1204 = vmatpush1.msra.mxu0 0.0
    %1205 = vmatprep.mubr.f32.mxu0 0.0
    %1206 = vmatmul.mubr.f32.gmra.mrb[0].mxu0 %v1139
    %v1207 = vpop.f32.mrb[0].mxu0
    %v1208 = vadd.f32 0.0, %v1207
    %v1209 = vpop.f32.mrb[0].mxu0
    %1210 = vdwg.mxu0
    %1211 = vrot.lane.b32.xlu0 %v235, 64
    %v1212 = vpop.permute.xlu0 %1211
    %v1215 = vsel %vm244, %v903, 0
    %1217 = vmatprep.subr.mxu0 0.0
    %1218 = vmatpush1.msra.mxu0 %v1212
    %1219 = vmatprep.subr.mxu0 0.0
    %1220 = vmatpush1.msra.mxu0 0.0
    %1221 = vmatprep.subr.mxu0 0.0
    %1222 = vmatpush1.msra.mxu0 0.0
    %1223 = vmatprep.subr.mxu0 0.0
    %1224 = vmatpush1.msra.mxu0 0.0
    %1225 = vmatprep.subr.mxu0 0.0
    %1226 = vmatpush1.msra.mxu0 0.0
    %1227 = vmatprep.subr.mxu0 0.0
    %1228 = vmatpush1.msra.mxu0 0.0
    %1229 = vmatprep.subr.mxu0 0.0
    %1230 = vmatpush1.msra.mxu0 0.0
    %1231 = vmatprep.subr.mxu0 0.0
    %1232 = vmatpush1.msra.mxu0 0.0
    %1233 = vmatprep.subr.mxu0 0.0
    %1234 = vmatpush1.msra.mxu0 0.0
    %1235 = vmatprep.subr.mxu0 0.0
    %1236 = vmatpush1.msra.mxu0 0.0
    %1237 = vmatprep.subr.mxu0 0.0
    %1238 = vmatpush1.msra.mxu0 0.0
    %1239 = vmatprep.subr.mxu0 0.0
    %1240 = vmatpush1.msra.mxu0 0.0
    %1241 = vmatprep.subr.mxu0 0.0
    %1242 = vmatpush1.msra.mxu0 0.0
    %1243 = vmatprep.subr.mxu0 0.0
    %1244 = vmatpush1.msra.mxu0 0.0
    %1245 = vmatprep.subr.mxu0 0.0
    %1246 = vmatpush1.msra.mxu0 0.0
    %1247 = vmatprep.subr.mxu0 0.0
    %1248 = vmatpush1.msra.mxu0 0.0
    %1249 = vmatprep.subr.mxu0 0.0
    %1250 = vmatpush1.msra.mxu0 0.0
    %1251 = vmatprep.subr.mxu0 0.0
    %1252 = vmatpush1.msra.mxu0 0.0
    %1253 = vmatprep.subr.mxu0 0.0
    %1254 = vmatpush1.msra.mxu0 0.0
    %1255 = vmatprep.subr.mxu0 0.0
    %1256 = vmatpush1.msra.mxu0 0.0
    %1257 = vmatprep.subr.mxu0 0.0
    %1258 = vmatpush1.msra.mxu0 0.0
    %1259 = vmatprep.subr.mxu0 0.0
    %1260 = vmatpush1.msra.mxu0 0.0
    %1261 = vmatprep.subr.mxu0 0.0
    %1262 = vmatpush1.msra.mxu0 0.0
    %1263 = vmatprep.subr.mxu0 0.0
    %1264 = vmatpush1.msra.mxu0 0.0
    %1265 = vmatprep.subr.mxu0 0.0
    %1266 = vmatpush1.msra.mxu0 0.0
    %1267 = vmatprep.subr.mxu0 0.0
    %1268 = vmatpush1.msra.mxu0 0.0
    %1269 = vmatprep.subr.mxu0 0.0
    %1270 = vmatpush1.msra.mxu0 0.0
    %1271 = vmatprep.subr.mxu0 0.0
    %1272 = vmatpush1.msra.mxu0 0.0
    %1273 = vmatprep.subr.mxu0 0.0
    %1274 = vmatpush1.msra.mxu0 0.0
    %1275 = vmatprep.subr.mxu0 0.0
    %1276 = vmatpush1.msra.mxu0 0.0
    %1277 = vmatprep.subr.mxu0 0.0
    %1278 = vmatpush1.msra.mxu0 0.0
    %1279 = vmatprep.subr.mxu0 0.0
    %1280 = vmatpush1.msra.mxu0 0.0
    %1281 = vmatprep.mubr.f32.mxu0 0.0
    %1282 = vmatmul.mubr.f32.gmra.mrb[0].mxu0 %v1215
    %v1283 = vpop.f32.mrb[0].mxu0
    %v1284 = vadd.f32 0.0, %v1283
    %v1285 = vpop.f32.mrb[0].mxu0
    %1286 = vdwg.mxu0
    %1287 = vrot.lane.b32.xlu0 %v237, 64
    %v1288 = vpop.permute.xlu0 %1287
    %v1291 = vsel %vm244, %v904, 0
    %1293 = vmatprep.subr.mxu0 0.0
    %1294 = vmatpush1.msra.mxu0 %v1288
    %1295 = vmatprep.subr.mxu0 0.0
    %1296 = vmatpush1.msra.mxu0 0.0
    %1297 = vmatprep.subr.mxu0 0.0
    %1298 = vmatpush1.msra.mxu0 0.0
    %1299 = vmatprep.subr.mxu0 0.0
    %1300 = vmatpush1.msra.mxu0 0.0
    %1301 = vmatprep.subr.mxu0 0.0
    %1302 = vmatpush1.msra.mxu0 0.0
    %1303 = vmatprep.subr.mxu0 0.0
    %1304 = vmatpush1.msra.mxu0 0.0
    %1305 = vmatprep.subr.mxu0 0.0
    %1306 = vmatpush1.msra.mxu0 0.0
    %1307 = vmatprep.subr.mxu0 0.0
    %1308 = vmatpush1.msra.mxu0 0.0
    %1309 = vmatprep.subr.mxu0 0.0
    %1310 = vmatpush1.msra.mxu0 0.0
    %1311 = vmatprep.subr.mxu0 0.0
    %1312 = vmatpush1.msra.mxu0 0.0
    %1313 = vmatprep.subr.mxu0 0.0
    %1314 = vmatpush1.msra.mxu0 0.0
    %1315 = vmatprep.subr.mxu0 0.0
    %1316 = vmatpush1.msra.mxu0 0.0
    %1317 = vmatprep.subr.mxu0 0.0
    %1318 = vmatpush1.msra.mxu0 0.0
    %1319 = vmatprep.subr.mxu0 0.0
    %1320 = vmatpush1.msra.mxu0 0.0
    %1321 = vmatprep.subr.mxu0 0.0
    %1322 = vmatpush1.msra.mxu0 0.0
    %1323 = vmatprep.subr.mxu0 0.0
    %1324 = vmatpush1.msra.mxu0 0.0
    %1325 = vmatprep.subr.mxu0 0.0
    %1326 = vmatpush1.msra.mxu0 0.0
    %1327 = vmatprep.subr.mxu0 0.0
    %1328 = vmatpush1.msra.mxu0 0.0
    %1329 = vmatprep.subr.mxu0 0.0
    %1330 = vmatpush1.msra.mxu0 0.0
    %1331 = vmatprep.subr.mxu0 0.0
    %1332 = vmatpush1.msra.mxu0 0.0
    %1333 = vmatprep.subr.mxu0 0.0
    %1334 = vmatpush1.msra.mxu0 0.0
    %1335 = vmatprep.subr.mxu0 0.0
    %1336 = vmatpush1.msra.mxu0 0.0
    %1337 = vmatprep.subr.mxu0 0.0
    %1338 = vmatpush1.msra.mxu0 0.0
    %1339 = vmatprep.subr.mxu0 0.0
    %1340 = vmatpush1.msra.mxu0 0.0
    %1341 = vmatprep.subr.mxu0 0.0
    %1342 = vmatpush1.msra.mxu0 0.0
    %1343 = vmatprep.subr.mxu0 0.0
    %1344 = vmatpush1.msra.mxu0 0.0
    %1345 = vmatprep.subr.mxu0 0.0
    %1346 = vmatpush1.msra.mxu0 0.0
    %1347 = vmatprep.subr.mxu0 0.0
    %1348 = vmatpush1.msra.mxu0 0.0
    %1349 = vmatprep.subr.mxu0 0.0
    %1350 = vmatpush1.msra.mxu0 0.0
    %1351 = vmatprep.subr.mxu0 0.0
    %1352 = vmatpush1.msra.mxu0 0.0
    %1353 = vmatprep.subr.mxu0 0.0
    %1354 = vmatpush1.msra.mxu0 0.0
    %1355 = vmatprep.subr.mxu0 0.0
    %1356 = vmatpush1.msra.mxu0 0.0
    %1357 = vmatprep.mubr.f32.mxu0 0.0
    %1358 = vmatmul.mubr.f32.gmra.mrb[0].mxu0 %v1291
    %v1359 = vpop.f32.mrb[0].mxu0
    %v1360 = vadd.f32 0.0, %v1359
    %v1361 = vpop.f32.mrb[0].mxu0
    %1362 = vdwg.mxu0
    %1363 = vrot.lane.b32.xlu0 %v239, 64
    %v1364 = vpop.permute.xlu0 %1363
    %v1367 = vsel %vm244, %v905, 0
    %1369 = vmatprep.subr.mxu0 0.0
    %1370 = vmatpush1.msra.mxu0 %v1364
    %1371 = vmatprep.subr.mxu0 0.0
    %1372 = vmatpush1.msra.mxu0 0.0
    %1373 = vmatprep.subr.mxu0 0.0
    %1374 = vmatpush1.msra.mxu0 0.0
    %1375 = vmatprep.subr.mxu0 0.0
    %1376 = vmatpush1.msra.mxu0 0.0
    %1377 = vmatprep.subr.mxu0 0.0
    %1378 = vmatpush1.msra.mxu0 0.0
    %1379 = vmatprep.subr.mxu0 0.0
    %1380 = vmatpush1.msra.mxu0 0.0
    %1381 = vmatprep.subr.mxu0 0.0
    %1382 = vmatpush1.msra.mxu0 0.0
    %1383 = vmatprep.subr.mxu0 0.0
    %1384 = vmatpush1.msra.mxu0 0.0
    %1385 = vmatprep.subr.mxu0 0.0
    %1386 = vmatpush1.msra.mxu0 0.0
    %1387 = vmatprep.subr.mxu0 0.0
    %1388 = vmatpush1.msra.mxu0 0.0
    %1389 = vmatprep.subr.mxu0 0.0
    %1390 = vmatpush1.msra.mxu0 0.0
    %1391 = vmatprep.subr.mxu0 0.0
    %1392 = vmatpush1.msra.mxu0 0.0
    %1393 = vmatprep.subr.mxu0 0.0
    %1394 = vmatpush1.msra.mxu0 0.0
    %1395 = vmatprep.subr.mxu0 0.0
    %1396 = vmatpush1.msra.mxu0 0.0
    %1397 = vmatprep.subr.mxu0 0.0
    %1398 = vmatpush1.msra.mxu0 0.0
    %1399 = vmatprep.subr.mxu0 0.0
    %1400 = vmatpush1.msra.mxu0 0.0
    %1401 = vmatprep.subr.mxu0 0.0
    %1402 = vmatpush1.msra.mxu0 0.0
    %1403 = vmatprep.subr.mxu0 0.0
    %1404 = vmatpush1.msra.mxu0 0.0
    %1405 = vmatprep.subr.mxu0 0.0
    %1406 = vmatpush1.msra.mxu0 0.0
    %1407 = vmatprep.subr.mxu0 0.0
    %1408 = vmatpush1.msra.mxu0 0.0
    %1409 = vmatprep.subr.mxu0 0.0
    %1410 = vmatpush1.msra.mxu0 0.0
    %1411 = vmatprep.subr.mxu0 0.0
    %1412 = vmatpush1.msra.mxu0 0.0
    %1413 = vmatprep.subr.mxu0 0.0
    %1414 = vmatpush1.msra.mxu0 0.0
    %1415 = vmatprep.subr.mxu0 0.0
    %1416 = vmatpush1.msra.mxu0 0.0
    %1417 = vmatprep.subr.mxu0 0.0
    %1418 = vmatpush1.msra.mxu0 0.0
    %1419 = vmatprep.subr.mxu0 0.0
    %1420 = vmatpush1.msra.mxu0 0.0
    %1421 = vmatprep.subr.mxu0 0.0
    %1422 = vmatpush1.msra.mxu0 0.0
    %1423 = vmatprep.subr.mxu0 0.0
    %1424 = vmatpush1.msra.mxu0 0.0
    %1425 = vmatprep.subr.mxu0 0.0
    %1426 = vmatpush1.msra.mxu0 0.0
    %1427 = vmatprep.subr.mxu0 0.0
    %1428 = vmatpush1.msra.mxu0 0.0
    %1429 = vmatprep.subr.mxu0 0.0
    %1430 = vmatpush1.msra.mxu0 0.0
    %1431 = vmatprep.subr.mxu0 0.0
    %1432 = vmatpush1.msra.mxu0 0.0
    %1433 = vmatprep.mubr.f32.mxu0 0.0
    %1434 = vmatmul.mubr.f32.gmra.mrb[0].mxu0 %v1367
    %v1435 = vpop.f32.mrb[0].mxu0
    %v1436 = vadd.f32 0.0, %v1435
    %v1437 = vpop.f32.mrb[0].mxu0
    %1438 = vdwg.mxu0
    %1439 = vrot.lane.b32.xlu0 %v241, 64
    %v1440 = vpop.permute.xlu0 %1439
    %v1443 = vsel %vm244, %v906, 0
    %1445 = vmatprep.subr.mxu0 0.0
    %1446 = vmatpush1.msra.mxu0 %v1440
    %1447 = vmatprep.subr.mxu0 0.0
    %1448 = vmatpush1.msra.mxu0 0.0
    %1449 = vmatprep.subr.mxu0 0.0
    %1450 = vmatpush1.msra.mxu0 0.0
    %1451 = vmatprep.subr.mxu0 0.0
    %1452 = vmatpush1.msra.mxu0 0.0
    %1453 = vmatprep.subr.mxu0 0.0
    %1454 = vmatpush1.msra.mxu0 0.0
    %1455 = vmatprep.subr.mxu0 0.0
    %1456 = vmatpush1.msra.mxu0 0.0
    %1457 = vmatprep.subr.mxu0 0.0
    %1458 = vmatpush1.msra.mxu0 0.0
    %1459 = vmatprep.subr.mxu0 0.0
    %1460 = vmatpush1.msra.mxu0 0.0
    %1461 = vmatprep.subr.mxu0 0.0
    %1462 = vmatpush1.msra.mxu0 0.0
    %1463 = vmatprep.subr.mxu0 0.0
    %1464 = vmatpush1.msra.mxu0 0.0
    %1465 = vmatprep.subr.mxu0 0.0
    %1466 = vmatpush1.msra.mxu0 0.0
    %1467 = vmatprep.subr.mxu0 0.0
    %1468 = vmatpush1.msra.mxu0 0.0
    %1469 = vmatprep.subr.mxu0 0.0
    %1470 = vmatpush1.msra.mxu0 0.0
    %1471 = vmatprep.subr.mxu0 0.0
    %1472 = vmatpush1.msra.mxu0 0.0
    %1473 = vmatprep.subr.mxu0 0.0
    %1474 = vmatpush1.msra.mxu0 0.0
    %1475 = vmatprep.subr.mxu0 0.0
    %1476 = vmatpush1.msra.mxu0 0.0
    %1477 = vmatprep.subr.mxu0 0.0
    %1478 = vmatpush1.msra.mxu0 0.0
    %1479 = vmatprep.subr.mxu0 0.0
    %1480 = vmatpush1.msra.mxu0 0.0
    %1481 = vmatprep.subr.mxu0 0.0
    %1482 = vmatpush1.msra.mxu0 0.0
    %1483 = vmatprep.subr.mxu0 0.0
    %1484 = vmatpush1.msra.mxu0 0.0
    %1485 = vmatprep.subr.mxu0 0.0
    %1486 = vmatpush1.msra.mxu0 0.0
    %1487 = vmatprep.subr.mxu0 0.0
    %1488 = vmatpush1.msra.mxu0 0.0
    %1489 = vmatprep.subr.mxu0 0.0
    %1490 = vmatpush1.msra.mxu0 0.0
    %1491 = vmatprep.subr.mxu0 0.0
    %1492 = vmatpush1.msra.mxu0 0.0
    %1493 = vmatprep.subr.mxu0 0.0
    %1494 = vmatpush1.msra.mxu0 0.0
    %1495 = vmatprep.subr.mxu0 0.0
    %1496 = vmatpush1.msra.mxu0 0.0
    %1497 = vmatprep.subr.mxu0 0.0
    %1498 = vmatpush1.msra.mxu0 0.0
    %1499 = vmatprep.subr.mxu0 0.0
    %1500 = vmatpush1.msra.mxu0 0.0
    %1501 = vmatprep.subr.mxu0 0.0
    %1502 = vmatpush1.msra.mxu0 0.0
    %1503 = vmatprep.subr.mxu0 0.0
    %1504 = vmatpush1.msra.mxu0 0.0
    %1505 = vmatprep.subr.mxu0 0.0
    %1506 = vmatpush1.msra.mxu0 0.0
    %1507 = vmatprep.subr.mxu0 0.0
    %1508 = vmatpush1.msra.mxu0 0.0
    %1509 = vmatprep.mubr.f32.mxu0 0.0
    %1510 = vmatmul.mubr.f32.gmra.mrb[0].mxu0 %v1443
    %v1511 = vpop.f32.mrb[0].mxu0
    %v1512 = vadd.f32 0.0, %v1511
    %v1513 = vpop.f32.mrb[0].mxu0
    %1514 = vdwg.mxu0
    %1517 = vrot.lane.b32.xlu0 %v1132, 8
    %v1518 = vpop.permute.xlu0 %1517
    %1519 = vrot.lane.b32.xlu0 %v1208, 8
    %v1520 = vpop.permute.xlu0 %1519
    %1525 = vrot.lane.b32.xlu0 %v1284, 16
    %v1526 = vpop.permute.xlu0 %1525
    %1527 = vrot.lane.b32.xlu0 %v1360, 16
    %v1528 = vpop.permute.xlu0 %1527
    %1533 = vrot.lane.b32.xlu0 %v1436, 24
    %v1534 = vpop.permute.xlu0 %1533
    %1535 = vrot.lane.b32.xlu0 %v1512, 24
    %v1536 = vpop.permute.xlu0 %1535
    %v1539 = vsel %vm244, %v980, %v1518
    %v1540 = vsel %vm244, %v1056, %v1520
    %vm1541 = vcmask 130048
    %v1542 = vsel %vm1541, %v1539, %v1526
    %v1543 = vsel %vm1541, %v1540, %v1528
    %vm1544 = vcmask 195584
    %v1545 = vsel %vm1544, %v1542, %v1534
    %v1546 = vsel %vm1544, %v1543, %v1536
    %1551 = vrot.lane.b32.xlu0 %v85, 32
    %v1552 = vpop.permute.xlu0 %1551
    %1553 = vrot.lane.b32.xlu0 %v86, 32
    %v1554 = vpop.permute.xlu0 %1553
    %1555 = vrot.lane.b32.xlu0 %v87, 32
    %v1556 = vpop.permute.xlu0 %1555
    %1557 = vrot.lane.b32.xlu0 %v88, 32
    %v1558 = vpop.permute.xlu0 %1557
    %v1564 = vsel %vm89, %v1545, 0
    %v1567 = vsel %vm89, %v1546, 0
    %1569 = vmatprep.subr.mxu0 0.0
    %1570 = vmatpush1.msra.mxu0 %v1552
    %1571 = vmatprep.subr.mxu0 0.0
    %1572 = vmatpush1.msra.mxu0 %v1554
    %1573 = vmatprep.subr.mxu0 0.0
    %1574 = vmatpush1.msra.mxu0 %v1556
    %1575 = vmatprep.subr.mxu0 0.0
    %1576 = vmatpush1.msra.mxu0 %v1558
    %1577 = vmatprep.subr.mxu0 0.0
    %1578 = vmatpush1.msra.mxu0 0.0
    %1579 = vmatprep.subr.mxu0 0.0
    %1580 = vmatpush1.msra.mxu0 0.0
    %1581 = vmatprep.subr.mxu0 0.0
    %1582 = vmatpush1.msra.mxu0 0.0
    %1583 = vmatprep.subr.mxu0 0.0
    %1584 = vmatpush1.msra.mxu0 0.0
    %1585 = vmatprep.subr.mxu0 0.0
    %1586 = vmatpush1.msra.mxu0 0.0
    %1587 = vmatprep.subr.mxu0 0.0
    %1588 = vmatpush1.msra.mxu0 0.0
    %1589 = vmatprep.subr.mxu0 0.0
    %1590 = vmatpush1.msra.mxu0 0.0
    %1591 = vmatprep.subr.mxu0 0.0
    %1592 = vmatpush1.msra.mxu0 0.0
    %1593 = vmatprep.subr.mxu0 0.0
    %1594 = vmatpush1.msra.mxu0 0.0
    %1595 = vmatprep.subr.mxu0 0.0
    %1596 = vmatpush1.msra.mxu0 0.0
    %1597 = vmatprep.subr.mxu0 0.0
    %1598 = vmatpush1.msra.mxu0 0.0
    %1599 = vmatprep.subr.mxu0 0.0
    %1600 = vmatpush1.msra.mxu0 0.0
    %1601 = vmatprep.subr.mxu0 0.0
    %1602 = vmatpush1.msra.mxu0 0.0
    %1603 = vmatprep.subr.mxu0 0.0
    %1604 = vmatpush1.msra.mxu0 0.0
    %1605 = vmatprep.subr.mxu0 0.0
    %1606 = vmatpush1.msra.mxu0 0.0
    %1607 = vmatprep.subr.mxu0 0.0
    %1608 = vmatpush1.msra.mxu0 0.0
    %1609 = vmatprep.subr.mxu0 0.0
    %1610 = vmatpush1.msra.mxu0 0.0
    %1611 = vmatprep.subr.mxu0 0.0
    %1612 = vmatpush1.msra.mxu0 0.0
    %1613 = vmatprep.subr.mxu0 0.0
    %1614 = vmatpush1.msra.mxu0 0.0
    %1615 = vmatprep.subr.mxu0 0.0
    %1616 = vmatpush1.msra.mxu0 0.0
    %1617 = vmatprep.subr.mxu0 0.0
    %1618 = vmatpush1.msra.mxu0 0.0
    %1619 = vmatprep.subr.mxu0 0.0
    %1620 = vmatpush1.msra.mxu0 0.0
    %1621 = vmatprep.subr.mxu0 0.0
    %1622 = vmatpush1.msra.mxu0 0.0
    %1623 = vmatprep.subr.mxu0 0.0
    %1624 = vmatpush1.msra.mxu0 0.0
    %1625 = vmatprep.subr.mxu0 0.0
    %1626 = vmatpush1.msra.mxu0 0.0
    %1627 = vmatprep.subr.mxu0 0.0
    %1628 = vmatpush1.msra.mxu0 0.0
    %1629 = vmatprep.subr.mxu0 0.0
    %1630 = vmatpush1.msra.mxu0 0.0
    %1631 = vmatprep.subr.mxu0 0.0
    %1632 = vmatpush1.msra.mxu0 0.0
    %1633 = vmatprep.mubr.f32.mxu0 0.0
    %1634 = vmatmul.mubr.f32.gmra.mrb[0].mxu0 %v1564
    %v1635 = vpop.f32.mrb[0].mxu0
    %v1636 = vadd.f32 0.0, %v1635
    %v1637 = vpop.f32.mrb[0].mxu0
    %1638 = vmatprep.mubr.f32.mxu0 0.0
    %1639 = vmatmul.mubr.f32.gmra.mrb[0].mxu0 %v1567
    %v1640 = vpop.f32.mrb[0].mxu0
    %v1641 = vadd.f32 0.0, %v1640
    %v1642 = vpop.f32.mrb[0].mxu0
    %1643 = vdwg.mxu0
    %v1644 = vadd.f32 %v83, %v1636
    %v1645 = vadd.f32 %v84, %v1641
    %1647 = vrot.lane.b32.xlu0 %v146, 32
    %v1648 = vpop.permute.xlu0 %1647
    %v1650 = vadd.f32 %v1644, %v1648
    %v1651 = vadd.f32 %v1645, %v1648
    %v1652 = vsel %vm89, %v1650, 0.0
    %1653 = vadd.xlane.f32.xlu0 %v1652
    %v1654 = vpop.xlane.xlu0 %1653
    %v1655 = vsel %vm89, %v1651, 0.0
    %1656 = vadd.xlane.f32.xlu0 %v1655
    %v1657 = vpop.xlane.xlu0 %1656
    %v1658 = vmul.f32 %v1654, %v96
    %v1659 = vmul.f32 %v1657, %v96
    %v1660 = vsub.f32 %v1650, %v1658
    %v1661 = vsub.f32 %v1651, %v1659
    %v1662 = vmul.f32 %v1660, %v1660
    %v1663 = vmul.f32 %v1661, %v1661
    %v1664 = vsel %vm89, %v1662, 0.0
    %1665 = vadd.xlane.f32.xlu0 %v1664
    %v1666 = vpop.xlane.xlu0 %1665
    %v1667 = vsel %vm89, %v1663, 0.0
    %1668 = vadd.xlane.f32.xlu0 %v1667
    %v1669 = vpop.xlane.xlu0 %1668
    %v1670 = vmul.f32 %v1666, 0.032258064
    %v1671 = vmul.f32 %v1669, 0.032258064
    %1674 = vrot.lane.b32.xlu0 %v1660, 64
    %v1675 = vpop.permute.xlu0 %1674
    %1676 = vrot.lane.b32.xlu0 %v1661, 64
    %v1677 = vpop.permute.xlu0 %1676
    %v1680 = vmul.f32 %v114, %v1675
    %v1681 = vmul.f32 %v114, %v1677
    %v1682 = vrsqrt.pop %v1670
    %v1683 = vmul.f32 %v1670, %v1682
    %vm1684 = vcmp.eq.f32.partialorder %v1670, inf
    %v1685 = vsel %vm1684, %v1670, %v1683
    %vm1686 = vcmp.eq.f32.partialorder %v1670, 0.0
    %v1687 = vand.u32 %v1670, 2147483648
    %v1688 = vsel %vm1686, %v1687, %v1685
    %v1689 = vrsqrt.pop %v1671
    %v1690 = vmul.f32 %v1671, %v1689
    %vm1691 = vcmp.eq.f32.partialorder %v1671, inf
    %v1692 = vsel %vm1691, %v1671, %v1690
    %vm1693 = vcmp.eq.f32.partialorder %v1671, 0.0
    %v1694 = vand.u32 %v1671, 2147483648
    %v1695 = vsel %vm1693, %v1694, %v1692
    %v1696 = vadd.f32 %v1688, 1e-06
    %v1697 = vadd.f32 %v1695, 1e-06
    %v1698 = vrcp.pop %v1696
    %v1699 = vmul.f32 %v1680, %v1698
    %v1700 = vrcp.pop %v1697
    %v1701 = vmul.f32 %v1681, %v1700
    %v1702 = vadd.f32 %v1699, %v139
    %v1703 = vadd.f32 %v1701, %v139
    %v1704 = vld [vmem:[#allocation8] sm:$0xff]
    %v1705 = vld [vmem:[#allocation8 + $0x8] sm:$0xff]
    %v1706 = vld [vmem:[#allocation8 + $0x10] sm:$0xff]
    %v1707 = vld [vmem:[#allocation8 + $0x18] sm:$0xff]
    %v1708 = vlaneseq
    %v1709 = vshrl.u32 %v1708, 7
    %v1710 = vsub.s32 2, %v1709
    %v1711 = vrot.slane %v76, %v1710
    %1714 = vrot.lane.b32.xlu0 %v1702, 64
    %v1715 = vpop.permute.xlu0 %1714
    %1716 = vrot.lane.b32.xlu0 %v1703, 64
    %v1717 = vpop.permute.xlu0 %1716
    %v1718 = vsel %vm89, %v1715, 0
    %v1720 = vsel %vm89, %v1717, 0
    %1722 = vmatprep.subr.mxu0 0.0
    %1723 = vmatpush1.msra.mxu0 %v1704
    %1724 = vmatprep.subr.mxu0 0.0
    %1725 = vmatpush1.msra.mxu0 %v1705
    %1726 = vmatprep.subr.mxu0 0.0
    %1727 = vmatpush1.msra.mxu0 %v1706
    %1728 = vmatprep.subr.mxu0 0.0
    %1729 = vmatpush1.msra.mxu0 %v1707
    %1730 = vmatprep.subr.mxu0 0.0
    %1731 = vmatpush1.msra.mxu0 0.0
    %1732 = vmatprep.subr.mxu0 0.0
    %1733 = vmatpush1.msra.mxu0 0.0
    %1734 = vmatprep.subr.mxu0 0.0
    %1735 = vmatpush1.msra.mxu0 0.0
    %1736 = vmatprep.subr.mxu0 0.0
    %1737 = vmatpush1.msra.mxu0 0.0
    %1738 = vmatprep.subr.mxu0 0.0
    %1739 = vmatpush1.msra.mxu0 0.0
    %1740 = vmatprep.subr.mxu0 0.0
    %1741 = vmatpush1.msra.mxu0 0.0
    %1742 = vmatprep.subr.mxu0 0.0
    %1743 = vmatpush1.msra.mxu0 0.0
    %1744 = vmatprep.subr.mxu0 0.0
    %1745 = vmatpush1.msra.mxu0 0.0
    %1746 = vmatprep.subr.mxu0 0.0
    %1747 = vmatpush1.msra.mxu0 0.0
    %1748 = vmatprep.subr.mxu0 0.0
    %1749 = vmatpush1.msra.mxu0 0.0
    %1750 = vmatprep.subr.mxu0 0.0
    %1751 = vmatpush1.msra.mxu0 0.0
    %1752 = vmatprep.subr.mxu0 0.0
    %1753 = vmatpush1.msra.mxu0 0.0
    %1754 = vmatprep.subr.mxu0 0.0
    %1755 = vmatpush1.msra.mxu0 0.0
    %1756 = vmatprep.subr.mxu0 0.0
    %1757 = vmatpush1.msra.mxu0 0.0
    %1758 = vmatprep.subr.mxu0 0.0
    %1759 = vmatpush1.msra.mxu0 0.0
    %1760 = vmatprep.subr.mxu0 0.0
    %1761 = vmatpush1.msra.mxu0 0.0
    %1762 = vmatprep.subr.mxu0 0.0
    %1763 = vmatpush1.msra.mxu0 0.0
    %1764 = vmatprep.subr.mxu0 0.0
    %1765 = vmatpush1.msra.mxu0 0.0
    %1766 = vmatprep.subr.mxu0 0.0
    %1767 = vmatpush1.msra.mxu0 0.0
    %1768 = vmatprep.subr.mxu0 0.0
    %1769 = vmatpush1.msra.mxu0 0.0
    %1770 = vmatprep.subr.mxu0 0.0
    %1771 = vmatpush1.msra.mxu0 0.0
    %1772 = vmatprep.subr.mxu0 0.0
    %1773 = vmatpush1.msra.mxu0 0.0
    %1774 = vmatprep.subr.mxu0 0.0
    %1775 = vmatpush1.msra.mxu0 0.0
    %1776 = vmatprep.subr.mxu0 0.0
    %1777 = vmatpush1.msra.mxu0 0.0
    %1778 = vmatprep.subr.mxu0 0.0
    %1779 = vmatpush1.msra.mxu0 0.0
    %1780 = vmatprep.subr.mxu0 0.0
    %1781 = vmatpush1.msra.mxu0 0.0
    %1782 = vmatprep.subr.mxu0 0.0
    %1783 = vmatpush1.msra.mxu0 0.0
    %1784 = vmatprep.subr.mxu0 0.0
    %1785 = vmatpush1.msra.mxu0 0.0
    %1786 = vmatprep.mubr.f32.mxu0 0.0
    %1787 = vmatmul.mubr.f32.gmra.mrb[0].mxu0 %v1718
    %v1788 = vpop.f32.mrb[0].mxu0
    %v1789 = vadd.f32 %v1711, %v1788
    %v1790 = vpop.f32.mrb[0].mxu0
    %1791 = vmatprep.mubr.f32.mxu0 0.0
    %1792 = vmatmul.mubr.f32.gmra.mrb[0].mxu0 %v1720
    %v1793 = vpop.f32.mrb[0].mxu0
    %v1794 = vadd.f32 %v1711, %v1793
    %v1795 = vpop.f32.mrb[0].mxu0
    %1796 = vdwg.mxu0
    %v1797 = vmax.f32 %v1789, 0.0
    %v1798 = vmax.f32 %v1794, 0.0
    %1803 = vrot.lane.b32.xlu0 %v1704, 64
    %v1804 = vpop.permute.xlu0 %1803
    %1805 = vrot.lane.b32.xlu0 %v1705, 64
    %v1806 = vpop.permute.xlu0 %1805
    %1807 = vrot.lane.b32.xlu0 %v1706, 64
    %v1808 = vpop.permute.xlu0 %1807
    %1809 = vrot.lane.b32.xlu0 %v1707, 64
    %v1810 = vpop.permute.xlu0 %1809
    %1812 = vrot.lane.b32.xlu0 %v1711, 64
    %v1813 = vpop.permute.xlu0 %1812
    %vm1815 = vcmask 523264
    %v1817 = vsel %vm1815, %v1797, 0
    %v1820 = vsel %vm1815, %v1798, 0
    %v1822 = vsel %vm1815, %v1804, 0
    %v1824 = vsel %vm1815, %v1806, 0
    %v1826 = vsel %vm1815, %v1808, 0
    %v1828 = vsel %vm1815, %v1810, 0
    %1830 = vmatprep.subr.mxu0 0.0
    %1831 = vmatpush1.xpose.msra.mxu0 %v1822
    %1832 = vmatprep.subr.mxu0 0.0
    %1833 = vmatpush1.xpose.msra.mxu0 %v1824
    %1834 = vmatprep.subr.mxu0 0.0
    %1835 = vmatpush1.xpose.msra.mxu0 %v1826
    %1836 = vmatprep.subr.mxu0 0.0
    %1837 = vmatpush1.xpose.msra.mxu0 %v1828
    %1838 = vmatprep.subr.mxu0 0.0
    %1839 = vmatpush1.xpose.msra.mxu0 0.0
    %1840 = vmatprep.subr.mxu0 0.0
    %1841 = vmatpush1.xpose.msra.mxu0 0.0
    %1842 = vmatprep.subr.mxu0 0.0
    %1843 = vmatpush1.xpose.msra.mxu0 0.0
    %1844 = vmatprep.subr.mxu0 0.0
    %1845 = vmatpush1.xpose.msra.mxu0 0.0
    %1846 = vmatprep.subr.mxu0 0.0
    %1847 = vmatpush1.xpose.msra.mxu0 0.0
    %1848 = vmatprep.subr.mxu0 0.0
    %1849 = vmatpush1.xpose.msra.mxu0 0.0
    %1850 = vmatprep.subr.mxu0 0.0
    %1851 = vmatpush1.xpose.msra.mxu0 0.0
    %1852 = vmatprep.subr.mxu0 0.0
    %1853 = vmatpush1.xpose.msra.mxu0 0.0
    %1854 = vmatprep.subr.mxu0 0.0
    %1855 = vmatpush1.xpose.msra.mxu0 0.0
    %1856 = vmatprep.subr.mxu0 0.0
    %1857 = vmatpush1.xpose.msra.mxu0 0.0
    %1858 = vmatprep.subr.mxu0 0.0
    %1859 = vmatpush1.xpose.msra.mxu0 0.0
    %1860 = vmatprep.subr.mxu0 0.0
    %1861 = vmatpush1.xpose.msra.mxu0 0.0
    %1862 = vmatprep.subr.mxu0 0.0
    %1863 = vmatpush1.xpose.msra.mxu0 0.0
    %1864 = vmatprep.subr.mxu0 0.0
    %1865 = vmatpush1.xpose.msra.mxu0 0.0
    %1866 = vmatprep.subr.mxu0 0.0
    %1867 = vmatpush1.xpose.msra.mxu0 0.0
    %1868 = vmatprep.subr.mxu0 0.0
    %1869 = vmatpush1.xpose.msra.mxu0 0.0
    %1870 = vmatprep.subr.mxu0 0.0
    %1871 = vmatpush1.xpose.msra.mxu0 0.0
    %1872 = vmatprep.subr.mxu0 0.0
    %1873 = vmatpush1.xpose.msra.mxu0 0.0
    %1874 = vmatprep.subr.mxu0 0.0
    %1875 = vmatpush1.xpose.msra.mxu0 0.0
    %1876 = vmatprep.subr.mxu0 0.0
    %1877 = vmatpush1.xpose.msra.mxu0 0.0
    %1878 = vmatprep.subr.mxu0 0.0
    %1879 = vmatpush1.xpose.msra.mxu0 0.0
    %1880 = vmatprep.subr.mxu0 0.0
    %1881 = vmatpush1.xpose.msra.mxu0 0.0
    %1882 = vmatprep.subr.mxu0 0.0
    %1883 = vmatpush1.xpose.msra.mxu0 0.0
    %1884 = vmatprep.subr.mxu0 0.0
    %1885 = vmatpush1.xpose.msra.mxu0 0.0
    %1886 = vmatprep.subr.mxu0 0.0
    %1887 = vmatpush1.xpose.msra.mxu0 0.0
    %1888 = vmatprep.subr.mxu0 0.0
    %1889 = vmatpush1.xpose.msra.mxu0 0.0
    %1890 = vmatprep.subr.mxu0 0.0
    %1891 = vmatpush1.xpose.msra.mxu0 0.0
    %1892 = vmatprep.subr.mxu0 0.0
    %1893 = vmatpush1.xpose.msra.mxu0 0.0
    %1894 = vmatprep.mubr.f32.mxu0 0.0
    %1895 = vmatmul.mubr.f32.gmra.mrb[0].mxu0 %v1817
    %v1896 = vpop.f32.mrb[0].mxu0
    %v1897 = vadd.f32 %v1813, %v1896
    %v1898 = vpop.f32.mrb[0].mxu0
    %1899 = vmatprep.mubr.f32.mxu0 0.0
    %1900 = vmatmul.mubr.f32.gmra.mrb[0].mxu0 %v1820
    %v1901 = vpop.f32.mrb[0].mxu0
    %v1902 = vadd.f32 %v1813, %v1901
    %v1903 = vpop.f32.mrb[0].mxu0
    %1904 = vdwg.mxu0
    %v1905 = vadd.f32 %v1650, %v1897
    %v1906 = vadd.f32 %v1651, %v1902
    %v1907 = vsel %vm89, %v1905, 0.0
    %v1908 = vrot.slane %v1907, 4
    %v1909 = vadd.f32 %v1907, %v1908
    %v1910 = vrot.slane %v1909, 2
    %v1911 = vadd.f32 %v1909, %v1910
    %v1912 = vrot.slane %v1911, 1
    %v1913 = vadd.f32 %v1911, %v1912
    %v1914 = vsel %vm89, %v1906, 0.0
    %v1915 = vrot.slane %v1914, 4
    %v1916 = vadd.f32 %v1914, %v1915
    %v1917 = vrot.slane %v1916, 2
    %v1918 = vadd.f32 %v1916, %v1917
    %v1919 = vrot.slane %v1918, 1
    %v1920 = vadd.f32 %v1918, %v1919
    %v1921 = vrcp.pop 8.0
    %v1922 = vmul.f32 %v1913, %v1921
    %v1923 = vmul.f32 %v1920, %v1921
    %v1924 = vadd.f32 %v1905, %v1922
    %v1925 = vadd.f32 %v1906, %v1923
    %s1926 = scalar_lea.vmem [#allocation7], 32
    %v1927 = vld [vmem:[%s1926] sm:$0xff]
    %v1928 = vld [vmem:[%s1926 + $0x8] sm:$0xff]
    %v1929 = vld [vmem:[%s1926 + $0x10] sm:$0xff]
    %v1930 = vld [vmem:[%s1926 + $0x18] sm:$0xff]
    %v1931 = vsel %vm89, %v1924, 0.0
    %1932 = vadd.xlane.f32.xlu0 %v1931
    %v1933 = vpop.xlane.xlu0 %1932
    %v1934 = vsel %vm89, %v1925, 0.0
    %1935 = vadd.xlane.f32.xlu0 %v1934
    %v1936 = vpop.xlane.xlu0 %1935
    %v1937 = vmul.f32 %v1933, %v96
    %v1938 = vmul.f32 %v1936, %v96
    %v1939 = vsub.f32 %v1924, %v1937
    %v1940 = vsub.f32 %v1925, %v1938
    %v1941 = vmul.f32 %v1939, %v1939
    %v1942 = vmul.f32 %v1940, %v1940
    %v1943 = vsel %vm89, %v1941, 0.0
    %1944 = vadd.xlane.f32.xlu0 %v1943
    %v1945 = vpop.xlane.xlu0 %1944
    %v1946 = vsel %vm89, %v1942, 0.0
    %1947 = vadd.xlane.f32.xlu0 %v1946
    %v1948 = vpop.xlane.xlu0 %1947
    %v1949 = vmul.f32 %v1945, 0.032258064
    %v1950 = vmul.f32 %v1948, 0.032258064
    %v1951 = vlaneseq
    %v1952 = vshrl.u32 %v1951, 7
    %v1953 = vsub.s32 4, %v1952
    %v1954 = vrot.slane %v76, %v1953
    %v1955 = vmul.f32 %v1954, %v1939
    %v1956 = vmul.f32 %v1954, %v1940
    %v1957 = vrsqrt.pop %v1949
    %v1958 = vmul.f32 %v1949, %v1957
    %vm1959 = vcmp.eq.f32.partialorder %v1949, inf
    %v1960 = vsel %vm1959, %v1949, %v1958
    %vm1961 = vcmp.eq.f32.partialorder %v1949, 0.0
    %v1962 = vand.u32 %v1949, 2147483648
    %v1963 = vsel %vm1961, %v1962, %v1960
    %v1964 = vrsqrt.pop %v1950
    %v1965 = vmul.f32 %v1950, %v1964
    %vm1966 = vcmp.eq.f32.partialorder %v1950, inf
    %v1967 = vsel %vm1966, %v1950, %v1965
    %vm1968 = vcmp.eq.f32.partialorder %v1950, 0.0
    %v1969 = vand.u32 %v1950, 2147483648
    %v1970 = vsel %vm1968, %v1969, %v1967
    %v1971 = vadd.f32 %v1963, 1e-06
    %v1972 = vadd.f32 %v1970, 1e-06
    %v1973 = vrcp.pop %v1971
    %v1974 = vmul.f32 %v1955, %v1973
    %v1975 = vrcp.pop %v1972
    %v1976 = vmul.f32 %v1956, %v1975
    %1978 = vrot.lane.b32.xlu0 %v1954, 96
    %v1979 = vpop.permute.xlu0 %1978
    %v1981 = vadd.f32 %v1974, %v1979
    %v1982 = vadd.f32 %v1976, %v1979
    %v1983 = vlaneseq
    %v1984 = vshrl.u32 %v1983, 7
    %v1985 = vsub.s32 3, %v1984
    %v1986 = vrot.slane %v76, %v1985
    %v1988 = vsel %vm89, %v1981, 0
    %v1991 = vsel %vm89, %v1982, 0
    %1993 = vmatprep.subr.mxu0 0.0
    %1994 = vmatpush1.msra.mxu0 %v1927
    %1995 = vmatprep.subr.mxu0 0.0
    %1996 = vmatpush1.msra.mxu0 %v1928
    %1997 = vmatprep.subr.mxu0 0.0
    %1998 = vmatpush1.msra.mxu0 %v1929
    %1999 = vmatprep.subr.mxu0 0.0
    %2000 = vmatpush1.msra.mxu0 %v1930
    %2001 = vmatprep.subr.mxu0 0.0
    %2002 = vmatpush1.msra.mxu0 0.0
    %2003 = vmatprep.subr.mxu0 0.0
    %2004 = vmatpush1.msra.mxu0 0.0
    %2005 = vmatprep.subr.mxu0 0.0
    %2006 = vmatpush1.msra.mxu0 0.0
    %2007 = vmatprep.subr.mxu0 0.0
    %2008 = vmatpush1.msra.mxu0 0.0
    %2009 = vmatprep.subr.mxu0 0.0
    %2010 = vmatpush1.msra.mxu0 0.0
    %2011 = vmatprep.subr.mxu0 0.0
    %2012 = vmatpush1.msra.mxu0 0.0
    %2013 = vmatprep.subr.mxu0 0.0
    %2014 = vmatpush1.msra.mxu0 0.0
    %2015 = vmatprep.subr.mxu0 0.0
    %2016 = vmatpush1.msra.mxu0 0.0
    %2017 = vmatprep.subr.mxu0 0.0
    %2018 = vmatpush1.msra.mxu0 0.0
    %2019 = vmatprep.subr.mxu0 0.0
    %2020 = vmatpush1.msra.mxu0 0.0
    %2021 = vmatprep.subr.mxu0 0.0
    %2022 = vmatpush1.msra.mxu0 0.0
    %2023 = vmatprep.subr.mxu0 0.0
    %2024 = vmatpush1.msra.mxu0 0.0
    %2025 = vmatprep.subr.mxu0 0.0
    %2026 = vmatpush1.msra.mxu0 0.0
    %2027 = vmatprep.subr.mxu0 0.0
    %2028 = vmatpush1.msra.mxu0 0.0
    %2029 = vmatprep.subr.mxu0 0.0
    %2030 = vmatpush1.msra.mxu0 0.0
    %2031 = vmatprep.subr.mxu0 0.0
    %2032 = vmatpush1.msra.mxu0 0.0
    %2033 = vmatprep.subr.mxu0 0.0
    %2034 = vmatpush1.msra.mxu0 0.0
    %2035 = vmatprep.subr.mxu0 0.0
    %2036 = vmatpush1.msra.mxu0 0.0
    %2037 = vmatprep.subr.mxu0 0.0
    %2038 = vmatpush1.msra.mxu0 0.0
    %2039 = vmatprep.subr.mxu0 0.0
    %2040 = vmatpush1.msra.mxu0 0.0
    %2041 = vmatprep.subr.mxu0 0.0
    %2042 = vmatpush1.msra.mxu0 0.0
    %2043 = vmatprep.subr.mxu0 0.0
    %2044 = vmatpush1.msra.mxu0 0.0
    %2045 = vmatprep.subr.mxu0 0.0
    %2046 = vmatpush1.msra.mxu0 0.0
    %2047 = vmatprep.subr.mxu0 0.0
    %2048 = vmatpush1.msra.mxu0 0.0
    %2049 = vmatprep.subr.mxu0 0.0
    %2050 = vmatpush1.msra.mxu0 0.0
    %2051 = vmatprep.subr.mxu0 0.0
    %2052 = vmatpush1.msra.mxu0 0.0
    %2053 = vmatprep.subr.mxu0 0.0
    %2054 = vmatpush1.msra.mxu0 0.0
    %2055 = vmatprep.subr.mxu0 0.0
    %2056 = vmatpush1.msra.mxu0 0.0
    %2057 = vmatprep.mubr.f32.mxu0 0.0
    %2058 = vmatmul.mubr.f32.gmra.mrb[0].mxu0 %v1988
    %v2059 = vpop.f32.mrb[0].mxu0
    %v2060 = vadd.f32 %v1986, %v2059
    %v2061 = vpop.f32.mrb[0].mxu0
    %2062 = vmatprep.mubr.f32.mxu0 0.0
    %2063 = vmatmul.mubr.f32.gmra.mrb[0].mxu0 %v1991
    %v2064 = vpop.f32.mrb[0].mxu0
    %v2065 = vadd.f32 %v1986, %v2064
    %v2066 = vpop.f32.mrb[0].mxu0
    %2067 = vdwg.mxu0
    %2070 = vrot.lane.b32.xlu0 %v2060, 120
    %v2071 = vpop.permute.xlu0 %2070
    %2072 = vrot.lane.b32.xlu0 %v2065, 120
    %v2073 = vpop.permute.xlu0 %2072
    %2074 = vrot.lane.b32.xlu0 %v2060, 112
    %v2075 = vpop.permute.xlu0 %2074
    %2076 = vrot.lane.b32.xlu0 %v2065, 112
    %v2077 = vpop.permute.xlu0 %2076
    %2078 = vrot.lane.b32.xlu0 %v2060, 104
    %v2079 = vpop.permute.xlu0 %2078
    %2080 = vrot.lane.b32.xlu0 %v2065, 104
    %v2081 = vpop.permute.xlu0 %2080
    %2082 = vrot.lane.b32.xlu0 %v2060, 96
    %v2083 = vpop.permute.xlu0 %2082
    %v2084 = vsel %vm244, %v2060, 0
    %v2086 = vsel %vm244, %v2083, 0
    %2088 = vmatprep.subr.mxu0 0.0
    %2089 = vmatpush1.xpose.msra.mxu0 %v2086
    %2090 = vmatprep.subr.mxu0 0.0
    %2091 = vmatpush1.xpose.msra.mxu0 0.0
    %2092 = vmatprep.subr.mxu0 0.0
    %2093 = vmatpush1.xpose.msra.mxu0 0.0
    %2094 = vmatprep.subr.mxu0 0.0
    %2095 = vmatpush1.xpose.msra.mxu0 0.0
    %2096 = vmatprep.subr.mxu0 0.0
    %2097 = vmatpush1.xpose.msra.mxu0 0.0
    %2098 = vmatprep.subr.mxu0 0.0
    %2099 = vmatpush1.xpose.msra.mxu0 0.0
    %2100 = vmatprep.subr.mxu0 0.0
    %2101 = vmatpush1.xpose.msra.mxu0 0.0
    %2102 = vmatprep.subr.mxu0 0.0
    %2103 = vmatpush1.xpose.msra.mxu0 0.0
    %2104 = vmatprep.subr.mxu0 0.0
    %2105 = vmatpush1.xpose.msra.mxu0 0.0
    %2106 = vmatprep.subr.mxu0 0.0
    %2107 = vmatpush1.xpose.msra.mxu0 0.0
    %2108 = vmatprep.subr.mxu0 0.0
    %2109 = vmatpush1.xpose.msra.mxu0 0.0
    %2110 = vmatprep.subr.mxu0 0.0
    %2111 = vmatpush1.xpose.msra.mxu0 0.0
    %2112 = vmatprep.subr.mxu0 0.0
    %2113 = vmatpush1.xpose.msra.mxu0 0.0
    %2114 = vmatprep.subr.mxu0 0.0
    %2115 = vmatpush1.xpose.msra.mxu0 0.0
    %2116 = vmatprep.subr.mxu0 0.0
    %2117 = vmatpush1.xpose.msra.mxu0 0.0
    %2118 = vmatprep.subr.mxu0 0.0
    %2119 = vmatpush1.xpose.msra.mxu0 0.0
    %2120 = vmatprep.subr.mxu0 0.0
    %2121 = vmatpush1.xpose.msra.mxu0 0.0
    %2122 = vmatprep.subr.mxu0 0.0
    %2123 = vmatpush1.xpose.msra.mxu0 0.0
    %2124 = vmatprep.subr.mxu0 0.0
    %2125 = vmatpush1.xpose.msra.mxu0 0.0
    %2126 = vmatprep.subr.mxu0 0.0
    %2127 = vmatpush1.xpose.msra.mxu0 0.0
    %2128 = vmatprep.subr.mxu0 0.0
    %2129 = vmatpush1.xpose.msra.mxu0 0.0
    %2130 = vmatprep.subr.mxu0 0.0
    %2131 = vmatpush1.xpose.msra.mxu0 0.0
    %2132 = vmatprep.subr.mxu0 0.0
    %2133 = vmatpush1.xpose.msra.mxu0 0.0
    %2134 = vmatprep.subr.mxu0 0.0
    %2135 = vmatpush1.xpose.msra.mxu0 0.0
    %2136 = vmatprep.subr.mxu0 0.0
    %2137 = vmatpush1.xpose.msra.mxu0 0.0
    %2138 = vmatprep.subr.mxu0 0.0
    %2139 = vmatpush1.xpose.msra.mxu0 0.0
    %2140 = vmatprep.subr.mxu0 0.0
    %2141 = vmatpush1.xpose.msra.mxu0 0.0
    %2142 = vmatprep.subr.mxu0 0.0
    %2143 = vmatpush1.xpose.msra.mxu0 0.0
    %2144 = vmatprep.subr.mxu0 0.0
    %2145 = vmatpush1.xpose.msra.mxu0 0.0
    %2146 = vmatprep.subr.mxu0 0.0
    %2147 = vmatpush1.xpose.msra.mxu0 0.0
    %2148 = vmatprep.subr.mxu0 0.0
    %2149 = vmatpush1.xpose.msra.mxu0 0.0
    %2150 = vmatprep.subr.mxu0 0.0
    %2151 = vmatpush1.xpose.msra.mxu0 0.0
    %2152 = vmatprep.mubr.f32.mxu0 0.0
    %2153 = vmatmul.mubr.f32.gmra.mrb[0].mxu0 %v2084
    %v2154 = vpop.f32.mrb[0].mxu0
    %v2155 = vadd.f32 0.0, %v2154
    %v2156 = vpop.f32.mrb[0].mxu0
    %2157 = vdwg.mxu0
    %2158 = vrot.lane.b32.xlu0 %v2065, 96
    %v2159 = vpop.permute.xlu0 %2158
    %v2160 = vsel %vm244, %v2065, 0
    %v2162 = vsel %vm244, %v2159, 0
    %2164 = vmatprep.subr.mxu0 0.0
    %2165 = vmatpush1.xpose.msra.mxu0 %v2162
    %2166 = vmatprep.subr.mxu0 0.0
    %2167 = vmatpush1.xpose.msra.mxu0 0.0
    %2168 = vmatprep.subr.mxu0 0.0
    %2169 = vmatpush1.xpose.msra.mxu0 0.0
    %2170 = vmatprep.subr.mxu0 0.0
    %2171 = vmatpush1.xpose.msra.mxu0 0.0
    %2172 = vmatprep.subr.mxu0 0.0
    %2173 = vmatpush1.xpose.msra.mxu0 0.0
    %2174 = vmatprep.subr.mxu0 0.0
    %2175 = vmatpush1.xpose.msra.mxu0 0.0
    %2176 = vmatprep.subr.mxu0 0.0
    %2177 = vmatpush1.xpose.msra.mxu0 0.0
    %2178 = vmatprep.subr.mxu0 0.0
    %2179 = vmatpush1.xpose.msra.mxu0 0.0
    %2180 = vmatprep.subr.mxu0 0.0
    %2181 = vmatpush1.xpose.msra.mxu0 0.0
    %2182 = vmatprep.subr.mxu0 0.0
    %2183 = vmatpush1.xpose.msra.mxu0 0.0
    %2184 = vmatprep.subr.mxu0 0.0
    %2185 = vmatpush1.xpose.msra.mxu0 0.0
    %2186 = vmatprep.subr.mxu0 0.0
    %2187 = vmatpush1.xpose.msra.mxu0 0.0
    %2188 = vmatprep.subr.mxu0 0.0
    %2189 = vmatpush1.xpose.msra.mxu0 0.0
    %2190 = vmatprep.subr.mxu0 0.0
    %2191 = vmatpush1.xpose.msra.mxu0 0.0
    %2192 = vmatprep.subr.mxu0 0.0
    %2193 = vmatpush1.xpose.msra.mxu0 0.0
    %2194 = vmatprep.subr.mxu0 0.0
    %2195 = vmatpush1.xpose.msra.mxu0 0.0
    %2196 = vmatprep.subr.mxu0 0.0
    %2197 = vmatpush1.xpose.msra.mxu0 0.0
    %2198 = vmatprep.subr.mxu0 0.0
    %2199 = vmatpush1.xpose.msra.mxu0 0.0
    %2200 = vmatprep.subr.mxu0 0.0
    %2201 = vmatpush1.xpose.msra.mxu0 0.0
    %2202 = vmatprep.subr.mxu0 0.0
    %2203 = vmatpush1.xpose.msra.mxu0 0.0
    %2204 = vmatprep.subr.mxu0 0.0
    %2205 = vmatpush1.xpose.msra.mxu0 0.0
    %2206 = vmatprep.subr.mxu0 0.0
    %2207 = vmatpush1.xpose.msra.mxu0 0.0
    %2208 = vmatprep.subr.mxu0 0.0
    %2209 = vmatpush1.xpose.msra.mxu0 0.0
    %2210 = vmatprep.subr.mxu0 0.0
    %2211 = vmatpush1.xpose.msra.mxu0 0.0
    %2212 = vmatprep.subr.mxu0 0.0
    %2213 = vmatpush1.xpose.msra.mxu0 0.0
    %2214 = vmatprep.subr.mxu0 0.0
    %2215 = vmatpush1.xpose.msra.mxu0 0.0
    %2216 = vmatprep.subr.mxu0 0.0
    %2217 = vmatpush1.xpose.msra.mxu0 0.0
    %2218 = vmatprep.subr.mxu0 0.0
    %2219 = vmatpush1.xpose.msra.mxu0 0.0
    %2220 = vmatprep.subr.mxu0 0.0
    %2221 = vmatpush1.xpose.msra.mxu0 0.0
    %2222 = vmatprep.subr.mxu0 0.0
    %2223 = vmatpush1.xpose.msra.mxu0 0.0
    %2224 = vmatprep.subr.mxu0 0.0
    %2225 = vmatpush1.xpose.msra.mxu0 0.0
    %2226 = vmatprep.subr.mxu0 0.0
    %2227 = vmatpush1.xpose.msra.mxu0 0.0
    %2228 = vmatprep.mubr.f32.mxu0 0.0
    %2229 = vmatmul.mubr.f32.gmra.mrb[0].mxu0 %v2160
    %v2230 = vpop.f32.mrb[0].mxu0
    %v2231 = vadd.f32 0.0, %v2230
    %v2232 = vpop.f32.mrb[0].mxu0
    %2233 = vdwg.mxu0
    %2234 = vrot.lane.b32.xlu0 %v2071, 96
    %v2235 = vpop.permute.xlu0 %2234
    %v2236 = vsel %vm244, %v2071, 0
    %v2238 = vsel %vm244, %v2235, 0
    %2240 = vmatprep.subr.mxu0 0.0
    %2241 = vmatpush1.xpose.msra.mxu0 %v2238
    %2242 = vmatprep.subr.mxu0 0.0
    %2243 = vmatpush1.xpose.msra.mxu0 0.0
    %2244 = vmatprep.subr.mxu0 0.0
    %2245 = vmatpush1.xpose.msra.mxu0 0.0
    %2246 = vmatprep.subr.mxu0 0.0
    %2247 = vmatpush1.xpose.msra.mxu0 0.0
    %2248 = vmatprep.subr.mxu0 0.0
    %2249 = vmatpush1.xpose.msra.mxu0 0.0
    %2250 = vmatprep.subr.mxu0 0.0
    %2251 = vmatpush1.xpose.msra.mxu0 0.0
    %2252 = vmatprep.subr.mxu0 0.0
    %2253 = vmatpush1.xpose.msra.mxu0 0.0
    %2254 = vmatprep.subr.mxu0 0.0
    %2255 = vmatpush1.xpose.msra.mxu0 0.0
    %2256 = vmatprep.subr.mxu0 0.0
    %2257 = vmatpush1.xpose.msra.mxu0 0.0
    %2258 = vmatprep.subr.mxu0 0.0
    %2259 = vmatpush1.xpose.msra.mxu0 0.0
    %2260 = vmatprep.subr.mxu0 0.0
    %2261 = vmatpush1.xpose.msra.mxu0 0.0
    %2262 = vmatprep.subr.mxu0 0.0
    %2263 = vmatpush1.xpose.msra.mxu0 0.0
    %2264 = vmatprep.subr.mxu0 0.0
    %2265 = vmatpush1.xpose.msra.mxu0 0.0
    %2266 = vmatprep.subr.mxu0 0.0
    %2267 = vmatpush1.xpose.msra.mxu0 0.0
    %2268 = vmatprep.subr.mxu0 0.0
    %2269 = vmatpush1.xpose.msra.mxu0 0.0
    %2270 = vmatprep.subr.mxu0 0.0
    %2271 = vmatpush1.xpose.msra.mxu0 0.0
    %2272 = vmatprep.subr.mxu0 0.0
    %2273 = vmatpush1.xpose.msra.mxu0 0.0
    %2274 = vmatprep.subr.mxu0 0.0
    %2275 = vmatpush1.xpose.msra.mxu0 0.0
    %2276 = vmatprep.subr.mxu0 0.0
    %2277 = vmatpush1.xpose.msra.mxu0 0.0
    %2278 = vmatprep.subr.mxu0 0.0
    %2279 = vmatpush1.xpose.msra.mxu0 0.0
    %2280 = vmatprep.subr.mxu0 0.0
    %2281 = vmatpush1.xpose.msra.mxu0 0.0
    %2282 = vmatprep.subr.mxu0 0.0
    %2283 = vmatpush1.xpose.msra.mxu0 0.0
    %2284 = vmatprep.subr.mxu0 0.0
    %2285 = vmatpush1.xpose.msra.mxu0 0.0
    %2286 = vmatprep.subr.mxu0 0.0
    %2287 = vmatpush1.xpose.msra.mxu0 0.0
    %2288 = vmatprep.subr.mxu0 0.0
    %2289 = vmatpush1.xpose.msra.mxu0 0.0
    %2290 = vmatprep.subr.mxu0 0.0
    %2291 = vmatpush1.xpose.msra.mxu0 0.0
    %2292 = vmatprep.subr.mxu0 0.0
    %2293 = vmatpush1.xpose.msra.mxu0 0.0
    %2294 = vmatprep.subr.mxu0 0.0
    %2295 = vmatpush1.xpose.msra.mxu0 0.0
    %2296 = vmatprep.subr.mxu0 0.0
    %2297 = vmatpush1.xpose.msra.mxu0 0.0
    %2298 = vmatprep.subr.mxu0 0.0
    %2299 = vmatpush1.xpose.msra.mxu0 0.0
    %2300 = vmatprep.subr.mxu0 0.0
    %2301 = vmatpush1.xpose.msra.mxu0 0.0
    %2302 = vmatprep.subr.mxu0 0.0
    %2303 = vmatpush1.xpose.msra.mxu0 0.0
    %2304 = vmatprep.mubr.f32.mxu0 0.0
    %2305 = vmatmul.mubr.f32.gmra.mrb[0].mxu0 %v2236
    %v2306 = vpop.f32.mrb[0].mxu0
    %v2307 = vadd.f32 0.0, %v2306
    %v2308 = vpop.f32.mrb[0].mxu0
    %2309 = vdwg.mxu0
    %2310 = vrot.lane.b32.xlu0 %v2073, 96
    %v2311 = vpop.permute.xlu0 %2310
    %v2312 = vsel %vm244, %v2073, 0
    %v2314 = vsel %vm244, %v2311, 0
    %2316 = vmatprep.subr.mxu0 0.0
    %2317 = vmatpush1.xpose.msra.mxu0 %v2314
    %2318 = vmatprep.subr.mxu0 0.0
    %2319 = vmatpush1.xpose.msra.mxu0 0.0
    %2320 = vmatprep.subr.mxu0 0.0
    %2321 = vmatpush1.xpose.msra.mxu0 0.0
    %2322 = vmatprep.subr.mxu0 0.0
    %2323 = vmatpush1.xpose.msra.mxu0 0.0
    %2324 = vmatprep.subr.mxu0 0.0
    %2325 = vmatpush1.xpose.msra.mxu0 0.0
    %2326 = vmatprep.subr.mxu0 0.0
    %2327 = vmatpush1.xpose.msra.mxu0 0.0
    %2328 = vmatprep.subr.mxu0 0.0
    %2329 = vmatpush1.xpose.msra.mxu0 0.0
    %2330 = vmatprep.subr.mxu0 0.0
    %2331 = vmatpush1.xpose.msra.mxu0 0.0
    %2332 = vmatprep.subr.mxu0 0.0
    %2333 = vmatpush1.xpose.msra.mxu0 0.0
    %2334 = vmatprep.subr.mxu0 0.0
    %2335 = vmatpush1.xpose.msra.mxu0 0.0
    %2336 = vmatprep.subr.mxu0 0.0
    %2337 = vmatpush1.xpose.msra.mxu0 0.0
    %2338 = vmatprep.subr.mxu0 0.0
    %2339 = vmatpush1.xpose.msra.mxu0 0.0
    %2340 = vmatprep.subr.mxu0 0.0
    %2341 = vmatpush1.xpose.msra.mxu0 0.0
    %2342 = vmatprep.subr.mxu0 0.0
    %2343 = vmatpush1.xpose.msra.mxu0 0.0
    %2344 = vmatprep.subr.mxu0 0.0
    %2345 = vmatpush1.xpose.msra.mxu0 0.0
    %2346 = vmatprep.subr.mxu0 0.0
    %2347 = vmatpush1.xpose.msra.mxu0 0.0
    %2348 = vmatprep.subr.mxu0 0.0
    %2349 = vmatpush1.xpose.msra.mxu0 0.0
    %2350 = vmatprep.subr.mxu0 0.0
    %2351 = vmatpush1.xpose.msra.mxu0 0.0
    %2352 = vmatprep.subr.mxu0 0.0
    %2353 = vmatpush1.xpose.msra.mxu0 0.0
    %2354 = vmatprep.subr.mxu0 0.0
    %2355 = vmatpush1.xpose.msra.mxu0 0.0
    %2356 = vmatprep.subr.mxu0 0.0
    %2357 = vmatpush1.xpose.msra.mxu0 0.0
    %2358 = vmatprep.subr.mxu0 0.0
    %2359 = vmatpush1.xpose.msra.mxu0 0.0
    %2360 = vmatprep.subr.mxu0 0.0
    %2361 = vmatpush1.xpose.msra.mxu0 0.0
    %2362 = vmatprep.subr.mxu0 0.0
    %2363 = vmatpush1.xpose.msra.mxu0 0.0
    %2364 = vmatprep.subr.mxu0 0.0
    %2365 = vmatpush1.xpose.msra.mxu0 0.0
    %2366 = vmatprep.subr.mxu0 0.0
    %2367 = vmatpush1.xpose.msra.mxu0 0.0
    %2368 = vmatprep.subr.mxu0 0.0
    %2369 = vmatpush1.xpose.msra.mxu0 0.0
    %2370 = vmatprep.subr.mxu0 0.0
    %2371 = vmatpush1.xpose.msra.mxu0 0.0
    %2372 = vmatprep.subr.mxu0 0.0
    %2373 = vmatpush1.xpose.msra.mxu0 0.0
    %2374 = vmatprep.subr.mxu0 0.0
    %2375 = vmatpush1.xpose.msra.mxu0 0.0
    %2376 = vmatprep.subr.mxu0 0.0
    %2377 = vmatpush1.xpose.msra.mxu0 0.0
    %2378 = vmatprep.subr.mxu0 0.0
    %2379 = vmatpush1.xpose.msra.mxu0 0.0
    %2380 = vmatprep.mubr.f32.mxu0 0.0
    %2381 = vmatmul.mubr.f32.gmra.mrb[0].mxu0 %v2312
    %v2382 = vpop.f32.mrb[0].mxu0
    %v2383 = vadd.f32 0.0, %v2382
    %v2384 = vpop.f32.mrb[0].mxu0
    %2385 = vdwg.mxu0
    %2386 = vrot.lane.b32.xlu0 %v2075, 96
    %v2387 = vpop.permute.xlu0 %2386
    %v2388 = vsel %vm244, %v2075, 0
    %v2390 = vsel %vm244, %v2387, 0
    %2392 = vmatprep.subr.mxu0 0.0
    %2393 = vmatpush1.xpose.msra.mxu0 %v2390
    %2394 = vmatprep.subr.mxu0 0.0
    %2395 = vmatpush1.xpose.msra.mxu0 0.0
    %2396 = vmatprep.subr.mxu0 0.0
    %2397 = vmatpush1.xpose.msra.mxu0 0.0
    %2398 = vmatprep.subr.mxu0 0.0
    %2399 = vmatpush1.xpose.msra.mxu0 0.0
    %2400 = vmatprep.subr.mxu0 0.0
    %2401 = vmatpush1.xpose.msra.mxu0 0.0
    %2402 = vmatprep.subr.mxu0 0.0
    %2403 = vmatpush1.xpose.msra.mxu0 0.0
    %2404 = vmatprep.subr.mxu0 0.0
    %2405 = vmatpush1.xpose.msra.mxu0 0.0
    %2406 = vmatprep.subr.mxu0 0.0
    %2407 = vmatpush1.xpose.msra.mxu0 0.0
    %2408 = vmatprep.subr.mxu0 0.0
    %2409 = vmatpush1.xpose.msra.mxu0 0.0
    %2410 = vmatprep.subr.mxu0 0.0
    %2411 = vmatpush1.xpose.msra.mxu0 0.0
    %2412 = vmatprep.subr.mxu0 0.0
    %2413 = vmatpush1.xpose.msra.mxu0 0.0
    %2414 = vmatprep.subr.mxu0 0.0
    %2415 = vmatpush1.xpose.msra.mxu0 0.0
    %2416 = vmatprep.subr.mxu0 0.0
    %2417 = vmatpush1.xpose.msra.mxu0 0.0
    %2418 = vmatprep.subr.mxu0 0.0
    %2419 = vmatpush1.xpose.msra.mxu0 0.0
    %2420 = vmatprep.subr.mxu0 0.0
    %2421 = vmatpush1.xpose.msra.mxu0 0.0
    %2422 = vmatprep.subr.mxu0 0.0
    %2423 = vmatpush1.xpose.msra.mxu0 0.0
    %2424 = vmatprep.subr.mxu0 0.0
    %2425 = vmatpush1.xpose.msra.mxu0 0.0
    %2426 = vmatprep.subr.mxu0 0.0
    %2427 = vmatpush1.xpose.msra.mxu0 0.0
    %2428 = vmatprep.subr.mxu0 0.0
    %2429 = vmatpush1.xpose.msra.mxu0 0.0
    %2430 = vmatprep.subr.mxu0 0.0
    %2431 = vmatpush1.xpose.msra.mxu0 0.0
    %2432 = vmatprep.subr.mxu0 0.0
    %2433 = vmatpush1.xpose.msra.mxu0 0.0
    %2434 = vmatprep.subr.mxu0 0.0
    %2435 = vmatpush1.xpose.msra.mxu0 0.0
    %2436 = vmatprep.subr.mxu0 0.0
    %2437 = vmatpush1.xpose.msra.mxu0 0.0
    %2438 = vmatprep.subr.mxu0 0.0
    %2439 = vmatpush1.xpose.msra.mxu0 0.0
    %2440 = vmatprep.subr.mxu0 0.0
    %2441 = vmatpush1.xpose.msra.mxu0 0.0
    %2442 = vmatprep.subr.mxu0 0.0
    %2443 = vmatpush1.xpose.msra.mxu0 0.0
    %2444 = vmatprep.subr.mxu0 0.0
    %2445 = vmatpush1.xpose.msra.mxu0 0.0
    %2446 = vmatprep.subr.mxu0 0.0
    %2447 = vmatpush1.xpose.msra.mxu0 0.0
    %2448 = vmatprep.subr.mxu0 0.0
    %2449 = vmatpush1.xpose.msra.mxu0 0.0
    %2450 = vmatprep.subr.mxu0 0.0
    %2451 = vmatpush1.xpose.msra.mxu0 0.0
    %2452 = vmatprep.subr.mxu0 0.0
    %2453 = vmatpush1.xpose.msra.mxu0 0.0
    %2454 = vmatprep.subr.mxu0 0.0
    %2455 = vmatpush1.xpose.msra.mxu0 0.0
    %2456 = vmatprep.mubr.f32.mxu0 0.0
    %2457 = vmatmul.mubr.f32.gmra.mrb[0].mxu0 %v2388
    %v2458 = vpop.f32.mrb[0].mxu0
    %v2459 = vadd.f32 0.0, %v2458
    %v2460 = vpop.f32.mrb[0].mxu0
    %2461 = vdwg.mxu0
    %2462 = vrot.lane.b32.xlu0 %v2077, 96
    %v2463 = vpop.permute.xlu0 %2462
    %v2464 = vsel %vm244, %v2077, 0
    %v2466 = vsel %vm244, %v2463, 0
    %2468 = vmatprep.subr.mxu0 0.0
    %2469 = vmatpush1.xpose.msra.mxu0 %v2466
    %2470 = vmatprep.subr.mxu0 0.0
    %2471 = vmatpush1.xpose.msra.mxu0 0.0
    %2472 = vmatprep.subr.mxu0 0.0
    %2473 = vmatpush1.xpose.msra.mxu0 0.0
    %2474 = vmatprep.subr.mxu0 0.0
    %2475 = vmatpush1.xpose.msra.mxu0 0.0
    %2476 = vmatprep.subr.mxu0 0.0
    %2477 = vmatpush1.xpose.msra.mxu0 0.0
    %2478 = vmatprep.subr.mxu0 0.0
    %2479 = vmatpush1.xpose.msra.mxu0 0.0
    %2480 = vmatprep.subr.mxu0 0.0
    %2481 = vmatpush1.xpose.msra.mxu0 0.0
    %2482 = vmatprep.subr.mxu0 0.0
    %2483 = vmatpush1.xpose.msra.mxu0 0.0
    %2484 = vmatprep.subr.mxu0 0.0
    %2485 = vmatpush1.xpose.msra.mxu0 0.0
    %2486 = vmatprep.subr.mxu0 0.0
    %2487 = vmatpush1.xpose.msra.mxu0 0.0
    %2488 = vmatprep.subr.mxu0 0.0
    %2489 = vmatpush1.xpose.msra.mxu0 0.0
    %2490 = vmatprep.subr.mxu0 0.0
    %2491 = vmatpush1.xpose.msra.mxu0 0.0
    %2492 = vmatprep.subr.mxu0 0.0
    %2493 = vmatpush1.xpose.msra.mxu0 0.0
    %2494 = vmatprep.subr.mxu0 0.0
    %2495 = vmatpush1.xpose.msra.mxu0 0.0
    %2496 = vmatprep.subr.mxu0 0.0
    %2497 = vmatpush1.xpose.msra.mxu0 0.0
    %2498 = vmatprep.subr.mxu0 0.0
    %2499 = vmatpush1.xpose.msra.mxu0 0.0
    %2500 = vmatprep.subr.mxu0 0.0
    %2501 = vmatpush1.xpose.msra.mxu0 0.0
    %2502 = vmatprep.subr.mxu0 0.0
    %2503 = vmatpush1.xpose.msra.mxu0 0.0
    %2504 = vmatprep.subr.mxu0 0.0
    %2505 = vmatpush1.xpose.msra.mxu0 0.0
    %2506 = vmatprep.subr.mxu0 0.0
    %2507 = vmatpush1.xpose.msra.mxu0 0.0
    %2508 = vmatprep.subr.mxu0 0.0
    %2509 = vmatpush1.xpose.msra.mxu0 0.0
    %2510 = vmatprep.subr.mxu0 0.0
    %2511 = vmatpush1.xpose.msra.mxu0 0.0
    %2512 = vmatprep.subr.mxu0 0.0
    %2513 = vmatpush1.xpose.msra.mxu0 0.0
    %2514 = vmatprep.subr.mxu0 0.0
    %2515 = vmatpush1.xpose.msra.mxu0 0.0
    %2516 = vmatprep.subr.mxu0 0.0
    %2517 = vmatpush1.xpose.msra.mxu0 0.0
    %2518 = vmatprep.subr.mxu0 0.0
    %2519 = vmatpush1.xpose.msra.mxu0 0.0
    %2520 = vmatprep.subr.mxu0 0.0
    %2521 = vmatpush1.xpose.msra.mxu0 0.0
    %2522 = vmatprep.subr.mxu0 0.0
    %2523 = vmatpush1.xpose.msra.mxu0 0.0
    %2524 = vmatprep.subr.mxu0 0.0
    %2525 = vmatpush1.xpose.msra.mxu0 0.0
    %2526 = vmatprep.subr.mxu0 0.0
    %2527 = vmatpush1.xpose.msra.mxu0 0.0
    %2528 = vmatprep.subr.mxu0 0.0
    %2529 = vmatpush1.xpose.msra.mxu0 0.0
    %2530 = vmatprep.subr.mxu0 0.0
    %2531 = vmatpush1.xpose.msra.mxu0 0.0
    %2532 = vmatprep.mubr.f32.mxu0 0.0
    %2533 = vmatmul.mubr.f32.gmra.mrb[0].mxu0 %v2464
    %v2534 = vpop.f32.mrb[0].mxu0
    %v2535 = vadd.f32 0.0, %v2534
    %v2536 = vpop.f32.mrb[0].mxu0
    %2537 = vdwg.mxu0
    %2538 = vrot.lane.b32.xlu0 %v2079, 96
    %v2539 = vpop.permute.xlu0 %2538
    %v2540 = vsel %vm244, %v2079, 0
    %v2542 = vsel %vm244, %v2539, 0
    %2544 = vmatprep.subr.mxu0 0.0
    %2545 = vmatpush1.xpose.msra.mxu0 %v2542
    %2546 = vmatprep.subr.mxu0 0.0
    %2547 = vmatpush1.xpose.msra.mxu0 0.0
    %2548 = vmatprep.subr.mxu0 0.0
    %2549 = vmatpush1.xpose.msra.mxu0 0.0
    %2550 = vmatprep.subr.mxu0 0.0
    %2551 = vmatpush1.xpose.msra.mxu0 0.0
    %2552 = vmatprep.subr.mxu0 0.0
    %2553 = vmatpush1.xpose.msra.mxu0 0.0
    %2554 = vmatprep.subr.mxu0 0.0
    %2555 = vmatpush1.xpose.msra.mxu0 0.0
    %2556 = vmatprep.subr.mxu0 0.0
    %2557 = vmatpush1.xpose.msra.mxu0 0.0
    %2558 = vmatprep.subr.mxu0 0.0
    %2559 = vmatpush1.xpose.msra.mxu0 0.0
    %2560 = vmatprep.subr.mxu0 0.0
    %2561 = vmatpush1.xpose.msra.mxu0 0.0
    %2562 = vmatprep.subr.mxu0 0.0
    %2563 = vmatpush1.xpose.msra.mxu0 0.0
    %2564 = vmatprep.subr.mxu0 0.0
    %2565 = vmatpush1.xpose.msra.mxu0 0.0
    %2566 = vmatprep.subr.mxu0 0.0
    %2567 = vmatpush1.xpose.msra.mxu0 0.0
    %2568 = vmatprep.subr.mxu0 0.0
    %2569 = vmatpush1.xpose.msra.mxu0 0.0
    %2570 = vmatprep.subr.mxu0 0.0
    %2571 = vmatpush1.xpose.msra.mxu0 0.0
    %2572 = vmatprep.subr.mxu0 0.0
    %2573 = vmatpush1.xpose.msra.mxu0 0.0
    %2574 = vmatprep.subr.mxu0 0.0
    %2575 = vmatpush1.xpose.msra.mxu0 0.0
    %2576 = vmatprep.subr.mxu0 0.0
    %2577 = vmatpush1.xpose.msra.mxu0 0.0
    %2578 = vmatprep.subr.mxu0 0.0
    %2579 = vmatpush1.xpose.msra.mxu0 0.0
    %2580 = vmatprep.subr.mxu0 0.0
    %2581 = vmatpush1.xpose.msra.mxu0 0.0
    %2582 = vmatprep.subr.mxu0 0.0
    %2583 = vmatpush1.xpose.msra.mxu0 0.0
    %2584 = vmatprep.subr.mxu0 0.0
    %2585 = vmatpush1.xpose.msra.mxu0 0.0
    %2586 = vmatprep.subr.mxu0 0.0
    %2587 = vmatpush1.xpose.msra.mxu0 0.0
    %2588 = vmatprep.subr.mxu0 0.0
    %2589 = vmatpush1.xpose.msra.mxu0 0.0
    %2590 = vmatprep.subr.mxu0 0.0
    %2591 = vmatpush1.xpose.msra.mxu0 0.0
    %2592 = vmatprep.subr.mxu0 0.0
    %2593 = vmatpush1.xpose.msra.mxu0 0.0
    %2594 = vmatprep.subr.mxu0 0.0
    %2595 = vmatpush1.xpose.msra.mxu0 0.0
    %2596 = vmatprep.subr.mxu0 0.0
    %2597 = vmatpush1.xpose.msra.mxu0 0.0
    %2598 = vmatprep.subr.mxu0 0.0
    %2599 = vmatpush1.xpose.msra.mxu0 0.0
    %2600 = vmatprep.subr.mxu0 0.0
    %2601 = vmatpush1.xpose.msra.mxu0 0.0
    %2602 = vmatprep.subr.mxu0 0.0
    %2603 = vmatpush1.xpose.msra.mxu0 0.0
    %2604 = vmatprep.subr.mxu0 0.0
    %2605 = vmatpush1.xpose.msra.mxu0 0.0
    %2606 = vmatprep.subr.mxu0 0.0
    %2607 = vmatpush1.xpose.msra.mxu0 0.0
    %2608 = vmatprep.mubr.f32.mxu0 0.0
    %2609 = vmatmul.mubr.f32.gmra.mrb[0].mxu0 %v2540
    %v2610 = vpop.f32.mrb[0].mxu0
    %v2611 = vadd.f32 0.0, %v2610
    %v2612 = vpop.f32.mrb[0].mxu0
    %2613 = vdwg.mxu0
    %2614 = vrot.lane.b32.xlu0 %v2081, 96
    %v2615 = vpop.permute.xlu0 %2614
    %v2616 = vsel %vm244, %v2081, 0
    %v2618 = vsel %vm244, %v2615, 0
    %2620 = vmatprep.subr.mxu0 0.0
    %2621 = vmatpush1.xpose.msra.mxu0 %v2618
    %2622 = vmatprep.subr.mxu0 0.0
    %2623 = vmatpush1.xpose.msra.mxu0 0.0
    %2624 = vmatprep.subr.mxu0 0.0
    %2625 = vmatpush1.xpose.msra.mxu0 0.0
    %2626 = vmatprep.subr.mxu0 0.0
    %2627 = vmatpush1.xpose.msra.mxu0 0.0
    %2628 = vmatprep.subr.mxu0 0.0
    %2629 = vmatpush1.xpose.msra.mxu0 0.0
    %2630 = vmatprep.subr.mxu0 0.0
    %2631 = vmatpush1.xpose.msra.mxu0 0.0
    %2632 = vmatprep.subr.mxu0 0.0
    %2633 = vmatpush1.xpose.msra.mxu0 0.0
    %2634 = vmatprep.subr.mxu0 0.0
    %2635 = vmatpush1.xpose.msra.mxu0 0.0
    %2636 = vmatprep.subr.mxu0 0.0
    %2637 = vmatpush1.xpose.msra.mxu0 0.0
    %2638 = vmatprep.subr.mxu0 0.0
    %2639 = vmatpush1.xpose.msra.mxu0 0.0
    %2640 = vmatprep.subr.mxu0 0.0
    %2641 = vmatpush1.xpose.msra.mxu0 0.0
    %2642 = vmatprep.subr.mxu0 0.0
    %2643 = vmatpush1.xpose.msra.mxu0 0.0
    %2644 = vmatprep.subr.mxu0 0.0
    %2645 = vmatpush1.xpose.msra.mxu0 0.0
    %2646 = vmatprep.subr.mxu0 0.0
    %2647 = vmatpush1.xpose.msra.mxu0 0.0
    %2648 = vmatprep.subr.mxu0 0.0
    %2649 = vmatpush1.xpose.msra.mxu0 0.0
    %2650 = vmatprep.subr.mxu0 0.0
    %2651 = vmatpush1.xpose.msra.mxu0 0.0
    %2652 = vmatprep.subr.mxu0 0.0
    %2653 = vmatpush1.xpose.msra.mxu0 0.0
    %2654 = vmatprep.subr.mxu0 0.0
    %2655 = vmatpush1.xpose.msra.mxu0 0.0
    %2656 = vmatprep.subr.mxu0 0.0
    %2657 = vmatpush1.xpose.msra.mxu0 0.0
    %2658 = vmatprep.subr.mxu0 0.0
    %2659 = vmatpush1.xpose.msra.mxu0 0.0
    %2660 = vmatprep.subr.mxu0 0.0
    %2661 = vmatpush1.xpose.msra.mxu0 0.0
    %2662 = vmatprep.subr.mxu0 0.0
    %2663 = vmatpush1.xpose.msra.mxu0 0.0
    %2664 = vmatprep.subr.mxu0 0.0
    %2665 = vmatpush1.xpose.msra.mxu0 0.0
    %2666 = vmatprep.subr.mxu0 0.0
    %2667 = vmatpush1.xpose.msra.mxu0 0.0
    %2668 = vmatprep.subr.mxu0 0.0
    %2669 = vmatpush1.xpose.msra.mxu0 0.0
    %2670 = vmatprep.subr.mxu0 0.0
    %2671 = vmatpush1.xpose.msra.mxu0 0.0
    %2672 = vmatprep.subr.mxu0 0.0
    %2673 = vmatpush1.xpose.msra.mxu0 0.0
    %2674 = vmatprep.subr.mxu0 0.0
    %2675 = vmatpush1.xpose.msra.mxu0 0.0
    %2676 = vmatprep.subr.mxu0 0.0
    %2677 = vmatpush1.xpose.msra.mxu0 0.0
    %2678 = vmatprep.subr.mxu0 0.0
    %2679 = vmatpush1.xpose.msra.mxu0 0.0
    %2680 = vmatprep.subr.mxu0 0.0
    %2681 = vmatpush1.xpose.msra.mxu0 0.0
    %2682 = vmatprep.subr.mxu0 0.0
    %2683 = vmatpush1.xpose.msra.mxu0 0.0
    %2684 = vmatprep.mubr.f32.mxu0 0.0
    %2685 = vmatmul.mubr.f32.gmra.mrb[0].mxu0 %v2616
    %v2686 = vpop.f32.mrb[0].mxu0
    %v2687 = vadd.f32 0.0, %v2686
    %v2688 = vpop.f32.mrb[0].mxu0
    %2689 = vdwg.mxu0
    %v2690 = vmul.f32 %v2155, 1.442695
    %v2691 = vpow.pop %v2690
    %v2692 = vmul.f32 %v2231, 1.442695
    %v2693 = vpow.pop %v2692
    %v2694 = vmul.f32 %v2307, 1.442695
    %v2695 = vpow.pop %v2694
    %v2696 = vmul.f32 %v2383, 1.442695
    %v2697 = vpow.pop %v2696
    %v2698 = vmul.f32 %v2459, 1.442695
    %v2699 = vpow.pop %v2698
    %v2700 = vmul.f32 %v2535, 1.442695
    %v2701 = vpow.pop %v2700
    %v2702 = vmul.f32 %v2611, 1.442695
    %v2703 = vpow.pop %v2702
    %v2704 = vmul.f32 %v2687, 1.442695
    %v2705 = vpow.pop %v2704
    %v2706 = vsel %vm244, %v2691, 0.0
    %2707 = vadd.xlane.f32.xlu0 %v2706
    %v2708 = vpop.xlane.xlu0 %2707
    %v2709 = vsel %vm244, %v2693, 0.0
    %2710 = vadd.xlane.f32.xlu0 %v2709
    %v2711 = vpop.xlane.xlu0 %2710
    %v2712 = vsel %vm244, %v2695, 0.0
    %2713 = vadd.xlane.f32.xlu0 %v2712
    %v2714 = vpop.xlane.xlu0 %2713
    %v2715 = vsel %vm244, %v2697, 0.0
    %2716 = vadd.xlane.f32.xlu0 %v2715
    %v2717 = vpop.xlane.xlu0 %2716
    %v2718 = vsel %vm244, %v2699, 0.0
    %2719 = vadd.xlane.f32.xlu0 %v2718
    %v2720 = vpop.xlane.xlu0 %2719
    %v2721 = vsel %vm244, %v2701, 0.0
    %2722 = vadd.xlane.f32.xlu0 %v2721
    %v2723 = vpop.xlane.xlu0 %2722
    %v2724 = vsel %vm244, %v2703, 0.0
    %2725 = vadd.xlane.f32.xlu0 %v2724
    %v2726 = vpop.xlane.xlu0 %2725
    %v2727 = vsel %vm244, %v2705, 0.0
    %2728 = vadd.xlane.f32.xlu0 %v2727
    %v2729 = vpop.xlane.xlu0 %2728
    %v2730 = vrcp.pop %v2708
    %v2731 = vrcp.pop %v2711
    %v2732 = vrcp.pop %v2714
    %v2733 = vrcp.pop %v2717
    %v2734 = vrcp.pop %v2720
    %v2735 = vrcp.pop %v2723
    %v2736 = vrcp.pop %v2726
    %v2737 = vrcp.pop %v2729
    %v2738 = vmul.f32 %v2691, %v2730
    %v2739 = vmul.f32 %v2693, %v2731
    %v2740 = vmul.f32 %v2695, %v2732
    %v2741 = vmul.f32 %v2697, %v2733
    %v2742 = vmul.f32 %v2699, %v2734
    %v2743 = vmul.f32 %v2701, %v2735
    %v2744 = vmul.f32 %v2703, %v2736
    %v2745 = vmul.f32 %v2705, %v2737
    %2746 = vrot.lane.b32.xlu0 %v2060, 64
    %v2747 = vpop.permute.xlu0 %2746
    %v2750 = vsel %vm244, %v2738, 0
    %2752 = vmatprep.subr.mxu0 0.0
    %2753 = vmatpush1.msra.mxu0 %v2747
    %2754 = vmatprep.subr.mxu0 0.0
    %2755 = vmatpush1.msra.mxu0 0.0
    %2756 = vmatprep.subr.mxu0 0.0
    %2757 = vmatpush1.msra.mxu0 0.0
    %2758 = vmatprep.subr.mxu0 0.0
    %2759 = vmatpush1.msra.mxu0 0.0
    %2760 = vmatprep.subr.mxu0 0.0
    %2761 = vmatpush1.msra.mxu0 0.0
    %2762 = vmatprep.subr.mxu0 0.0
    %2763 = vmatpush1.msra.mxu0 0.0
    %2764 = vmatprep.subr.mxu0 0.0
    %2765 = vmatpush1.msra.mxu0 0.0
    %2766 = vmatprep.subr.mxu0 0.0
    %2767 = vmatpush1.msra.mxu0 0.0
    %2768 = vmatprep.subr.mxu0 0.0
    %2769 = vmatpush1.msra.mxu0 0.0
    %2770 = vmatprep.subr.mxu0 0.0
    %2771 = vmatpush1.msra.mxu0 0.0
    %2772 = vmatprep.subr.mxu0 0.0
    %2773 = vmatpush1.msra.mxu0 0.0
    %2774 = vmatprep.subr.mxu0 0.0
    %2775 = vmatpush1.msra.mxu0 0.0
    %2776 = vmatprep.subr.mxu0 0.0
    %2777 = vmatpush1.msra.mxu0 0.0
    %2778 = vmatprep.subr.mxu0 0.0
    %2779 = vmatpush1.msra.mxu0 0.0
    %2780 = vmatprep.subr.mxu0 0.0
    %2781 = vmatpush1.msra.mxu0 0.0
    %2782 = vmatprep.subr.mxu0 0.0
    %2783 = vmatpush1.msra.mxu0 0.0
    %2784 = vmatprep.subr.mxu0 0.0
    %2785 = vmatpush1.msra.mxu0 0.0
    %2786 = vmatprep.subr.mxu0 0.0
    %2787 = vmatpush1.msra.mxu0 0.0
    %2788 = vmatprep.subr.mxu0 0.0
    %2789 = vmatpush1.msra.mxu0 0.0
    %2790 = vmatprep.subr.mxu0 0.0
    %2791 = vmatpush1.msra.mxu0 0.0
    %2792 = vmatprep.subr.mxu0 0.0
    %2793 = vmatpush1.msra.mxu0 0.0
    %2794 = vmatprep.subr.mxu0 0.0
    %2795 = vmatpush1.msra.mxu0 0.0
    %2796 = vmatprep.subr.mxu0 0.0
    %2797 = vmatpush1.msra.mxu0 0.0
    %2798 = vmatprep.subr.mxu0 0.0
    %2799 = vmatpush1.msra.mxu0 0.0
    %2800 = vmatprep.subr.mxu0 0.0
    %2801 = vmatpush1.msra.mxu0 0.0
    %2802 = vmatprep.subr.mxu0 0.0
    %2803 = vmatpush1.msra.mxu0 0.0
    %2804 = vmatprep.subr.mxu0 0.0
    %2805 = vmatpush1.msra.mxu0 0.0
    %2806 = vmatprep.subr.mxu0 0.0
    %2807 = vmatpush1.msra.mxu0 0.0
    %2808 = vmatprep.subr.mxu0 0.0
    %2809 = vmatpush1.msra.mxu0 0.0
    %2810 = vmatprep.subr.mxu0 0.0
    %2811 = vmatpush1.msra.mxu0 0.0
    %2812 = vmatprep.subr.mxu0 0.0
    %2813 = vmatpush1.msra.mxu0 0.0
    %2814 = vmatprep.subr.mxu0 0.0
    %2815 = vmatpush1.msra.mxu0 0.0
    %2816 = vmatprep.mubr.f32.mxu0 0.0
    %2817 = vmatmul.mubr.f32.gmra.mrb[0].mxu0 %v2750
    %v2818 = vpop.f32.mrb[0].mxu0
    %v2819 = vadd.f32 0.0, %v2818
    %v2820 = vpop.f32.mrb[0].mxu0
    %2821 = vdwg.mxu0
    %2822 = vrot.lane.b32.xlu0 %v2065, 64
    %v2823 = vpop.permute.xlu0 %2822
    %v2826 = vsel %vm244, %v2739, 0
    %2828 = vmatprep.subr.mxu0 0.0
    %2829 = vmatpush1.msra.mxu0 %v2823
    %2830 = vmatprep.subr.mxu0 0.0
    %2831 = vmatpush1.msra.mxu0 0.0
    %2832 = vmatprep.subr.mxu0 0.0
    %2833 = vmatpush1.msra.mxu0 0.0
    %2834 = vmatprep.subr.mxu0 0.0
    %2835 = vmatpush1.msra.mxu0 0.0
    %2836 = vmatprep.subr.mxu0 0.0
    %2837 = vmatpush1.msra.mxu0 0.0
    %2838 = vmatprep.subr.mxu0 0.0
    %2839 = vmatpush1.msra.mxu0 0.0
    %2840 = vmatprep.subr.mxu0 0.0
    %2841 = vmatpush1.msra.mxu0 0.0
    %2842 = vmatprep.subr.mxu0 0.0
    %2843 = vmatpush1.msra.mxu0 0.0
    %2844 = vmatprep.subr.mxu0 0.0
    %2845 = vmatpush1.msra.mxu0 0.0
    %2846 = vmatprep.subr.mxu0 0.0
    %2847 = vmatpush1.msra.mxu0 0.0
    %2848 = vmatprep.subr.mxu0 0.0
    %2849 = vmatpush1.msra.mxu0 0.0
    %2850 = vmatprep.subr.mxu0 0.0
    %2851 = vmatpush1.msra.mxu0 0.0
    %2852 = vmatprep.subr.mxu0 0.0
    %2853 = vmatpush1.msra.mxu0 0.0
    %2854 = vmatprep.subr.mxu0 0.0
    %2855 = vmatpush1.msra.mxu0 0.0
    %2856 = vmatprep.subr.mxu0 0.0
    %2857 = vmatpush1.msra.mxu0 0.0
    %2858 = vmatprep.subr.mxu0 0.0
    %2859 = vmatpush1.msra.mxu0 0.0
    %2860 = vmatprep.subr.mxu0 0.0
    %2861 = vmatpush1.msra.mxu0 0.0
    %2862 = vmatprep.subr.mxu0 0.0
    %2863 = vmatpush1.msra.mxu0 0.0
    %2864 = vmatprep.subr.mxu0 0.0
    %2865 = vmatpush1.msra.mxu0 0.0
    %2866 = vmatprep.subr.mxu0 0.0
    %2867 = vmatpush1.msra.mxu0 0.0
    %2868 = vmatprep.subr.mxu0 0.0
    %2869 = vmatpush1.msra.mxu0 0.0
    %2870 = vmatprep.subr.mxu0 0.0
    %2871 = vmatpush1.msra.mxu0 0.0
    %2872 = vmatprep.subr.mxu0 0.0
    %2873 = vmatpush1.msra.mxu0 0.0
    %2874 = vmatprep.subr.mxu0 0.0
    %2875 = vmatpush1.msra.mxu0 0.0
    %2876 = vmatprep.subr.mxu0 0.0
    %2877 = vmatpush1.msra.mxu0 0.0
    %2878 = vmatprep.subr.mxu0 0.0
    %2879 = vmatpush1.msra.mxu0 0.0
    %2880 = vmatprep.subr.mxu0 0.0
    %2881 = vmatpush1.msra.mxu0 0.0
    %2882 = vmatprep.subr.mxu0 0.0
    %2883 = vmatpush1.msra.mxu0 0.0
    %2884 = vmatprep.subr.mxu0 0.0
    %2885 = vmatpush1.msra.mxu0 0.0
    %2886 = vmatprep.subr.mxu0 0.0
    %2887 = vmatpush1.msra.mxu0 0.0
    %2888 = vmatprep.subr.mxu0 0.0
    %2889 = vmatpush1.msra.mxu0 0.0
    %2890 = vmatprep.subr.mxu0 0.0
    %2891 = vmatpush1.msra.mxu0 0.0
    %2892 = vmatprep.mubr.f32.mxu0 0.0
    %2893 = vmatmul.mubr.f32.gmra.mrb[0].mxu0 %v2826
    %v2894 = vpop.f32.mrb[0].mxu0
    %v2895 = vadd.f32 0.0, %v2894
    %v2896 = vpop.f32.mrb[0].mxu0
    %2897 = vdwg.mxu0
    %2898 = vrot.lane.b32.xlu0 %v2071, 64
    %v2899 = vpop.permute.xlu0 %2898
    %v2902 = vsel %vm244, %v2740, 0
    %2904 = vmatprep.subr.mxu0 0.0
    %2905 = vmatpush1.msra.mxu0 %v2899
    %2906 = vmatprep.subr.mxu0 0.0
    %2907 = vmatpush1.msra.mxu0 0.0
    %2908 = vmatprep.subr.mxu0 0.0
    %2909 = vmatpush1.msra.mxu0 0.0
    %2910 = vmatprep.subr.mxu0 0.0
    %2911 = vmatpush1.msra.mxu0 0.0
    %2912 = vmatprep.subr.mxu0 0.0
    %2913 = vmatpush1.msra.mxu0 0.0
    %2914 = vmatprep.subr.mxu0 0.0
    %2915 = vmatpush1.msra.mxu0 0.0
    %2916 = vmatprep.subr.mxu0 0.0
    %2917 = vmatpush1.msra.mxu0 0.0
    %2918 = vmatprep.subr.mxu0 0.0
    %2919 = vmatpush1.msra.mxu0 0.0
    %2920 = vmatprep.subr.mxu0 0.0
    %2921 = vmatpush1.msra.mxu0 0.0
    %2922 = vmatprep.subr.mxu0 0.0
    %2923 = vmatpush1.msra.mxu0 0.0
    %2924 = vmatprep.subr.mxu0 0.0
    %2925 = vmatpush1.msra.mxu0 0.0
    %2926 = vmatprep.subr.mxu0 0.0
    %2927 = vmatpush1.msra.mxu0 0.0
    %2928 = vmatprep.subr.mxu0 0.0
    %2929 = vmatpush1.msra.mxu0 0.0
    %2930 = vmatprep.subr.mxu0 0.0
    %2931 = vmatpush1.msra.mxu0 0.0
    %2932 = vmatprep.subr.mxu0 0.0
    %2933 = vmatpush1.msra.mxu0 0.0
    %2934 = vmatprep.subr.mxu0 0.0
    %2935 = vmatpush1.msra.mxu0 0.0
    %2936 = vmatprep.subr.mxu0 0.0
    %2937 = vmatpush1.msra.mxu0 0.0
    %2938 = vmatprep.subr.mxu0 0.0
    %2939 = vmatpush1.msra.mxu0 0.0
    %2940 = vmatprep.subr.mxu0 0.0
    %2941 = vmatpush1.msra.mxu0 0.0
    %2942 = vmatprep.subr.mxu0 0.0
    %2943 = vmatpush1.msra.mxu0 0.0
    %2944 = vmatprep.subr.mxu0 0.0
    %2945 = vmatpush1.msra.mxu0 0.0
    %2946 = vmatprep.subr.mxu0 0.0
    %2947 = vmatpush1.msra.mxu0 0.0
    %2948 = vmatprep.subr.mxu0 0.0
    %2949 = vmatpush1.msra.mxu0 0.0
    %2950 = vmatprep.subr.mxu0 0.0
    %2951 = vmatpush1.msra.mxu0 0.0
    %2952 = vmatprep.subr.mxu0 0.0
    %2953 = vmatpush1.msra.mxu0 0.0
    %2954 = vmatprep.subr.mxu0 0.0
    %2955 = vmatpush1.msra.mxu0 0.0
    %2956 = vmatprep.subr.mxu0 0.0
    %2957 = vmatpush1.msra.mxu0 0.0
    %2958 = vmatprep.subr.mxu0 0.0
    %2959 = vmatpush1.msra.mxu0 0.0
    %2960 = vmatprep.subr.mxu0 0.0
    %2961 = vmatpush1.msra.mxu0 0.0
    %2962 = vmatprep.subr.mxu0 0.0
    %2963 = vmatpush1.msra.mxu0 0.0
    %2964 = vmatprep.subr.mxu0 0.0
    %2965 = vmatpush1.msra.mxu0 0.0
    %2966 = vmatprep.subr.mxu0 0.0
    %2967 = vmatpush1.msra.mxu0 0.0
    %2968 = vmatprep.mubr.f32.mxu0 0.0
    %2969 = vmatmul.mubr.f32.gmra.mrb[0].mxu0 %v2902
    %v2970 = vpop.f32.mrb[0].mxu0
    %v2971 = vadd.f32 0.0, %v2970
    %v2972 = vpop.f32.mrb[0].mxu0
    %2973 = vdwg.mxu0
    %2974 = vrot.lane.b32.xlu0 %v2073, 64
    %v2975 = vpop.permute.xlu0 %2974
    %v2978 = vsel %vm244, %v2741, 0
    %2980 = vmatprep.subr.mxu0 0.0
    %2981 = vmatpush1.msra.mxu0 %v2975
    %2982 = vmatprep.subr.mxu0 0.0
    %2983 = vmatpush1.msra.mxu0 0.0
    %2984 = vmatprep.subr.mxu0 0.0
    %2985 = vmatpush1.msra.mxu0 0.0
    %2986 = vmatprep.subr.mxu0 0.0
    %2987 = vmatpush1.msra.mxu0 0.0
    %2988 = vmatprep.subr.mxu0 0.0
    %2989 = vmatpush1.msra.mxu0 0.0
    %2990 = vmatprep.subr.mxu0 0.0
    %2991 = vmatpush1.msra.mxu0 0.0
    %2992 = vmatprep.subr.mxu0 0.0
    %2993 = vmatpush1.msra.mxu0 0.0
    %2994 = vmatprep.subr.mxu0 0.0
    %2995 = vmatpush1.msra.mxu0 0.0
    %2996 = vmatprep.subr.mxu0 0.0
    %2997 = vmatpush1.msra.mxu0 0.0
    %2998 = vmatprep.subr.mxu0 0.0
    %2999 = vmatpush1.msra.mxu0 0.0
    %3000 = vmatprep.subr.mxu0 0.0
    %3001 = vmatpush1.msra.mxu0 0.0
    %3002 = vmatprep.subr.mxu0 0.0
    %3003 = vmatpush1.msra.mxu0 0.0
    %3004 = vmatprep.subr.mxu0 0.0
    %3005 = vmatpush1.msra.mxu0 0.0
    %3006 = vmatprep.subr.mxu0 0.0
    %3007 = vmatpush1.msra.mxu0 0.0
    %3008 = vmatprep.subr.mxu0 0.0
    %3009 = vmatpush1.msra.mxu0 0.0
    %3010 = vmatprep.subr.mxu0 0.0
    %3011 = vmatpush1.msra.mxu0 0.0
    %3012 = vmatprep.subr.mxu0 0.0
    %3013 = vmatpush1.msra.mxu0 0.0
    %3014 = vmatprep.subr.mxu0 0.0
    %3015 = vmatpush1.msra.mxu0 0.0
    %3016 = vmatprep.subr.mxu0 0.0
    %3017 = vmatpush1.msra.mxu0 0.0
    %3018 = vmatprep.subr.mxu0 0.0
    %3019 = vmatpush1.msra.mxu0 0.0
    %3020 = vmatprep.subr.mxu0 0.0
    %3021 = vmatpush1.msra.mxu0 0.0
    %3022 = vmatprep.subr.mxu0 0.0
    %3023 = vmatpush1.msra.mxu0 0.0
    %3024 = vmatprep.subr.mxu0 0.0
    %3025 = vmatpush1.msra.mxu0 0.0
    %3026 = vmatprep.subr.mxu0 0.0
    %3027 = vmatpush1.msra.mxu0 0.0
    %3028 = vmatprep.subr.mxu0 0.0
    %3029 = vmatpush1.msra.mxu0 0.0
    %3030 = vmatprep.subr.mxu0 0.0
    %3031 = vmatpush1.msra.mxu0 0.0
    %3032 = vmatprep.subr.mxu0 0.0
    %3033 = vmatpush1.msra.mxu0 0.0
    %3034 = vmatprep.subr.mxu0 0.0
    %3035 = vmatpush1.msra.mxu0 0.0
    %3036 = vmatprep.subr.mxu0 0.0
    %3037 = vmatpush1.msra.mxu0 0.0
    %3038 = vmatprep.subr.mxu0 0.0
    %3039 = vmatpush1.msra.mxu0 0.0
    %3040 = vmatprep.subr.mxu0 0.0
    %3041 = vmatpush1.msra.mxu0 0.0
    %3042 = vmatprep.subr.mxu0 0.0
    %3043 = vmatpush1.msra.mxu0 0.0
    %3044 = vmatprep.mubr.f32.mxu0 0.0
    %3045 = vmatmul.mubr.f32.gmra.mrb[0].mxu0 %v2978
    %v3046 = vpop.f32.mrb[0].mxu0
    %v3047 = vadd.f32 0.0, %v3046
    %v3048 = vpop.f32.mrb[0].mxu0
    %3049 = vdwg.mxu0
    %3050 = vrot.lane.b32.xlu0 %v2075, 64
    %v3051 = vpop.permute.xlu0 %3050
    %v3054 = vsel %vm244, %v2742, 0
    %3056 = vmatprep.subr.mxu0 0.0
    %3057 = vmatpush1.msra.mxu0 %v3051
    %3058 = vmatprep.subr.mxu0 0.0
    %3059 = vmatpush1.msra.mxu0 0.0
    %3060 = vmatprep.subr.mxu0 0.0
    %3061 = vmatpush1.msra.mxu0 0.0
    %3062 = vmatprep.subr.mxu0 0.0
    %3063 = vmatpush1.msra.mxu0 0.0
    %3064 = vmatprep.subr.mxu0 0.0
    %3065 = vmatpush1.msra.mxu0 0.0
    %3066 = vmatprep.subr.mxu0 0.0
    %3067 = vmatpush1.msra.mxu0 0.0
    %3068 = vmatprep.subr.mxu0 0.0
    %3069 = vmatpush1.msra.mxu0 0.0
    %3070 = vmatprep.subr.mxu0 0.0
    %3071 = vmatpush1.msra.mxu0 0.0
    %3072 = vmatprep.subr.mxu0 0.0
    %3073 = vmatpush1.msra.mxu0 0.0
    %3074 = vmatprep.subr.mxu0 0.0
    %3075 = vmatpush1.msra.mxu0 0.0
    %3076 = vmatprep.subr.mxu0 0.0
    %3077 = vmatpush1.msra.mxu0 0.0
    %3078 = vmatprep.subr.mxu0 0.0
    %3079 = vmatpush1.msra.mxu0 0.0
    %3080 = vmatprep.subr.mxu0 0.0
    %3081 = vmatpush1.msra.mxu0 0.0
    %3082 = vmatprep.subr.mxu0 0.0
    %3083 = vmatpush1.msra.mxu0 0.0
    %3084 = vmatprep.subr.mxu0 0.0
    %3085 = vmatpush1.msra.mxu0 0.0
    %3086 = vmatprep.subr.mxu0 0.0
    %3087 = vmatpush1.msra.mxu0 0.0
    %3088 = vmatprep.subr.mxu0 0.0
    %3089 = vmatpush1.msra.mxu0 0.0
    %3090 = vmatprep.subr.mxu0 0.0
    %3091 = vmatpush1.msra.mxu0 0.0
    %3092 = vmatprep.subr.mxu0 0.0
    %3093 = vmatpush1.msra.mxu0 0.0
    %3094 = vmatprep.subr.mxu0 0.0
    %3095 = vmatpush1.msra.mxu0 0.0
    %3096 = vmatprep.subr.mxu0 0.0
    %3097 = vmatpush1.msra.mxu0 0.0
    %3098 = vmatprep.subr.mxu0 0.0
    %3099 = vmatpush1.msra.mxu0 0.0
    %3100 = vmatprep.subr.mxu0 0.0
    %3101 = vmatpush1.msra.mxu0 0.0
    %3102 = vmatprep.subr.mxu0 0.0
    %3103 = vmatpush1.msra.mxu0 0.0
    %3104 = vmatprep.subr.mxu0 0.0
    %3105 = vmatpush1.msra.mxu0 0.0
    %3106 = vmatprep.subr.mxu0 0.0
    %3107 = vmatpush1.msra.mxu0 0.0
    %3108 = vmatprep.subr.mxu0 0.0
    %3109 = vmatpush1.msra.mxu0 0.0
    %3110 = vmatprep.subr.mxu0 0.0
    %3111 = vmatpush1.msra.mxu0 0.0
    %3112 = vmatprep.subr.mxu0 0.0
    %3113 = vmatpush1.msra.mxu0 0.0
    %3114 = vmatprep.subr.mxu0 0.0
    %3115 = vmatpush1.msra.mxu0 0.0
    %3116 = vmatprep.subr.mxu0 0.0
    %3117 = vmatpush1.msra.mxu0 0.0
    %3118 = vmatprep.subr.mxu0 0.0
    %3119 = vmatpush1.msra.mxu0 0.0
    %3120 = vmatprep.mubr.f32.mxu0 0.0
    %3121 = vmatmul.mubr.f32.gmra.mrb[0].mxu0 %v3054
    %v3122 = vpop.f32.mrb[0].mxu0
    %v3123 = vadd.f32 0.0, %v3122
    %v3124 = vpop.f32.mrb[0].mxu0
    %3125 = vdwg.mxu0
    %3126 = vrot.lane.b32.xlu0 %v2077, 64
    %v3127 = vpop.permute.xlu0 %3126
    %v3130 = vsel %vm244, %v2743, 0
    %3132 = vmatprep.subr.mxu0 0.0
    %3133 = vmatpush1.msra.mxu0 %v3127
    %3134 = vmatprep.subr.mxu0 0.0
    %3135 = vmatpush1.msra.mxu0 0.0
    %3136 = vmatprep.subr.mxu0 0.0
    %3137 = vmatpush1.msra.mxu0 0.0
    %3138 = vmatprep.subr.mxu0 0.0
    %3139 = vmatpush1.msra.mxu0 0.0
    %3140 = vmatprep.subr.mxu0 0.0
    %3141 = vmatpush1.msra.mxu0 0.0
    %3142 = vmatprep.subr.mxu0 0.0
    %3143 = vmatpush1.msra.mxu0 0.0
    %3144 = vmatprep.subr.mxu0 0.0
    %3145 = vmatpush1.msra.mxu0 0.0
    %3146 = vmatprep.subr.mxu0 0.0
    %3147 = vmatpush1.msra.mxu0 0.0
    %3148 = vmatprep.subr.mxu0 0.0
    %3149 = vmatpush1.msra.mxu0 0.0
    %3150 = vmatprep.subr.mxu0 0.0
    %3151 = vmatpush1.msra.mxu0 0.0
    %3152 = vmatprep.subr.mxu0 0.0
    %3153 = vmatpush1.msra.mxu0 0.0
    %3154 = vmatprep.subr.mxu0 0.0
    %3155 = vmatpush1.msra.mxu0 0.0
    %3156 = vmatprep.subr.mxu0 0.0
    %3157 = vmatpush1.msra.mxu0 0.0
    %3158 = vmatprep.subr.mxu0 0.0
    %3159 = vmatpush1.msra.mxu0 0.0
    %3160 = vmatprep.subr.mxu0 0.0
    %3161 = vmatpush1.msra.mxu0 0.0
    %3162 = vmatprep.subr.mxu0 0.0
    %3163 = vmatpush1.msra.mxu0 0.0
    %3164 = vmatprep.subr.mxu0 0.0
    %3165 = vmatpush1.msra.mxu0 0.0
    %3166 = vmatprep.subr.mxu0 0.0
    %3167 = vmatpush1.msra.mxu0 0.0
    %3168 = vmatprep.subr.mxu0 0.0
    %3169 = vmatpush1.msra.mxu0 0.0
    %3170 = vmatprep.subr.mxu0 0.0
    %3171 = vmatpush1.msra.mxu0 0.0
    %3172 = vmatprep.subr.mxu0 0.0
    %3173 = vmatpush1.msra.mxu0 0.0
    %3174 = vmatprep.subr.mxu0 0.0
    %3175 = vmatpush1.msra.mxu0 0.0
    %3176 = vmatprep.subr.mxu0 0.0
    %3177 = vmatpush1.msra.mxu0 0.0
    %3178 = vmatprep.subr.mxu0 0.0
    %3179 = vmatpush1.msra.mxu0 0.0
    %3180 = vmatprep.subr.mxu0 0.0
    %3181 = vmatpush1.msra.mxu0 0.0
    %3182 = vmatprep.subr.mxu0 0.0
    %3183 = vmatpush1.msra.mxu0 0.0
    %3184 = vmatprep.subr.mxu0 0.0
    %3185 = vmatpush1.msra.mxu0 0.0
    %3186 = vmatprep.subr.mxu0 0.0
    %3187 = vmatpush1.msra.mxu0 0.0
    %3188 = vmatprep.subr.mxu0 0.0
    %3189 = vmatpush1.msra.mxu0 0.0
    %3190 = vmatprep.subr.mxu0 0.0
    %3191 = vmatpush1.msra.mxu0 0.0
    %3192 = vmatprep.subr.mxu0 0.0
    %3193 = vmatpush1.msra.mxu0 0.0
    %3194 = vmatprep.subr.mxu0 0.0
    %3195 = vmatpush1.msra.mxu0 0.0
    %3196 = vmatprep.mubr.f32.mxu0 0.0
    %3197 = vmatmul.mubr.f32.gmra.mrb[0].mxu0 %v3130
    %v3198 = vpop.f32.mrb[0].mxu0
    %v3199 = vadd.f32 0.0, %v3198
    %v3200 = vpop.f32.mrb[0].mxu0
    %3201 = vdwg.mxu0
    %3202 = vrot.lane.b32.xlu0 %v2079, 64
    %v3203 = vpop.permute.xlu0 %3202
    %v3206 = vsel %vm244, %v2744, 0
    %3208 = vmatprep.subr.mxu0 0.0
    %3209 = vmatpush1.msra.mxu0 %v3203
    %3210 = vmatprep.subr.mxu0 0.0
    %3211 = vmatpush1.msra.mxu0 0.0
    %3212 = vmatprep.subr.mxu0 0.0
    %3213 = vmatpush1.msra.mxu0 0.0
    %3214 = vmatprep.subr.mxu0 0.0
    %3215 = vmatpush1.msra.mxu0 0.0
    %3216 = vmatprep.subr.mxu0 0.0
    %3217 = vmatpush1.msra.mxu0 0.0
    %3218 = vmatprep.subr.mxu0 0.0
    %3219 = vmatpush1.msra.mxu0 0.0
    %3220 = vmatprep.subr.mxu0 0.0
    %3221 = vmatpush1.msra.mxu0 0.0
    %3222 = vmatprep.subr.mxu0 0.0
    %3223 = vmatpush1.msra.mxu0 0.0
    %3224 = vmatprep.subr.mxu0 0.0
    %3225 = vmatpush1.msra.mxu0 0.0
    %3226 = vmatprep.subr.mxu0 0.0
    %3227 = vmatpush1.msra.mxu0 0.0
    %3228 = vmatprep.subr.mxu0 0.0
    %3229 = vmatpush1.msra.mxu0 0.0
    %3230 = vmatprep.subr.mxu0 0.0
    %3231 = vmatpush1.msra.mxu0 0.0
    %3232 = vmatprep.subr.mxu0 0.0
    %3233 = vmatpush1.msra.mxu0 0.0
    %3234 = vmatprep.subr.mxu0 0.0
    %3235 = vmatpush1.msra.mxu0 0.0
    %3236 = vmatprep.subr.mxu0 0.0
    %3237 = vmatpush1.msra.mxu0 0.0
    %3238 = vmatprep.subr.mxu0 0.0
    %3239 = vmatpush1.msra.mxu0 0.0
    %3240 = vmatprep.subr.mxu0 0.0
    %3241 = vmatpush1.msra.mxu0 0.0
    %3242 = vmatprep.subr.mxu0 0.0
    %3243 = vmatpush1.msra.mxu0 0.0
    %3244 = vmatprep.subr.mxu0 0.0
    %3245 = vmatpush1.msra.mxu0 0.0
    %3246 = vmatprep.subr.mxu0 0.0
    %3247 = vmatpush1.msra.mxu0 0.0
    %3248 = vmatprep.subr.mxu0 0.0
    %3249 = vmatpush1.msra.mxu0 0.0
    %3250 = vmatprep.subr.mxu0 0.0
    %3251 = vmatpush1.msra.mxu0 0.0
    %3252 = vmatprep.subr.mxu0 0.0
    %3253 = vmatpush1.msra.mxu0 0.0
    %3254 = vmatprep.subr.mxu0 0.0
    %3255 = vmatpush1.msra.mxu0 0.0
    %3256 = vmatprep.subr.mxu0 0.0
    %3257 = vmatpush1.msra.mxu0 0.0
    %3258 = vmatprep.subr.mxu0 0.0
    %3259 = vmatpush1.msra.mxu0 0.0
    %3260 = vmatprep.subr.mxu0 0.0
    %3261 = vmatpush1.msra.mxu0 0.0
    %3262 = vmatprep.subr.mxu0 0.0
    %3263 = vmatpush1.msra.mxu0 0.0
    %3264 = vmatprep.subr.mxu0 0.0
    %3265 = vmatpush1.msra.mxu0 0.0
    %3266 = vmatprep.subr.mxu0 0.0
    %3267 = vmatpush1.msra.mxu0 0.0
    %3268 = vmatprep.subr.mxu0 0.0
    %3269 = vmatpush1.msra.mxu0 0.0
    %3270 = vmatprep.subr.mxu0 0.0
    %3271 = vmatpush1.msra.mxu0 0.0
    %3272 = vmatprep.mubr.f32.mxu0 0.0
    %3273 = vmatmul.mubr.f32.gmra.mrb[0].mxu0 %v3206
    %v3274 = vpop.f32.mrb[0].mxu0
    %v3275 = vadd.f32 0.0, %v3274
    %v3276 = vpop.f32.mrb[0].mxu0
    %3277 = vdwg.mxu0
    %3278 = vrot.lane.b32.xlu0 %v2081, 64
    %v3279 = vpop.permute.xlu0 %3278
    %v3282 = vsel %vm244, %v2745, 0
    %3284 = vmatprep.subr.mxu0 0.0
    %3285 = vmatpush1.msra.mxu0 %v3279
    %3286 = vmatprep.subr.mxu0 0.0
    %3287 = vmatpush1.msra.mxu0 0.0
    %3288 = vmatprep.subr.mxu0 0.0
    %3289 = vmatpush1.msra.mxu0 0.0
    %3290 = vmatprep.subr.mxu0 0.0
    %3291 = vmatpush1.msra.mxu0 0.0
    %3292 = vmatprep.subr.mxu0 0.0
    %3293 = vmatpush1.msra.mxu0 0.0
    %3294 = vmatprep.subr.mxu0 0.0
    %3295 = vmatpush1.msra.mxu0 0.0
    %3296 = vmatprep.subr.mxu0 0.0
    %3297 = vmatpush1.msra.mxu0 0.0
    %3298 = vmatprep.subr.mxu0 0.0
    %3299 = vmatpush1.msra.mxu0 0.0
    %3300 = vmatprep.subr.mxu0 0.0
    %3301 = vmatpush1.msra.mxu0 0.0
    %3302 = vmatprep.subr.mxu0 0.0
    %3303 = vmatpush1.msra.mxu0 0.0
    %3304 = vmatprep.subr.mxu0 0.0
    %3305 = vmatpush1.msra.mxu0 0.0
    %3306 = vmatprep.subr.mxu0 0.0
    %3307 = vmatpush1.msra.mxu0 0.0
    %3308 = vmatprep.subr.mxu0 0.0
    %3309 = vmatpush1.msra.mxu0 0.0
    %3310 = vmatprep.subr.mxu0 0.0
    %3311 = vmatpush1.msra.mxu0 0.0
    %3312 = vmatprep.subr.mxu0 0.0
    %3313 = vmatpush1.msra.mxu0 0.0
    %3314 = vmatprep.subr.mxu0 0.0
    %3315 = vmatpush1.msra.mxu0 0.0
    %3316 = vmatprep.subr.mxu0 0.0
    %3317 = vmatpush1.msra.mxu0 0.0
    %3318 = vmatprep.subr.mxu0 0.0
    %3319 = vmatpush1.msra.mxu0 0.0
    %3320 = vmatprep.subr.mxu0 0.0
    %3321 = vmatpush1.msra.mxu0 0.0
    %3322 = vmatprep.subr.mxu0 0.0
    %3323 = vmatpush1.msra.mxu0 0.0
    %3324 = vmatprep.subr.mxu0 0.0
    %3325 = vmatpush1.msra.mxu0 0.0
    %3326 = vmatprep.subr.mxu0 0.0
    %3327 = vmatpush1.msra.mxu0 0.0
    %3328 = vmatprep.subr.mxu0 0.0
    %3329 = vmatpush1.msra.mxu0 0.0
    %3330 = vmatprep.subr.mxu0 0.0
    %3331 = vmatpush1.msra.mxu0 0.0
    %3332 = vmatprep.subr.mxu0 0.0
    %3333 = vmatpush1.msra.mxu0 0.0
    %3334 = vmatprep.subr.mxu0 0.0
    %3335 = vmatpush1.msra.mxu0 0.0
    %3336 = vmatprep.subr.mxu0 0.0
    %3337 = vmatpush1.msra.mxu0 0.0
    %3338 = vmatprep.subr.mxu0 0.0
    %3339 = vmatpush1.msra.mxu0 0.0
    %3340 = vmatprep.subr.mxu0 0.0
    %3341 = vmatpush1.msra.mxu0 0.0
    %3342 = vmatprep.subr.mxu0 0.0
    %3343 = vmatpush1.msra.mxu0 0.0
    %3344 = vmatprep.subr.mxu0 0.0
    %3345 = vmatpush1.msra.mxu0 0.0
    %3346 = vmatprep.subr.mxu0 0.0
    %3347 = vmatpush1.msra.mxu0 0.0
    %3348 = vmatprep.mubr.f32.mxu0 0.0
    %3349 = vmatmul.mubr.f32.gmra.mrb[0].mxu0 %v3282
    %v3350 = vpop.f32.mrb[0].mxu0
    %v3351 = vadd.f32 0.0, %v3350
    %v3352 = vpop.f32.mrb[0].mxu0
    %3353 = vdwg.mxu0
    %3356 = vrot.lane.b32.xlu0 %v2971, 8
    %v3357 = vpop.permute.xlu0 %3356
    %3358 = vrot.lane.b32.xlu0 %v3047, 8
    %v3359 = vpop.permute.xlu0 %3358
    %3364 = vrot.lane.b32.xlu0 %v3123, 16
    %v3365 = vpop.permute.xlu0 %3364
    %3366 = vrot.lane.b32.xlu0 %v3199, 16
    %v3367 = vpop.permute.xlu0 %3366
    %3372 = vrot.lane.b32.xlu0 %v3275, 24
    %v3373 = vpop.permute.xlu0 %3372
    %3374 = vrot.lane.b32.xlu0 %v3351, 24
    %v3375 = vpop.permute.xlu0 %3374
    %v3378 = vsel %vm244, %v2819, %v3357
    %v3379 = vsel %vm244, %v2895, %v3359
    %v3380 = vsel %vm1541, %v3378, %v3365
    %v3381 = vsel %vm1541, %v3379, %v3367
    %v3382 = vsel %vm1544, %v3380, %v3373
    %v3383 = vsel %vm1544, %v3381, %v3375
    %3388 = vrot.lane.b32.xlu0 %v1927, 32
    %v3389 = vpop.permute.xlu0 %3388
    %3390 = vrot.lane.b32.xlu0 %v1928, 32
    %v3391 = vpop.permute.xlu0 %3390
    %3392 = vrot.lane.b32.xlu0 %v1929, 32
    %v3393 = vpop.permute.xlu0 %3392
    %3394 = vrot.lane.b32.xlu0 %v1930, 32
    %v3395 = vpop.permute.xlu0 %3394
    %v3401 = vsel %vm89, %v3382, 0
    %v3404 = vsel %vm89, %v3383, 0
    %3406 = vmatprep.subr.mxu0 0.0
    %3407 = vmatpush1.msra.mxu0 %v3389
    %3408 = vmatprep.subr.mxu0 0.0
    %3409 = vmatpush1.msra.mxu0 %v3391
    %3410 = vmatprep.subr.mxu0 0.0
    %3411 = vmatpush1.msra.mxu0 %v3393
    %3412 = vmatprep.subr.mxu0 0.0
    %3413 = vmatpush1.msra.mxu0 %v3395
    %3414 = vmatprep.subr.mxu0 0.0
    %3415 = vmatpush1.msra.mxu0 0.0
    %3416 = vmatprep.subr.mxu0 0.0
    %3417 = vmatpush1.msra.mxu0 0.0
    %3418 = vmatprep.subr.mxu0 0.0
    %3419 = vmatpush1.msra.mxu0 0.0
    %3420 = vmatprep.subr.mxu0 0.0
    %3421 = vmatpush1.msra.mxu0 0.0
    %3422 = vmatprep.subr.mxu0 0.0
    %3423 = vmatpush1.msra.mxu0 0.0
    %3424 = vmatprep.subr.mxu0 0.0
    %3425 = vmatpush1.msra.mxu0 0.0
    %3426 = vmatprep.subr.mxu0 0.0
    %3427 = vmatpush1.msra.mxu0 0.0
    %3428 = vmatprep.subr.mxu0 0.0
    %3429 = vmatpush1.msra.mxu0 0.0
    %3430 = vmatprep.subr.mxu0 0.0
    %3431 = vmatpush1.msra.mxu0 0.0
    %3432 = vmatprep.subr.mxu0 0.0
    %3433 = vmatpush1.msra.mxu0 0.0
    %3434 = vmatprep.subr.mxu0 0.0
    %3435 = vmatpush1.msra.mxu0 0.0
    %3436 = vmatprep.subr.mxu0 0.0
    %3437 = vmatpush1.msra.mxu0 0.0
    %3438 = vmatprep.subr.mxu0 0.0
    %3439 = vmatpush1.msra.mxu0 0.0
    %3440 = vmatprep.subr.mxu0 0.0
    %3441 = vmatpush1.msra.mxu0 0.0
    %3442 = vmatprep.subr.mxu0 0.0
    %3443 = vmatpush1.msra.mxu0 0.0
    %3444 = vmatprep.subr.mxu0 0.0
    %3445 = vmatpush1.msra.mxu0 0.0
    %3446 = vmatprep.subr.mxu0 0.0
    %3447 = vmatpush1.msra.mxu0 0.0
    %3448 = vmatprep.subr.mxu0 0.0
    %3449 = vmatpush1.msra.mxu0 0.0
    %3450 = vmatprep.subr.mxu0 0.0
    %3451 = vmatpush1.msra.mxu0 0.0
    %3452 = vmatprep.subr.mxu0 0.0
    %3453 = vmatpush1.msra.mxu0 0.0
    %3454 = vmatprep.subr.mxu0 0.0
    %3455 = vmatpush1.msra.mxu0 0.0
    %3456 = vmatprep.subr.mxu0 0.0
    %3457 = vmatpush1.msra.mxu0 0.0
    %3458 = vmatprep.subr.mxu0 0.0
    %3459 = vmatpush1.msra.mxu0 0.0
    %3460 = vmatprep.subr.mxu0 0.0
    %3461 = vmatpush1.msra.mxu0 0.0
    %3462 = vmatprep.subr.mxu0 0.0
    %3463 = vmatpush1.msra.mxu0 0.0
    %3464 = vmatprep.subr.mxu0 0.0
    %3465 = vmatpush1.msra.mxu0 0.0
    %3466 = vmatprep.subr.mxu0 0.0
    %3467 = vmatpush1.msra.mxu0 0.0
    %3468 = vmatprep.subr.mxu0 0.0
    %3469 = vmatpush1.msra.mxu0 0.0
    %3470 = vmatprep.mubr.f32.mxu0 0.0
    %3471 = vmatmul.mubr.f32.gmra.mrb[0].mxu0 %v3401
    %v3472 = vpop.f32.mrb[0].mxu0
    %v3473 = vadd.f32 0.0, %v3472
    %v3474 = vpop.f32.mrb[0].mxu0
    %3475 = vmatprep.mubr.f32.mxu0 0.0
    %3476 = vmatmul.mubr.f32.gmra.mrb[0].mxu0 %v3404
    %v3477 = vpop.f32.mrb[0].mxu0
    %v3478 = vadd.f32 0.0, %v3477
    %v3479 = vpop.f32.mrb[0].mxu0
    %3480 = vdwg.mxu0
    %v3481 = vadd.f32 %v1924, %v3473
    %v3482 = vadd.f32 %v1925, %v3478
    %3484 = vrot.lane.b32.xlu0 %v1986, 32
    %v3485 = vpop.permute.xlu0 %3484
    %v3487 = vadd.f32 %v3481, %v3485
    %v3488 = vadd.f32 %v3482, %v3485
    %v3489 = vsel %vm89, %v3487, 0.0
    %3490 = vadd.xlane.f32.xlu0 %v3489
    %v3491 = vpop.xlane.xlu0 %3490
    %v3492 = vsel %vm89, %v3488, 0.0
    %3493 = vadd.xlane.f32.xlu0 %v3492
    %v3494 = vpop.xlane.xlu0 %3493
    %v3495 = vmul.f32 %v3491, %v96
    %v3496 = vmul.f32 %v3494, %v96
    %v3497 = vsub.f32 %v3487, %v3495
    %v3498 = vsub.f32 %v3488, %v3496
    %v3499 = vmul.f32 %v3497, %v3497
    %v3500 = vmul.f32 %v3498, %v3498
    %v3501 = vsel %vm89, %v3499, 0.0
    %3502 = vadd.xlane.f32.xlu0 %v3501
    %v3503 = vpop.xlane.xlu0 %3502
    %v3504 = vsel %vm89, %v3500, 0.0
    %3505 = vadd.xlane.f32.xlu0 %v3504
    %v3506 = vpop.xlane.xlu0 %3505
    %v3507 = vmul.f32 %v3503, 0.032258064
    %v3508 = vmul.f32 %v3506, 0.032258064
    %3511 = vrot.lane.b32.xlu0 %v3497, 64
    %v3512 = vpop.permute.xlu0 %3511
    %3513 = vrot.lane.b32.xlu0 %v3498, 64
    %v3514 = vpop.permute.xlu0 %3513
    %v3517 = vmul.f32 %v1954, %v3512
    %v3518 = vmul.f32 %v1954, %v3514
    %v3519 = vrsqrt.pop %v3507
    %v3520 = vmul.f32 %v3507, %v3519
    %vm3521 = vcmp.eq.f32.partialorder %v3507, inf
    %v3522 = vsel %vm3521, %v3507, %v3520
    %vm3523 = vcmp.eq.f32.partialorder %v3507, 0.0
    %v3524 = vand.u32 %v3507, 2147483648
    %v3525 = vsel %vm3523, %v3524, %v3522
    %v3526 = vrsqrt.pop %v3508
    %v3527 = vmul.f32 %v3508, %v3526
    %vm3528 = vcmp.eq.f32.partialorder %v3508, inf
    %v3529 = vsel %vm3528, %v3508, %v3527
    %vm3530 = vcmp.eq.f32.partialorder %v3508, 0.0
    %v3531 = vand.u32 %v3508, 2147483648
    %v3532 = vsel %vm3530, %v3531, %v3529
    %v3533 = vadd.f32 %v3525, 1e-06
    %v3534 = vadd.f32 %v3532, 1e-06
    %v3535 = vrcp.pop %v3533
    %v3536 = vmul.f32 %v3517, %v3535
    %v3537 = vrcp.pop %v3534
    %v3538 = vmul.f32 %v3518, %v3537
    %v3539 = vadd.f32 %v3536, %v1979
    %v3540 = vadd.f32 %v3538, %v1979
    %s3541 = scalar_lea.vmem [#allocation8], 32
    %v3542 = vld [vmem:[%s3541] sm:$0xff]
    %v3543 = vld [vmem:[%s3541 + $0x8] sm:$0xff]
    %v3544 = vld [vmem:[%s3541 + $0x10] sm:$0xff]
    %v3545 = vld [vmem:[%s3541 + $0x18] sm:$0xff]
    %v3546 = vlaneseq
    %v3547 = vshrl.u32 %v3546, 7
    %v3548 = vsub.s32 5, %v3547
    %v3549 = vrot.slane %v76, %v3548
    %3552 = vrot.lane.b32.xlu0 %v3539, 64
    %v3553 = vpop.permute.xlu0 %3552
    %3554 = vrot.lane.b32.xlu0 %v3540, 64
    %v3555 = vpop.permute.xlu0 %3554
    %v3556 = vsel %vm89, %v3553, 0
    %v3558 = vsel %vm89, %v3555, 0
    %3560 = vmatprep.subr.mxu0 0.0
    %3561 = vmatpush1.msra.mxu0 %v3542
    %3562 = vmatprep.subr.mxu0 0.0
    %3563 = vmatpush1.msra.mxu0 %v3543
    %3564 = vmatprep.subr.mxu0 0.0
    %3565 = vmatpush1.msra.mxu0 %v3544
    %3566 = vmatprep.subr.mxu0 0.0
    %3567 = vmatpush1.msra.mxu0 %v3545
    %3568 = vmatprep.subr.mxu0 0.0
    %3569 = vmatpush1.msra.mxu0 0.0
    %3570 = vmatprep.subr.mxu0 0.0
    %3571 = vmatpush1.msra.mxu0 0.0
    %3572 = vmatprep.subr.mxu0 0.0
    %3573 = vmatpush1.msra.mxu0 0.0
    %3574 = vmatprep.subr.mxu0 0.0
    %3575 = vmatpush1.msra.mxu0 0.0
    %3576 = vmatprep.subr.mxu0 0.0
    %3577 = vmatpush1.msra.mxu0 0.0
    %3578 = vmatprep.subr.mxu0 0.0
    %3579 = vmatpush1.msra.mxu0 0.0
    %3580 = vmatprep.subr.mxu0 0.0
    %3581 = vmatpush1.msra.mxu0 0.0
    %3582 = vmatprep.subr.mxu0 0.0
    %3583 = vmatpush1.msra.mxu0 0.0
    %3584 = vmatprep.subr.mxu0 0.0
    %3585 = vmatpush1.msra.mxu0 0.0
    %3586 = vmatprep.subr.mxu0 0.0
    %3587 = vmatpush1.msra.mxu0 0.0
    %3588 = vmatprep.subr.mxu0 0.0
    %3589 = vmatpush1.msra.mxu0 0.0
    %3590 = vmatprep.subr.mxu0 0.0
    %3591 = vmatpush1.msra.mxu0 0.0
    %3592 = vmatprep.subr.mxu0 0.0
    %3593 = vmatpush1.msra.mxu0 0.0
    %3594 = vmatprep.subr.mxu0 0.0
    %3595 = vmatpush1.msra.mxu0 0.0
    %3596 = vmatprep.subr.mxu0 0.0
    %3597 = vmatpush1.msra.mxu0 0.0
    %3598 = vmatprep.subr.mxu0 0.0
    %3599 = vmatpush1.msra.mxu0 0.0
    %3600 = vmatprep.subr.mxu0 0.0
    %3601 = vmatpush1.msra.mxu0 0.0
    %3602 = vmatprep.subr.mxu0 0.0
    %3603 = vmatpush1.msra.mxu0 0.0
    %3604 = vmatprep.subr.mxu0 0.0
    %3605 = vmatpush1.msra.mxu0 0.0
    %3606 = vmatprep.subr.mxu0 0.0
    %3607 = vmatpush1.msra.mxu0 0.0
    %3608 = vmatprep.subr.mxu0 0.0
    %3609 = vmatpush1.msra.mxu0 0.0
    %3610 = vmatprep.subr.mxu0 0.0
    %3611 = vmatpush1.msra.mxu0 0.0
    %3612 = vmatprep.subr.mxu0 0.0
    %3613 = vmatpush1.msra.mxu0 0.0
    %3614 = vmatprep.subr.mxu0 0.0
    %3615 = vmatpush1.msra.mxu0 0.0
    %3616 = vmatprep.subr.mxu0 0.0
    %3617 = vmatpush1.msra.mxu0 0.0
    %3618 = vmatprep.subr.mxu0 0.0
    %3619 = vmatpush1.msra.mxu0 0.0
    %3620 = vmatprep.subr.mxu0 0.0
    %3621 = vmatpush1.msra.mxu0 0.0
    %3622 = vmatprep.subr.mxu0 0.0
    %3623 = vmatpush1.msra.mxu0 0.0
    %3624 = vmatprep.mubr.f32.mxu0 0.0
    %3625 = vmatmul.mubr.f32.gmra.mrb[0].mxu0 %v3556
    %v3626 = vpop.f32.mrb[0].mxu0
    %v3627 = vadd.f32 %v3549, %v3626
    %v3628 = vpop.f32.mrb[0].mxu0
    %3629 = vmatprep.mubr.f32.mxu0 0.0
    %3630 = vmatmul.mubr.f32.gmra.mrb[0].mxu0 %v3558
    %v3631 = vpop.f32.mrb[0].mxu0
    %v3632 = vadd.f32 %v3549, %v3631
    %v3633 = vpop.f32.mrb[0].mxu0
    %3634 = vdwg.mxu0
    %v3635 = vmax.f32 %v3627, 0.0
    %v3636 = vmax.f32 %v3632, 0.0
    %3641 = vrot.lane.b32.xlu0 %v3542, 64
    %v3642 = vpop.permute.xlu0 %3641
    %3643 = vrot.lane.b32.xlu0 %v3543, 64
    %v3644 = vpop.permute.xlu0 %3643
    %3645 = vrot.lane.b32.xlu0 %v3544, 64
    %v3646 = vpop.permute.xlu0 %3645
    %3647 = vrot.lane.b32.xlu0 %v3545, 64
    %v3648 = vpop.permute.xlu0 %3647
    %3650 = vrot.lane.b32.xlu0 %v3549, 64
    %v3651 = vpop.permute.xlu0 %3650
    %v3654 = vsel %vm1815, %v3635, 0
    %v3657 = vsel %vm1815, %v3636, 0
    %v3659 = vsel %vm1815, %v3642, 0
    %v3661 = vsel %vm1815, %v3644, 0
    %v3663 = vsel %vm1815, %v3646, 0
    %v3665 = vsel %vm1815, %v3648, 0
    %3667 = vmatprep.subr.mxu0 0.0
    %3668 = vmatpush1.xpose.msra.mxu0 %v3659
    %3669 = vmatprep.subr.mxu0 0.0
    %3670 = vmatpush1.xpose.msra.mxu0 %v3661
    %3671 = vmatprep.subr.mxu0 0.0
    %3672 = vmatpush1.xpose.msra.mxu0 %v3663
    %3673 = vmatprep.subr.mxu0 0.0
    %3674 = vmatpush1.xpose.msra.mxu0 %v3665
    %3675 = vmatprep.subr.mxu0 0.0
    %3676 = vmatpush1.xpose.msra.mxu0 0.0
    %3677 = vmatprep.subr.mxu0 0.0
    %3678 = vmatpush1.xpose.msra.mxu0 0.0
    %3679 = vmatprep.subr.mxu0 0.0
    %3680 = vmatpush1.xpose.msra.mxu0 0.0
    %3681 = vmatprep.subr.mxu0 0.0
    %3682 = vmatpush1.xpose.msra.mxu0 0.0
    %3683 = vmatprep.subr.mxu0 0.0
    %3684 = vmatpush1.xpose.msra.mxu0 0.0
    %3685 = vmatprep.subr.mxu0 0.0
    %3686 = vmatpush1.xpose.msra.mxu0 0.0
    %3687 = vmatprep.subr.mxu0 0.0
    %3688 = vmatpush1.xpose.msra.mxu0 0.0
    %3689 = vmatprep.subr.mxu0 0.0
    %3690 = vmatpush1.xpose.msra.mxu0 0.0
    %3691 = vmatprep.subr.mxu0 0.0
    %3692 = vmatpush1.xpose.msra.mxu0 0.0
    %3693 = vmatprep.subr.mxu0 0.0
    %3694 = vmatpush1.xpose.msra.mxu0 0.0
    %3695 = vmatprep.subr.mxu0 0.0
    %3696 = vmatpush1.xpose.msra.mxu0 0.0
    %3697 = vmatprep.subr.mxu0 0.0
    %3698 = vmatpush1.xpose.msra.mxu0 0.0
    %3699 = vmatprep.subr.mxu0 0.0
    %3700 = vmatpush1.xpose.msra.mxu0 0.0
    %3701 = vmatprep.subr.mxu0 0.0
    %3702 = vmatpush1.xpose.msra.mxu0 0.0
    %3703 = vmatprep.subr.mxu0 0.0
    %3704 = vmatpush1.xpose.msra.mxu0 0.0
    %3705 = vmatprep.subr.mxu0 0.0
    %3706 = vmatpush1.xpose.msra.mxu0 0.0
    %3707 = vmatprep.subr.mxu0 0.0
    %3708 = vmatpush1.xpose.msra.mxu0 0.0
    %3709 = vmatprep.subr.mxu0 0.0
    %3710 = vmatpush1.xpose.msra.mxu0 0.0
    %3711 = vmatprep.subr.mxu0 0.0
    %3712 = vmatpush1.xpose.msra.mxu0 0.0
    %3713 = vmatprep.subr.mxu0 0.0
    %3714 = vmatpush1.xpose.msra.mxu0 0.0
    %3715 = vmatprep.subr.mxu0 0.0
    %3716 = vmatpush1.xpose.msra.mxu0 0.0
    %3717 = vmatprep.subr.mxu0 0.0
    %3718 = vmatpush1.xpose.msra.mxu0 0.0
    %3719 = vmatprep.subr.mxu0 0.0
    %3720 = vmatpush1.xpose.msra.mxu0 0.0
    %3721 = vmatprep.subr.mxu0 0.0
    %3722 = vmatpush1.xpose.msra.mxu0 0.0
    %3723 = vmatprep.subr.mxu0 0.0
    %3724 = vmatpush1.xpose.msra.mxu0 0.0
    %3725 = vmatprep.subr.mxu0 0.0
    %3726 = vmatpush1.xpose.msra.mxu0 0.0
    %3727 = vmatprep.subr.mxu0 0.0
    %3728 = vmatpush1.xpose.msra.mxu0 0.0
    %3729 = vmatprep.subr.mxu0 0.0
    %3730 = vmatpush1.xpose.msra.mxu0 0.0
    %3731 = vmatprep.mubr.f32.mxu0 0.0
    %3732 = vmatmul.mubr.f32.gmra.mrb[0].mxu0 %v3654
    %v3733 = vpop.f32.mrb[0].mxu0
    %v3734 = vadd.f32 %v3651, %v3733
    %v3735 = vpop.f32.mrb[0].mxu0
    %3736 = vmatprep.mubr.f32.mxu0 0.0
    %3737 = vmatmul.mubr.f32.gmra.mrb[0].mxu0 %v3657
    %v3738 = vpop.f32.mrb[0].mxu0
    %v3739 = vadd.f32 %v3651, %v3738
    %v3740 = vpop.f32.mrb[0].mxu0
    %3741 = vdwg.mxu0
    %v3742 = vadd.f32 %v3487, %v3734
    %v3743 = vadd.f32 %v3488, %v3739
    %v3744 = vsel %vm89, %v3742, 0.0
    %v3745 = vrot.slane %v3744, 4
    %v3746 = vadd.f32 %v3744, %v3745
    %v3747 = vrot.slane %v3746, 2
    %v3748 = vadd.f32 %v3746, %v3747
    %v3749 = vrot.slane %v3748, 1
    %v3750 = vadd.f32 %v3748, %v3749
    %v3751 = vsel %vm89, %v3743, 0.0
    %v3752 = vrot.slane %v3751, 4
    %v3753 = vadd.f32 %v3751, %v3752
    %v3754 = vrot.slane %v3753, 2
    %v3755 = vadd.f32 %v3753, %v3754
    %v3756 = vrot.slane %v3755, 1
    %v3757 = vadd.f32 %v3755, %v3756
    %v3758 = vmul.f32 %v3750, %v1921
    %v3759 = vmul.f32 %v3757, %v1921
    %v3760 = vadd.f32 %v3742, %v3758
    %v3761 = vadd.f32 %v3743, %v3759
    %v3762 = vsel %vm89, %v3760, 0.0
    %3763 = vadd.xlane.f32.xlu0 %v3762
    %v3764 = vpop.xlane.xlu0 %3763
    %v3765 = vsel %vm89, %v3761, 0.0
    %3766 = vadd.xlane.f32.xlu0 %v3765
    %v3767 = vpop.xlane.xlu0 %3766
    %v3768 = vmul.f32 %v3764, %v96
    %v3769 = vmul.f32 %v3767, %v96
    %v3770 = vsub.f32 %v3760, %v3768
    %v3771 = vsub.f32 %v3761, %v3769
    %v3772 = vmul.f32 %v3770, %v3770
    %v3773 = vmul.f32 %v3771, %v3771
    %v3774 = vsel %vm89, %v3772, 0.0
    %3775 = vadd.xlane.f32.xlu0 %v3774
    %v3776 = vpop.xlane.xlu0 %3775
    %v3777 = vsel %vm89, %v3773, 0.0
    %3778 = vadd.xlane.f32.xlu0 %v3777
    %v3779 = vpop.xlane.xlu0 %3778
    %v3780 = vmul.f32 %v3776, 0.032258064
    %v3781 = vmul.f32 %v3779, 0.032258064
    %v3782 = vlaneseq
    %v3783 = vshrl.u32 %v3782, 7
    %v3784 = vsub.s32 6, %v3783
    %v3785 = vrot.slane %v76, %v3784
    %v3786 = vmul.f32 %v3785, %v3770
    %v3787 = vmul.f32 %v3785, %v3771
    %v3788 = vrsqrt.pop %v3780
    %v3789 = vmul.f32 %v3780, %v3788
    %vm3790 = vcmp.eq.f32.partialorder %v3780, inf
    %v3791 = vsel %vm3790, %v3780, %v3789
    %vm3792 = vcmp.eq.f32.partialorder %v3780, 0.0
    %v3793 = vand.u32 %v3780, 2147483648
    %v3794 = vsel %vm3792, %v3793, %v3791
    %v3795 = vrsqrt.pop %v3781
    %v3796 = vmul.f32 %v3781, %v3795
    %vm3797 = vcmp.eq.f32.partialorder %v3781, inf
    %v3798 = vsel %vm3797, %v3781, %v3796
    %vm3799 = vcmp.eq.f32.partialorder %v3781, 0.0
    %v3800 = vand.u32 %v3781, 2147483648
    %v3801 = vsel %vm3799, %v3800, %v3798
    %v3802 = vadd.f32 %v3794, 1e-06
    %v3803 = vadd.f32 %v3801, 1e-06
    %v3804 = vrcp.pop %v3802
    %v3805 = vmul.f32 %v3786, %v3804
    %v3806 = vrcp.pop %v3803
    %v3807 = vmul.f32 %v3787, %v3806
    %3809 = vrot.lane.b32.xlu0 %v3785, 96
    %v3810 = vpop.permute.xlu0 %3809
    %v3812 = vadd.f32 %v3805, %v3810
    %v3813 = vadd.f32 %v3807, %v3810
    %3814 = vst.msk [vmem:[#allocation10] sm:$0xff] %vm89, %v3812
    %3815 = vst.msk [vmem:[#allocation10 + $0x8] sm:$0xff] %vm89, %v3813
    // Predicated region
    $region38: #{tpu_custom_call.1} parent=1 // pred_check
      _
    $region39: #{tpu_custom_call.1} parent=1 // pred_check_branch
      %3817 = sbr.rel (0) target = $region41
    $region40: #{tpu_custom_call.1} parent=1 // pred_region
      %s3819 = ssub.s32 256, 256
      %3820 = vsyncadd [#allocation4], %s3819
      %s3821 = sshll.u32 [#allocation10], 4
      %s3822 = int_to_ptr.vmem [resolvable:$true] %s3821
      %3827 = dma.vmem_to_hbm [thread:$0]  %s3822, 256, %s5, [#allocation4], 128, 128, 8
    $region41: #{tpu_custom_call.1} parent=1 // pred_fallthru
      _
    // Predicated region
    $region42: #{tpu_custom_call.1} parent=1 // pred_check
      _
    $region43: #{tpu_custom_call.1} parent=1 // pred_check_branch
      %3829 = sbr.rel (0) target = $region45
    $region44: #{tpu_custom_call.1} parent=1 // pred_region
      %3830 = dma.done [#allocation4], 256
    $region45: #{tpu_custom_call.1} parent=1 // pred_fallthru
      _
    %3831 = vsyncpa [#allocation3], 1
    %3832 = vsyncpa [#allocation6], 1
    %3833 = vsyncpa [#allocation9], 1
    %3834 = vsyncpa [#allocation4], 1

</llo_original>
